<compile_context>
chip_gen: v7x
topology: tpu7x:2x2x1
jax: 0.10.0
libtpu: 0.0.40
codegen_flags: <defaults>
</compile_context>

<pallas_src>
import functools
import numpy as np

import jax
import jax.numpy as jnp
from jax.experimental import pallas as pl
from jax.experimental.pallas import tpu as pltpu

WINDOW_SIZE = 11
SIGMA = 1.5


def _gaussian_1d(window_size, sigma):
    xs = np.arange(window_size, dtype=np.float64)
    g = np.exp(-((xs - window_size // 2) ** 2) / (2.0 * sigma ** 2))
    return g / g.sum()


def _largest_divisor_leq(n, cap):
    cap = max(1, min(n, cap))
    for d in range(cap, 0, -1):
        if n % d == 0:
            return d
    return 1


def _band_matrices(window_size, h, w, ho, wo, B, G):
    """Constant banded gaussian matrices (block-diagonal over B / G)."""
    g1d = _gaussian_1d(window_size, SIGMA)
    bv = np.zeros((ho, h), dtype=np.float64)        # vertical pass: out = bv @ x
    for i in range(ho):
        bv[i, i:i + window_size] = g1d
    bh = np.zeros((w, wo), dtype=np.float64)        # horizontal pass: out = t @ bh
    for j in range(wo):
        bh[j:j + window_size, j] = g1d
    bvt = np.kron(np.eye(B), bv).astype(np.float32)   # (B*ho, B*h)
    bhd = np.kron(np.eye(G), bh).astype(np.float32)   # (G*w, G*wo)
    return bvt, bhd


def _ssim_kernel(c_ref, bvt_ref, bh_ref, x_ref, y_ref, out_ref, *, inv_total):
    """One (B*h, G*w) packed tile (= B*G images) per grid step; write partial mean."""
    C1 = c_ref[0]
    C2 = c_ref[1]
    bvt = bvt_ref[...]                    # (B*ho, B*h)  constant band (vertical)
    bh = bh_ref[...]                      # (G*w, G*wo)  block-diag band (horizontal)

    x = x_ref[0].astype(jnp.float32)      # (B*h, G*w)
    y = y_ref[0].astype(jnp.float32)

    hi = jax.lax.Precision.HIGHEST

    def gconv(a):
        # separable 11x11 gaussian "valid" conv as two MXU matmuls
        t = jnp.dot(bvt, a, preferred_element_type=jnp.float32, precision=hi)
        return jnp.dot(t, bh, preferred_element_type=jnp.float32, precision=hi)

    mu1 = gconv(x)
    mu2 = gconv(y)
    mu1_sq = mu1 * mu1
    mu2_sq = mu2 * mu2
    mu1_mu2 = mu1 * mu2

    sigma1_sq = gconv(x * x) - mu1_sq
    sigma2_sq = gconv(y * y) - mu2_sq
    sigma12 = gconv(x * y) - mu1_mu2

    v1 = 2.0 * sigma12 + C2
    v2 = sigma1_sq + sigma2_sq + C2
    num = (2.0 * mu1_mu2 + C1) * v1
    den = (mu1_sq + mu2_sq + C1) * v2
    ssim_map = num * pl.reciprocal(den, approx=False)

    partial = jnp.sum(ssim_map) * inv_total
    out_ref[...] = jnp.zeros_like(out_ref) + partial


def ssim_pallas(img1, img2, window_size=WINDOW_SIZE):
    """Reproduces SSIM().forward(img1, img2) semantics for NCHW float inputs."""
    n, c, h, w = img1.shape
    assert h >= window_size and w >= window_size, "spatial dims must be >= window_size"
    ho = h - window_size + 1
    wo = w - window_size + 1
    nc = n * c

    # Lane packing factor (images side-by-side along W) and sublane batching (groups
    # stacked along H per grid step).
    G = _largest_divisor_leq(nc, max(1, 128 // w))
    B = _largest_divisor_leq(nc // G, max(1, 256 // h))
    num_steps = nc // (G * B)

    # (N,C,H,W) -> (steps, B, G, H, W) -> (steps, B, H, G, W) -> (steps, B*H, G*W)
    def pack(img):
        a = img.reshape(num_steps, B, G, h, w)
        a = jnp.transpose(a, (0, 1, 3, 2, 4))
        return a.reshape(num_steps, B * h, G * w)

    x = pack(img1)   # keep original HBM dtype; cast to f32 inside the kernel
    y = pack(img2)

    # val_range=None branch of the reference (data-dependent scalar L), fed via SMEM.
    max_val = jnp.where(jnp.max(img1) > 128.0, 255.0, 1.0)
    min_val = jnp.where(jnp.min(img1) < -0.5, -1.0, 0.0)
    L = max_val - min_val
    c1c2 = jnp.stack([(0.01 * L) ** 2, (0.03 * L) ** 2]).astype(jnp.float32)

    bvt_np, bh_np = _band_matrices(window_size, h, w, ho, wo, B, G)
    bvt = jnp.asarray(bvt_np)
    bh = jnp.asarray(bh_np)

    inv_total = 1.0 / float(nc * ho * wo)
    kernel = functools.partial(_ssim_kernel, inv_total=inv_total)

    # TODO(synk): for very large images (v7x's 64 MiB VMEM) add an H-tiling grid axis
    # with a (window_size - 1)-row halo; unnecessary at these block sizes.
    partials = pl.pallas_call(
        kernel,
        out_shape=jax.ShapeDtypeStruct((num_steps, 1), jnp.float32),
        grid_spec=pltpu.PrefetchScalarGridSpec(
            num_scalar_prefetch=0,
            grid=(num_steps,),
            in_specs=[
                pl.BlockSpec(memory_space=pltpu.MemorySpace.SMEM),      # [C1, C2]
                pl.BlockSpec((B * ho, B * h), lambda i: (0, 0)),        # vertical band
                pl.BlockSpec((G * w, G * wo), lambda i: (0, 0)),        # horizontal band
                pl.BlockSpec((1, B * h, G * w), lambda i: (i, 0, 0)),   # img1 pack
                pl.BlockSpec((1, B * h, G * w), lambda i: (i, 0, 0)),   # img2 pack
            ],
            out_specs=pl.BlockSpec((1, 1), lambda i: (i, 0)),           # per-step partial
        ),
        compiler_params=pltpu.CompilerParams(
            dimension_semantics=("parallel",)),
    )(c1c2, bvt, bh, x, y)
    return jnp.sum(partials)


def _ssim_ref_numpy(img1, img2, window_size=WINDOW_SIZE, sigma=SIGMA):
    """Pure-numpy re-implementation of the PyTorch reference, for checking."""
    a1 = np.asarray(img1, dtype=np.float64)
    a2 = np.asarray(img2, dtype=np.float64)
    max_val = 255.0 if a1.max() > 128 else 1.0
    min_val = -1.0 if a1.min() < -0.5 else 0.0
    L = max_val - min_val
    g = _gaussian_1d(window_size, sigma)
    win = np.outer(g, g)
    N, C, H, W = a1.shape
    ho, wo = H - window_size + 1, W - window_size + 1

    def conv(a):
        out = np.zeros((N, C, ho, wo), dtype=np.float64)
        for i in range(window_size):
            for j in range(window_size):
                out += win[i, j] * a[:, :, i:i + ho, j:j + wo]
        return out

    mu1, mu2 = conv(a1), conv(a2)
    mu1_sq, mu2_sq, mu1_mu2 = mu1 ** 2, mu2 ** 2, mu1 * mu2
    s1 = conv(a1 * a1) - mu1_sq
    s2 = conv(a2 * a2) - mu2_sq
    s12 = conv(a1 * a2) - mu1_mu2
    C1, C2 = (0.01 * L) ** 2, (0.03 * L) ** 2
    v1, v2 = 2.0 * s12 + C2, s1 + s2 + C2
    ssim_map = (2 * mu1_mu2 + C1) * v1 / ((mu1_sq + mu2_sq + C1) * v2)
    return ssim_map.mean()


if __name__ == "__main__":
    key = jax.random.PRNGKey(0)
    k1, k2 = jax.random.split(key)
    # small NCHW inputs, spatial must be >= window_size (11)
    img1 = jax.random.uniform(k1, (2, 4, 16, 16), dtype=jnp.float32)
    img2 = jax.random.uniform(k2, (2, 4, 16, 16), dtype=jnp.float32)

    result = jax.block_until_ready(ssim_pallas(img1, img2))

    ref = _ssim_ref_numpy(np.array(img1), np.array(img2))
    assert abs(float(result) - float(ref)) < 1e-4, (float(result), float(ref))

    print("KERNEL_OK")
</pallas_src>

<mosaic_0001>
module attributes {stable_mosaic.version = 11 : i64} {
  func.func @_ssim_kernel(%arg0: i32, %arg1: memref<2xf32, #tpu.memory_space<smem>>, %arg2: memref<6x16xf32, #tpu.memory_space<vmem>>, %arg3: memref<128x48xf32, #tpu.memory_space<vmem>>, %arg4: memref<1x16x128xf32, #tpu.memory_space<vmem>>, %arg5: memref<1x16x128xf32, #tpu.memory_space<vmem>>, %arg6: memref<1x1xf32, #tpu.memory_space<vmem>>) attributes {dimension_semantics = [#tpu.dimension_semantics<parallel>], iteration_bounds = array<i64: 1>, scalar_prefetch = 0 : i64, scratch_operands = 0 : i64, tpu.core_type = #tpu.core_type<tc>, window_params = [{transform_indices = @transform_0, window_bounds = array<i64: 2>}, {pipeline_mode = #tpu.pipeline_mode<synchronous>, transform_indices = @transform_1, window_bounds = array<i64: 6, 16>}, {pipeline_mode = #tpu.pipeline_mode<synchronous>, transform_indices = @transform_2, window_bounds = array<i64: 128, 48>}, {transform_indices = @transform_3, window_bounds = array<i64: 1, 16, 128>}, {transform_indices = @transform_4, window_bounds = array<i64: 1, 16, 128>}, {transform_indices = @transform_5, window_bounds = array<i64: 1, 1>}]} {
    %c0 = arith.constant 0 : index
    %0 = memref.load %arg1[%c0] : memref<2xf32, #tpu.memory_space<smem>>
    %c1 = arith.constant 1 : index
    %1 = memref.load %arg1[%c1] : memref<2xf32, #tpu.memory_space<smem>>
    %c0_0 = arith.constant 0 : index
    %c0_1 = arith.constant 0 : index
    %2 = vector.load %arg2[%c0_0, %c0_1] : memref<6x16xf32, #tpu.memory_space<vmem>>, vector<6x16xf32>
    %c0_2 = arith.constant 0 : index
    %c0_3 = arith.constant 0 : index
    %3 = vector.load %arg3[%c0_2, %c0_3] : memref<128x48xf32, #tpu.memory_space<vmem>>, vector<128x48xf32>
    %c0_4 = arith.constant 0 : index
    %c0_5 = arith.constant 0 : index
    %c0_6 = arith.constant 0 : index
    %4 = vector.load %arg4[%c0_4, %c0_5, %c0_6] : memref<1x16x128xf32, #tpu.memory_space<vmem>>, vector<1x16x128xf32>
    %5 = vector.shape_cast %4 : vector<1x16x128xf32> to vector<16x128xf32>
    %c0_7 = arith.constant 0 : index
    %c0_8 = arith.constant 0 : index
    %c0_9 = arith.constant 0 : index
    %6 = vector.load %arg5[%c0_7, %c0_8, %c0_9] : memref<1x16x128xf32, #tpu.memory_space<vmem>>, vector<1x16x128xf32>
    %7 = vector.shape_cast %6 : vector<1x16x128xf32> to vector<16x128xf32>
    %cst = arith.constant dense<0.000000e+00> : vector<6x128xf32>
    %8 = tpu.matmul %2, %5, %cst {dimension_numbers = #tpu.dot_dimension_numbers<[1], [0], [0], [1], [0, 0, 1, 1], [], []>, precision = #tpu.contract_precision<fp32>} : vector<6x16xf32>, vector<16x128xf32>, vector<6x128xf32> -> vector<6x128xf32>
    %cst_10 = arith.constant dense<0.000000e+00> : vector<6x48xf32>
    %9 = tpu.matmul %8, %3, %cst_10 {dimension_numbers = #tpu.dot_dimension_numbers<[1], [0], [0], [1], [0, 0, 1, 1], [], []>, precision = #tpu.contract_precision<fp32>} : vector<6x128xf32>, vector<128x48xf32>, vector<6x48xf32> -> vector<6x48xf32>
    %cst_11 = arith.constant dense<0.000000e+00> : vector<6x128xf32>
    %10 = tpu.matmul %2, %7, %cst_11 {dimension_numbers = #tpu.dot_dimension_numbers<[1], [0], [0], [1], [0, 0, 1, 1], [], []>, precision = #tpu.contract_precision<fp32>} : vector<6x16xf32>, vector<16x128xf32>, vector<6x128xf32> -> vector<6x128xf32>
    %cst_12 = arith.constant dense<0.000000e+00> : vector<6x48xf32>
    %11 = tpu.matmul %10, %3, %cst_12 {dimension_numbers = #tpu.dot_dimension_numbers<[1], [0], [0], [1], [0, 0, 1, 1], [], []>, precision = #tpu.contract_precision<fp32>} : vector<6x128xf32>, vector<128x48xf32>, vector<6x48xf32> -> vector<6x48xf32>
    %12 = arith.mulf %9, %9 : vector<6x48xf32>
    %13 = arith.mulf %11, %11 : vector<6x48xf32>
    %14 = arith.mulf %9, %11 : vector<6x48xf32>
    %15 = arith.mulf %5, %5 : vector<16x128xf32>
    %cst_13 = arith.constant dense<0.000000e+00> : vector<6x128xf32>
    %16 = tpu.matmul %2, %15, %cst_13 {dimension_numbers = #tpu.dot_dimension_numbers<[1], [0], [0], [1], [0, 0, 1, 1], [], []>, precision = #tpu.contract_precision<fp32>} : vector<6x16xf32>, vector<16x128xf32>, vector<6x128xf32> -> vector<6x128xf32>
    %cst_14 = arith.constant dense<0.000000e+00> : vector<6x48xf32>
    %17 = tpu.matmul %16, %3, %cst_14 {dimension_numbers = #tpu.dot_dimension_numbers<[1], [0], [0], [1], [0, 0, 1, 1], [], []>, precision = #tpu.contract_precision<fp32>} : vector<6x128xf32>, vector<128x48xf32>, vector<6x48xf32> -> vector<6x48xf32>
    %18 = arith.subf %17, %12 : vector<6x48xf32>
    %19 = arith.mulf %7, %7 : vector<16x128xf32>
    %cst_15 = arith.constant dense<0.000000e+00> : vector<6x128xf32>
    %20 = tpu.matmul %2, %19, %cst_15 {dimension_numbers = #tpu.dot_dimension_numbers<[1], [0], [0], [1], [0, 0, 1, 1], [], []>, precision = #tpu.contract_precision<fp32>} : vector<6x16xf32>, vector<16x128xf32>, vector<6x128xf32> -> vector<6x128xf32>
    %cst_16 = arith.constant dense<0.000000e+00> : vector<6x48xf32>
    %21 = tpu.matmul %20, %3, %cst_16 {dimension_numbers = #tpu.dot_dimension_numbers<[1], [0], [0], [1], [0, 0, 1, 1], [], []>, precision = #tpu.contract_precision<fp32>} : vector<6x128xf32>, vector<128x48xf32>, vector<6x48xf32> -> vector<6x48xf32>
    %22 = arith.subf %21, %13 : vector<6x48xf32>
    %23 = arith.mulf %5, %7 : vector<16x128xf32>
    %cst_17 = arith.constant dense<0.000000e+00> : vector<6x128xf32>
    %24 = tpu.matmul %2, %23, %cst_17 {dimension_numbers = #tpu.dot_dimension_numbers<[1], [0], [0], [1], [0, 0, 1, 1], [], []>, precision = #tpu.contract_precision<fp32>} : vector<6x16xf32>, vector<16x128xf32>, vector<6x128xf32> -> vector<6x128xf32>
    %cst_18 = arith.constant dense<0.000000e+00> : vector<6x48xf32>
    %25 = tpu.matmul %24, %3, %cst_18 {dimension_numbers = #tpu.dot_dimension_numbers<[1], [0], [0], [1], [0, 0, 1, 1], [], []>, precision = #tpu.contract_precision<fp32>} : vector<6x128xf32>, vector<128x48xf32>, vector<6x48xf32> -> vector<6x48xf32>
    %26 = arith.subf %25, %14 : vector<6x48xf32>
    %cst_19 = arith.constant 2.000000e+00 : f32
    %27 = vector.broadcast %cst_19 : f32 to vector<6x48xf32>
    %28 = arith.mulf %27, %26 : vector<6x48xf32>
    %29 = vector.broadcast %1 : f32 to vector<6x48xf32>
    %30 = arith.addf %28, %29 : vector<6x48xf32>
    %31 = arith.addf %18, %22 : vector<6x48xf32>
    %32 = vector.broadcast %1 : f32 to vector<6x48xf32>
    %33 = arith.addf %31, %32 : vector<6x48xf32>
    %cst_20 = arith.constant 2.000000e+00 : f32
    %34 = vector.broadcast %cst_20 : f32 to vector<6x48xf32>
    %35 = arith.mulf %34, %14 : vector<6x48xf32>
    %36 = vector.broadcast %0 : f32 to vector<6x48xf32>
    %37 = arith.addf %35, %36 : vector<6x48xf32>
    %38 = arith.mulf %37, %30 : vector<6x48xf32>
    %39 = arith.addf %12, %13 : vector<6x48xf32>
    %40 = vector.broadcast %0 : f32 to vector<6x48xf32>
    %41 = arith.addf %39, %40 : vector<6x48xf32>
    %42 = arith.mulf %41, %33 : vector<6x48xf32>
    %43 = tpu.reciprocal %42 : vector<6x48xf32> -> vector<6x48xf32>
    %44 = arith.mulf %38, %43 : vector<6x48xf32>
    %45 = vector.shape_cast %44 : vector<6x48xf32> to vector<1x6x48xf32>
    %cst_21 = arith.constant dense<0.000000e+00> : vector<1xf32>
    %46 = vector.multi_reduction <add>, %45, %cst_21 [1, 2] : vector<1x6x48xf32> to vector<1xf32>
    %47 = vector.shape_cast %46 : vector<1xf32> to vector<1x1x1xf32>
    %48 = vector.extract %47[0, 0, 0] : f32 from vector<1x1x1xf32>
    %cst_22 = arith.constant 0.00347222225 : f32
    %49 = arith.mulf %48, %cst_22 : f32
    %cst_23 = arith.constant 0.000000e+00 : f32
    %50 = vector.broadcast %cst_23 : f32 to vector<1x1xf32>
    %51 = vector.broadcast %49 : f32 to vector<1x1xf32>
    %52 = arith.addf %50, %51 : vector<1x1xf32>
    %c0_24 = arith.constant 0 : index
    %c0_25 = arith.constant 0 : index
    %53 = vector.load %arg6[%c0_24, %c0_25] : memref<1x1xf32, #tpu.memory_space<vmem>>, vector<1x1xf32>
    tpu.vector_store %arg6[%c0_24, %c0_25], %52 {strides = array<i32>} : memref<1x1xf32, #tpu.memory_space<vmem>>, vector<1x1xf32>,
    return
  }
  func.func @transform_0(%arg0: i32) -> i32 {
    %c0_i32 = arith.constant 0 : i32
    %c0_i32_0 = arith.constant 0 : i32
    return %c0_i32 : i32
  }
  func.func @transform_1(%arg0: i32) -> (i32, i32) {
    %c0_i32 = arith.constant 0 : i32
    %c0_i32_0 = arith.constant 0 : i32
    %c0_i32_1 = arith.constant 0 : i32
    return %c0_i32, %c0_i32_0 : i32, i32
  }
  func.func @transform_2(%arg0: i32) -> (i32, i32) {
    %c0_i32 = arith.constant 0 : i32
    %c0_i32_0 = arith.constant 0 : i32
    %c0_i32_1 = arith.constant 0 : i32
    return %c0_i32, %c0_i32_0 : i32, i32
  }
  func.func @transform_3(%arg0: i32) -> (i32, i32, i32) {
    %c0_i32 = arith.constant 0 : i32
    %c0_i32_0 = arith.constant 0 : i32
    %c0_i32_1 = arith.constant 0 : i32
    return %arg0, %c0_i32, %c0_i32_0 : i32, i32, i32
  }
  func.func @transform_4(%arg0: i32) -> (i32, i32, i32) {
    %c0_i32 = arith.constant 0 : i32
    %c0_i32_0 = arith.constant 0 : i32
    %c0_i32_1 = arith.constant 0 : i32
    return %arg0, %c0_i32, %c0_i32_0 : i32, i32, i32
  }
  func.func @transform_5(%arg0: i32) -> (i32, i32) {
    %c0_i32 = arith.constant 0 : i32
    %c0_i32_0 = arith.constant 0 : i32
    return %arg0, %c0_i32 : i32, i32
  }
}

</mosaic_0001>

<llo_original>
// kernel: tpu_custom_call.1
$region0: #{tpu_custom_call.1}
  #allocation0 [shape = 'u32[]', space=smem, size = 0x4, offset = 0x4, fixed_abs, tag = 'smem constant byte address 0x4 - core index']
  #allocation1 [shape = 'u32[144,128]{1,0:T(1,128)}', space=vmem, size = 0x12000, scoped, tag = 'internal scratch']
  %s0 = inlined_call_operand.vmem [shape: f32[2], index: 0, kind: input, shape index: {}]
  %s1 = inlined_call_operand.vmem [shape: f32[6,16], index: 1, kind: input, shape index: {}]
  %s2 = inlined_call_operand.vmem [shape: f32[128,48], index: 2, kind: input, shape index: {}]
  %s3 = inlined_call_operand.vmem [shape: f32[1,16,128], index: 3, kind: input, shape index: {}]
  %s4 = inlined_call_operand.vmem [shape: f32[1,16,128], index: 4, kind: input, shape index: {}]
  %s5 = inlined_call_operand.hbm [shape: f32[1,1], index: 5, kind: output, shape index: {}]
  %s6 = sld [smem:[#allocation0]]
  $region34: #{tpu_custom_call.1} parent=0
    _
  %s8 = ssub.s32 1, %s6
  %s9 = scalar_select 0, %s8, %s6
  $region1: #{tpu_custom_call.1} parent=0
    #allocation2 [shape = 'u8[512]{0}', space=smem, size = 0x200, scoped, tag = 'input window, operand 0, single buffered']
    #allocation3 [shape = 's32[1]{0}', space=sflag, size = 0x4, scoped, tag = 'scoped memory for tpu_custom_call.1']
    #allocation4 [shape = 's32[1]{0}', space=sflag, size = 0x4, scoped, tag = 'scoped memory for tpu_custom_call.1']
    #allocation5 [shape = 'u8[512]{0}', space=vmem, size = 0x400, scoped, tag = 'output window, operand 0, single buffered']
    %10 = vsyncpa [#allocation4], 0
    %11 = vsyncpa [#allocation3], 0
    // Predicated region
    $region2: #{tpu_custom_call.1} parent=1 // pred_check
      _
    $region3: #{tpu_custom_call.1} parent=1 // pred_check_branch
      %13 = sbr.rel (0) target = $region5
    $region4: #{tpu_custom_call.1} parent=1 // pred_region
      %s15 = ssub.s32 16, 16
      %16 = vsyncadd [#allocation4], %s15
      %s18 = sshll.u32 %s0, 4
      %s19 = int_to_ptr.vmem [resolvable:$true] %s18
      %21 = dma.vmem_to_smem %s19, 16, [#allocation2], [#allocation4]
    $region5: #{tpu_custom_call.1} parent=1 // pred_fallthru
      _
    // Predicated region
    $region6: #{tpu_custom_call.1} parent=1 // pred_check
      _
    $region7: #{tpu_custom_call.1} parent=1 // pred_check_branch
      %23 = sbr.rel (0) target = $region9
    $region8: #{tpu_custom_call.1} parent=1 // pred_region
      _
    $region9: #{tpu_custom_call.1} parent=1 // pred_fallthru
      _
    // Predicated region
    $region10: #{tpu_custom_call.1} parent=1 // pred_check
      _
    $region11: #{tpu_custom_call.1} parent=1 // pred_check_branch
      %25 = sbr.rel (0) target = $region13
    $region12: #{tpu_custom_call.1} parent=1 // pred_region
      _
    $region13: #{tpu_custom_call.1} parent=1 // pred_fallthru
      _
    // Predicated region
    $region14: #{tpu_custom_call.1} parent=1 // pred_check
      _
    $region15: #{tpu_custom_call.1} parent=1 // pred_check_branch
      %27 = sbr.rel (0) target = $region17
    $region16: #{tpu_custom_call.1} parent=1 // pred_region
      _
    $region17: #{tpu_custom_call.1} parent=1 // pred_fallthru
      _
    // Predicated region
    $region18: #{tpu_custom_call.1} parent=1 // pred_check
      _
    $region19: #{tpu_custom_call.1} parent=1 // pred_check_branch
      %29 = sbr.rel (0) target = $region21
    $region20: #{tpu_custom_call.1} parent=1 // pred_region
      _
    $region21: #{tpu_custom_call.1} parent=1 // pred_fallthru
      _
    // Predicated region
    $region22: #{tpu_custom_call.1} parent=1 // pred_check
      _
    $region23: #{tpu_custom_call.1} parent=1 // pred_check_branch
      %31 = sbr.rel (0) target = $region25
    $region24: #{tpu_custom_call.1} parent=1 // pred_region
      %32 = dma.done [#allocation4], 16
    $region25: #{tpu_custom_call.1} parent=1 // pred_fallthru
      _
    %33 = sfence
    %s34 = sld [smem:[#allocation2]]
    %s35 = sld [smem:[#allocation2 + $0x1]]
    %v36 = vld [vmem:[%s1] sm:$0x3f]
    %v37 = vld [vmem:[%s2] sm:$0xff]
    %v38 = vld [vmem:[%s2 + $0x8] sm:$0xff]
    %v39 = vld [vmem:[%s2 + $0x10] sm:$0xff]
    %v40 = vld [vmem:[%s2 + $0x18] sm:$0xff]
    %v41 = vld [vmem:[%s2 + $0x20] sm:$0xff]
    %v42 = vld [vmem:[%s2 + $0x28] sm:$0xff]
    %v43 = vld [vmem:[%s2 + $0x30] sm:$0xff]
    %v44 = vld [vmem:[%s2 + $0x38] sm:$0xff]
    %v45 = vld [vmem:[%s2 + $0x40] sm:$0xff]
    %v46 = vld [vmem:[%s2 + $0x48] sm:$0xff]
    %v47 = vld [vmem:[%s2 + $0x50] sm:$0xff]
    %v48 = vld [vmem:[%s2 + $0x58] sm:$0xff]
    %v49 = vld [vmem:[%s2 + $0x60] sm:$0xff]
    %v50 = vld [vmem:[%s2 + $0x68] sm:$0xff]
    %v51 = vld [vmem:[%s2 + $0x70] sm:$0xff]
    %v52 = vld [vmem:[%s2 + $0x78] sm:$0xff]
    %v53 = vld [vmem:[%s3] sm:$0xff]
    %v54 = vld [vmem:[%s3 + $0x8] sm:$0xff]
    %v55 = vld [vmem:[%s4] sm:$0xff]
    %v56 = vld [vmem:[%s4 + $0x8] sm:$0xff]
    %vm57 = vcmask 130048
    %v59 = vsel %vm57, %v36, 0
    %61 = vmatprep.subr.mxu0 0.0
    %v62 = vand.u32 %v53, 4294901760
    %63 = vmatpush1.msra.mxu0 %v62
    %64 = vmatprep.subr.mxu0 0.0
    %v65 = vand.u32 %v54, 4294901760
    %66 = vmatpush1.msra.mxu0 %v65
    %67 = vmatprep.subr.mxu0 0.0
    %68 = vmatpush1.msra.mxu0 0.0
    %69 = vmatprep.subr.mxu0 0.0
    %70 = vmatpush1.msra.mxu0 0.0
    %71 = vmatprep.subr.mxu0 0.0
    %72 = vmatpush1.msra.mxu0 0.0
    %73 = vmatprep.subr.mxu0 0.0
    %74 = vmatpush1.msra.mxu0 0.0
    %75 = vmatprep.subr.mxu0 0.0
    %76 = vmatpush1.msra.mxu0 0.0
    %77 = vmatprep.subr.mxu0 0.0
    %78 = vmatpush1.msra.mxu0 0.0
    %79 = vmatprep.subr.mxu0 0.0
    %80 = vmatpush1.msra.mxu0 0.0
    %81 = vmatprep.subr.mxu0 0.0
    %82 = vmatpush1.msra.mxu0 0.0
    %83 = vmatprep.subr.mxu0 0.0
    %84 = vmatpush1.msra.mxu0 0.0
    %85 = vmatprep.subr.mxu0 0.0
    %86 = vmatpush1.msra.mxu0 0.0
    %87 = vmatprep.subr.mxu0 0.0
    %88 = vmatpush1.msra.mxu0 0.0
    %89 = vmatprep.subr.mxu0 0.0
    %90 = vmatpush1.msra.mxu0 0.0
    %91 = vmatprep.subr.mxu0 0.0
    %92 = vmatpush1.msra.mxu0 0.0
    %93 = vmatprep.subr.mxu0 0.0
    %94 = vmatpush1.msra.mxu0 0.0
    %95 = vmatprep.subr.mxu0 0.0
    %96 = vmatpush1.msra.mxu0 0.0
    %97 = vmatprep.subr.mxu0 0.0
    %98 = vmatpush1.msra.mxu0 0.0
    %99 = vmatprep.subr.mxu0 0.0
    %100 = vmatpush1.msra.mxu0 0.0
    %101 = vmatprep.subr.mxu0 0.0
    %102 = vmatpush1.msra.mxu0 0.0
    %103 = vmatprep.subr.mxu0 0.0
    %104 = vmatpush1.msra.mxu0 0.0
    %105 = vmatprep.subr.mxu0 0.0
    %106 = vmatpush1.msra.mxu0 0.0
    %107 = vmatprep.subr.mxu0 0.0
    %108 = vmatpush1.msra.mxu0 0.0
    %109 = vmatprep.subr.mxu0 0.0
    %110 = vmatpush1.msra.mxu0 0.0
    %111 = vmatprep.subr.mxu0 0.0
    %112 = vmatpush1.msra.mxu0 0.0
    %113 = vmatprep.subr.mxu0 0.0
    %114 = vmatpush1.msra.mxu0 0.0
    %115 = vmatprep.subr.mxu0 0.0
    %116 = vmatpush1.msra.mxu0 0.0
    %117 = vmatprep.subr.mxu0 0.0
    %118 = vmatpush1.msra.mxu0 0.0
    %119 = vmatprep.subr.mxu0 0.0
    %120 = vmatpush1.msra.mxu0 0.0
    %121 = vmatprep.subr.mxu0 0.0
    %122 = vmatpush1.msra.mxu0 0.0
    %123 = vmatprep.subr.mxu0 0.0
    %124 = vmatpush1.msra.mxu0 0.0
    %125 = vmatprep.subr.mxu0 0.0
    %126 = vmatpush1.msra.mxu0 0.0
    %127 = vmatprep.mubr.f32.mxu0 0.0
    %v128 = vand.u32 %v59, 4294901760
    %v129 = vsub.f32 %v59, %v128
    %v130 = vand.u32 %v129, 4294901760
    %v131 = vsub.f32 %v129, %v130
    %v132 = vand.u32 %v131, 4294901760
    %133 = vmatmul.mubr.f32.gmra.mrb[0].mxu0 %v132
    %v134 = vpop.f32.mrb[0].mxu0
    %v135 = vadd.f32 0.0, %v134
    %v136 = vpop.f32.mrb[0].mxu0
    %137 = vdwg.mxu0
    %138 = vmatprep.subr.mxu0 0.0
    %v139 = vand.u32 %v53, 4294901760
    %v140 = vsub.f32 %v53, %v139
    %v141 = vand.u32 %v140, 4294901760
    %v142 = vsub.f32 %v140, %v141
    %v143 = vand.u32 %v142, 4294901760
    %144 = vmatpush1.msra.mxu0 %v143
    %145 = vmatprep.subr.mxu0 0.0
    %v146 = vand.u32 %v54, 4294901760
    %v147 = vsub.f32 %v54, %v146
    %v148 = vand.u32 %v147, 4294901760
    %v149 = vsub.f32 %v147, %v148
    %v150 = vand.u32 %v149, 4294901760
    %151 = vmatpush1.msra.mxu0 %v150
    %152 = vmatprep.subr.mxu0 0.0
    %153 = vmatpush1.msra.mxu0 0.0
    %154 = vmatprep.subr.mxu0 0.0
    %155 = vmatpush1.msra.mxu0 0.0
    %156 = vmatprep.subr.mxu0 0.0
    %157 = vmatpush1.msra.mxu0 0.0
    %158 = vmatprep.subr.mxu0 0.0
    %159 = vmatpush1.msra.mxu0 0.0
    %160 = vmatprep.subr.mxu0 0.0
    %161 = vmatpush1.msra.mxu0 0.0
    %162 = vmatprep.subr.mxu0 0.0
    %163 = vmatpush1.msra.mxu0 0.0
    %164 = vmatprep.subr.mxu0 0.0
    %165 = vmatpush1.msra.mxu0 0.0
    %166 = vmatprep.subr.mxu0 0.0
    %167 = vmatpush1.msra.mxu0 0.0
    %168 = vmatprep.subr.mxu0 0.0
    %169 = vmatpush1.msra.mxu0 0.0
    %170 = vmatprep.subr.mxu0 0.0
    %171 = vmatpush1.msra.mxu0 0.0
    %172 = vmatprep.subr.mxu0 0.0
    %173 = vmatpush1.msra.mxu0 0.0
    %174 = vmatprep.subr.mxu0 0.0
    %175 = vmatpush1.msra.mxu0 0.0
    %176 = vmatprep.subr.mxu0 0.0
    %177 = vmatpush1.msra.mxu0 0.0
    %178 = vmatprep.subr.mxu0 0.0
    %179 = vmatpush1.msra.mxu0 0.0
    %180 = vmatprep.subr.mxu0 0.0
    %181 = vmatpush1.msra.mxu0 0.0
    %182 = vmatprep.subr.mxu0 0.0
    %183 = vmatpush1.msra.mxu0 0.0
    %184 = vmatprep.subr.mxu0 0.0
    %185 = vmatpush1.msra.mxu0 0.0
    %186 = vmatprep.subr.mxu0 0.0
    %187 = vmatpush1.msra.mxu0 0.0
    %188 = vmatprep.subr.mxu0 0.0
    %189 = vmatpush1.msra.mxu0 0.0
    %190 = vmatprep.subr.mxu0 0.0
    %191 = vmatpush1.msra.mxu0 0.0
    %192 = vmatprep.subr.mxu0 0.0
    %193 = vmatpush1.msra.mxu0 0.0
    %194 = vmatprep.subr.mxu0 0.0
    %195 = vmatpush1.msra.mxu0 0.0
    %196 = vmatprep.subr.mxu0 0.0
    %197 = vmatpush1.msra.mxu0 0.0
    %198 = vmatprep.subr.mxu0 0.0
    %199 = vmatpush1.msra.mxu0 0.0
    %200 = vmatprep.subr.mxu0 0.0
    %201 = vmatpush1.msra.mxu0 0.0
    %202 = vmatprep.subr.mxu0 0.0
    %203 = vmatpush1.msra.mxu0 0.0
    %204 = vmatprep.subr.mxu0 0.0
    %205 = vmatpush1.msra.mxu0 0.0
    %206 = vmatprep.subr.mxu0 0.0
    %207 = vmatpush1.msra.mxu0 0.0
    %208 = vmatprep.subr.mxu0 0.0
    %209 = vmatpush1.msra.mxu0 0.0
    %210 = vmatprep.subr.mxu0 0.0
    %211 = vmatpush1.msra.mxu0 0.0
    %212 = vmatprep.mubr.f32.mxu0 0.0
    %v213 = vand.u32 %v59, 4294901760
    %214 = vmatmul.mubr.f32.gmra.mrb[0].mxu0 %v213
    %v215 = vpop.f32.mrb[0].mxu0
    %v216 = vadd.f32 %v135, %v215
    %v217 = vpop.f32.mrb[0].mxu0
    %218 = vdwg.mxu0
    %219 = vmatprep.subr.mxu0 0.0
    %v220 = vand.u32 %v53, 4294901760
    %v221 = vsub.f32 %v53, %v220
    %222 = vmatpush1.msra.mxu0 %v221
    %223 = vmatprep.subr.mxu0 0.0
    %v224 = vand.u32 %v54, 4294901760
    %v225 = vsub.f32 %v54, %v224
    %226 = vmatpush1.msra.mxu0 %v225
    %227 = vmatprep.subr.mxu0 0.0
    %228 = vmatpush1.msra.mxu0 0.0
    %229 = vmatprep.subr.mxu0 0.0
    %230 = vmatpush1.msra.mxu0 0.0
    %231 = vmatprep.subr.mxu0 0.0
    %232 = vmatpush1.msra.mxu0 0.0
    %233 = vmatprep.subr.mxu0 0.0
    %234 = vmatpush1.msra.mxu0 0.0
    %235 = vmatprep.subr.mxu0 0.0
    %236 = vmatpush1.msra.mxu0 0.0
    %237 = vmatprep.subr.mxu0 0.0
    %238 = vmatpush1.msra.mxu0 0.0
    %239 = vmatprep.subr.mxu0 0.0
    %240 = vmatpush1.msra.mxu0 0.0
    %241 = vmatprep.subr.mxu0 0.0
    %242 = vmatpush1.msra.mxu0 0.0
    %243 = vmatprep.subr.mxu0 0.0
    %244 = vmatpush1.msra.mxu0 0.0
    %245 = vmatprep.subr.mxu0 0.0
    %246 = vmatpush1.msra.mxu0 0.0
    %247 = vmatprep.subr.mxu0 0.0
    %248 = vmatpush1.msra.mxu0 0.0
    %249 = vmatprep.subr.mxu0 0.0
    %250 = vmatpush1.msra.mxu0 0.0
    %251 = vmatprep.subr.mxu0 0.0
    %252 = vmatpush1.msra.mxu0 0.0
    %253 = vmatprep.subr.mxu0 0.0
    %254 = vmatpush1.msra.mxu0 0.0
    %255 = vmatprep.subr.mxu0 0.0
    %256 = vmatpush1.msra.mxu0 0.0
    %257 = vmatprep.subr.mxu0 0.0
    %258 = vmatpush1.msra.mxu0 0.0
    %259 = vmatprep.subr.mxu0 0.0
    %260 = vmatpush1.msra.mxu0 0.0
    %261 = vmatprep.subr.mxu0 0.0
    %262 = vmatpush1.msra.mxu0 0.0
    %263 = vmatprep.subr.mxu0 0.0
    %264 = vmatpush1.msra.mxu0 0.0
    %265 = vmatprep.subr.mxu0 0.0
    %266 = vmatpush1.msra.mxu0 0.0
    %267 = vmatprep.subr.mxu0 0.0
    %268 = vmatpush1.msra.mxu0 0.0
    %269 = vmatprep.subr.mxu0 0.0
    %270 = vmatpush1.msra.mxu0 0.0
    %271 = vmatprep.subr.mxu0 0.0
    %272 = vmatpush1.msra.mxu0 0.0
    %273 = vmatprep.subr.mxu0 0.0
    %274 = vmatpush1.msra.mxu0 0.0
    %275 = vmatprep.subr.mxu0 0.0
    %276 = vmatpush1.msra.mxu0 0.0
    %277 = vmatprep.subr.mxu0 0.0
    %278 = vmatpush1.msra.mxu0 0.0
    %279 = vmatprep.subr.mxu0 0.0
    %280 = vmatpush1.msra.mxu0 0.0
    %281 = vmatprep.subr.mxu0 0.0
    %282 = vmatpush1.msra.mxu0 0.0
    %283 = vmatprep.subr.mxu0 0.0
    %284 = vmatpush1.msra.mxu0 0.0
    %285 = vmatprep.subr.mxu0 0.0
    %286 = vmatpush1.msra.mxu0 0.0
    %287 = vmatprep.mubr.f32.mxu0 0.0
    %v288 = vand.u32 %v59, 4294901760
    %v289 = vsub.f32 %v59, %v288
    %290 = vmatmul.mubr.f32.gmra.mrb[0].mxu0 %v289
    %v291 = vpop.f32.mrb[0].mxu0
    %v292 = vadd.f32 %v216, %v291
    %v293 = vpop.f32.mrb[0].mxu0
    %294 = vdwg.mxu0
    %295 = vmatprep.subr.mxu0 0.0
    %v296 = vand.u32 %v53, 4294901760
    %297 = vmatpush1.msra.mxu0 %v296
    %298 = vmatprep.subr.mxu0 0.0
    %v299 = vand.u32 %v54, 4294901760
    %300 = vmatpush1.msra.mxu0 %v299
    %301 = vmatprep.subr.mxu0 0.0
    %302 = vmatpush1.msra.mxu0 0.0
    %303 = vmatprep.subr.mxu0 0.0
    %304 = vmatpush1.msra.mxu0 0.0
    %305 = vmatprep.subr.mxu0 0.0
    %306 = vmatpush1.msra.mxu0 0.0
    %307 = vmatprep.subr.mxu0 0.0
    %308 = vmatpush1.msra.mxu0 0.0
    %309 = vmatprep.subr.mxu0 0.0
    %310 = vmatpush1.msra.mxu0 0.0
    %311 = vmatprep.subr.mxu0 0.0
    %312 = vmatpush1.msra.mxu0 0.0
    %313 = vmatprep.subr.mxu0 0.0
    %314 = vmatpush1.msra.mxu0 0.0
    %315 = vmatprep.subr.mxu0 0.0
    %316 = vmatpush1.msra.mxu0 0.0
    %317 = vmatprep.subr.mxu0 0.0
    %318 = vmatpush1.msra.mxu0 0.0
    %319 = vmatprep.subr.mxu0 0.0
    %320 = vmatpush1.msra.mxu0 0.0
    %321 = vmatprep.subr.mxu0 0.0
    %322 = vmatpush1.msra.mxu0 0.0
    %323 = vmatprep.subr.mxu0 0.0
    %324 = vmatpush1.msra.mxu0 0.0
    %325 = vmatprep.subr.mxu0 0.0
    %326 = vmatpush1.msra.mxu0 0.0
    %327 = vmatprep.subr.mxu0 0.0
    %328 = vmatpush1.msra.mxu0 0.0
    %329 = vmatprep.subr.mxu0 0.0
    %330 = vmatpush1.msra.mxu0 0.0
    %331 = vmatprep.subr.mxu0 0.0
    %332 = vmatpush1.msra.mxu0 0.0
    %333 = vmatprep.subr.mxu0 0.0
    %334 = vmatpush1.msra.mxu0 0.0
    %335 = vmatprep.subr.mxu0 0.0
    %336 = vmatpush1.msra.mxu0 0.0
    %337 = vmatprep.subr.mxu0 0.0
    %338 = vmatpush1.msra.mxu0 0.0
    %339 = vmatprep.subr.mxu0 0.0
    %340 = vmatpush1.msra.mxu0 0.0
    %341 = vmatprep.subr.mxu0 0.0
    %342 = vmatpush1.msra.mxu0 0.0
    %343 = vmatprep.subr.mxu0 0.0
    %344 = vmatpush1.msra.mxu0 0.0
    %345 = vmatprep.subr.mxu0 0.0
    %346 = vmatpush1.msra.mxu0 0.0
    %347 = vmatprep.subr.mxu0 0.0
    %348 = vmatpush1.msra.mxu0 0.0
    %349 = vmatprep.subr.mxu0 0.0
    %350 = vmatpush1.msra.mxu0 0.0
    %351 = vmatprep.subr.mxu0 0.0
    %352 = vmatpush1.msra.mxu0 0.0
    %353 = vmatprep.subr.mxu0 0.0
    %354 = vmatpush1.msra.mxu0 0.0
    %355 = vmatprep.subr.mxu0 0.0
    %356 = vmatpush1.msra.mxu0 0.0
    %357 = vmatprep.subr.mxu0 0.0
    %358 = vmatpush1.msra.mxu0 0.0
    %359 = vmatprep.subr.mxu0 0.0
    %360 = vmatpush1.msra.mxu0 0.0
    %361 = vmatprep.mubr.f32.mxu0 0.0
    %v362 = vand.u32 %v59, 4294901760
    %v363 = vsub.f32 %v59, %v362
    %v364 = vand.u32 %v363, 4294901760
    %365 = vmatmul.mubr.f32.gmra.mrb[0].mxu0 %v364
    %v366 = vpop.f32.mrb[0].mxu0
    %v367 = vadd.f32 %v292, %v366
    %v368 = vpop.f32.mrb[0].mxu0
    %369 = vdwg.mxu0
    %370 = vmatprep.subr.mxu0 0.0
    %v371 = vand.u32 %v53, 4294901760
    %v372 = vsub.f32 %v53, %v371
    %v373 = vand.u32 %v372, 4294901760
    %374 = vmatpush1.msra.mxu0 %v373
    %375 = vmatprep.subr.mxu0 0.0
    %v376 = vand.u32 %v54, 4294901760
    %v377 = vsub.f32 %v54, %v376
    %v378 = vand.u32 %v377, 4294901760
    %379 = vmatpush1.msra.mxu0 %v378
    %380 = vmatprep.subr.mxu0 0.0
    %381 = vmatpush1.msra.mxu0 0.0
    %382 = vmatprep.subr.mxu0 0.0
    %383 = vmatpush1.msra.mxu0 0.0
    %384 = vmatprep.subr.mxu0 0.0
    %385 = vmatpush1.msra.mxu0 0.0
    %386 = vmatprep.subr.mxu0 0.0
    %387 = vmatpush1.msra.mxu0 0.0
    %388 = vmatprep.subr.mxu0 0.0
    %389 = vmatpush1.msra.mxu0 0.0
    %390 = vmatprep.subr.mxu0 0.0
    %391 = vmatpush1.msra.mxu0 0.0
    %392 = vmatprep.subr.mxu0 0.0
    %393 = vmatpush1.msra.mxu0 0.0
    %394 = vmatprep.subr.mxu0 0.0
    %395 = vmatpush1.msra.mxu0 0.0
    %396 = vmatprep.subr.mxu0 0.0
    %397 = vmatpush1.msra.mxu0 0.0
    %398 = vmatprep.subr.mxu0 0.0
    %399 = vmatpush1.msra.mxu0 0.0
    %400 = vmatprep.subr.mxu0 0.0
    %401 = vmatpush1.msra.mxu0 0.0
    %402 = vmatprep.subr.mxu0 0.0
    %403 = vmatpush1.msra.mxu0 0.0
    %404 = vmatprep.subr.mxu0 0.0
    %405 = vmatpush1.msra.mxu0 0.0
    %406 = vmatprep.subr.mxu0 0.0
    %407 = vmatpush1.msra.mxu0 0.0
    %408 = vmatprep.subr.mxu0 0.0
    %409 = vmatpush1.msra.mxu0 0.0
    %410 = vmatprep.subr.mxu0 0.0
    %411 = vmatpush1.msra.mxu0 0.0
    %412 = vmatprep.subr.mxu0 0.0
    %413 = vmatpush1.msra.mxu0 0.0
    %414 = vmatprep.subr.mxu0 0.0
    %415 = vmatpush1.msra.mxu0 0.0
    %416 = vmatprep.subr.mxu0 0.0
    %417 = vmatpush1.msra.mxu0 0.0
    %418 = vmatprep.subr.mxu0 0.0
    %419 = vmatpush1.msra.mxu0 0.0
    %420 = vmatprep.subr.mxu0 0.0
    %421 = vmatpush1.msra.mxu0 0.0
    %422 = vmatprep.subr.mxu0 0.0
    %423 = vmatpush1.msra.mxu0 0.0
    %424 = vmatprep.subr.mxu0 0.0
    %425 = vmatpush1.msra.mxu0 0.0
    %426 = vmatprep.subr.mxu0 0.0
    %427 = vmatpush1.msra.mxu0 0.0
    %428 = vmatprep.subr.mxu0 0.0
    %429 = vmatpush1.msra.mxu0 0.0
    %430 = vmatprep.subr.mxu0 0.0
    %431 = vmatpush1.msra.mxu0 0.0
    %432 = vmatprep.subr.mxu0 0.0
    %433 = vmatpush1.msra.mxu0 0.0
    %434 = vmatprep.subr.mxu0 0.0
    %435 = vmatpush1.msra.mxu0 0.0
    %436 = vmatprep.subr.mxu0 0.0
    %437 = vmatpush1.msra.mxu0 0.0
    %438 = vmatprep.subr.mxu0 0.0
    %439 = vmatpush1.msra.mxu0 0.0
    %440 = vmatprep.mubr.f32.mxu0 0.0
    %v441 = vand.u32 %v59, 4294901760
    %442 = vmatmul.mubr.f32.gmra.mrb[0].mxu0 %v441
    %v443 = vpop.f32.mrb[0].mxu0
    %v444 = vadd.f32 %v367, %v443
    %v445 = vpop.f32.mrb[0].mxu0
    %446 = vdwg.mxu0
    %447 = vmatprep.subr.mxu0 0.0
    %v448 = vand.u32 %v53, 4294901760
    %449 = vmatpush1.msra.mxu0 %v448
    %450 = vmatprep.subr.mxu0 0.0
    %v451 = vand.u32 %v54, 4294901760
    %452 = vmatpush1.msra.mxu0 %v451
    %453 = vmatprep.subr.mxu0 0.0
    %454 = vmatpush1.msra.mxu0 0.0
    %455 = vmatprep.subr.mxu0 0.0
    %456 = vmatpush1.msra.mxu0 0.0
    %457 = vmatprep.subr.mxu0 0.0
    %458 = vmatpush1.msra.mxu0 0.0
    %459 = vmatprep.subr.mxu0 0.0
    %460 = vmatpush1.msra.mxu0 0.0
    %461 = vmatprep.subr.mxu0 0.0
    %462 = vmatpush1.msra.mxu0 0.0
    %463 = vmatprep.subr.mxu0 0.0
    %464 = vmatpush1.msra.mxu0 0.0
    %465 = vmatprep.subr.mxu0 0.0
    %466 = vmatpush1.msra.mxu0 0.0
    %467 = vmatprep.subr.mxu0 0.0
    %468 = vmatpush1.msra.mxu0 0.0
    %469 = vmatprep.subr.mxu0 0.0
    %470 = vmatpush1.msra.mxu0 0.0
    %471 = vmatprep.subr.mxu0 0.0
    %472 = vmatpush1.msra.mxu0 0.0
    %473 = vmatprep.subr.mxu0 0.0
    %474 = vmatpush1.msra.mxu0 0.0
    %475 = vmatprep.subr.mxu0 0.0
    %476 = vmatpush1.msra.mxu0 0.0
    %477 = vmatprep.subr.mxu0 0.0
    %478 = vmatpush1.msra.mxu0 0.0
    %479 = vmatprep.subr.mxu0 0.0
    %480 = vmatpush1.msra.mxu0 0.0
    %481 = vmatprep.subr.mxu0 0.0
    %482 = vmatpush1.msra.mxu0 0.0
    %483 = vmatprep.subr.mxu0 0.0
    %484 = vmatpush1.msra.mxu0 0.0
    %485 = vmatprep.subr.mxu0 0.0
    %486 = vmatpush1.msra.mxu0 0.0
    %487 = vmatprep.subr.mxu0 0.0
    %488 = vmatpush1.msra.mxu0 0.0
    %489 = vmatprep.subr.mxu0 0.0
    %490 = vmatpush1.msra.mxu0 0.0
    %491 = vmatprep.subr.mxu0 0.0
    %492 = vmatpush1.msra.mxu0 0.0
    %493 = vmatprep.subr.mxu0 0.0
    %494 = vmatpush1.msra.mxu0 0.0
    %495 = vmatprep.subr.mxu0 0.0
    %496 = vmatpush1.msra.mxu0 0.0
    %497 = vmatprep.subr.mxu0 0.0
    %498 = vmatpush1.msra.mxu0 0.0
    %499 = vmatprep.subr.mxu0 0.0
    %500 = vmatpush1.msra.mxu0 0.0
    %501 = vmatprep.subr.mxu0 0.0
    %502 = vmatpush1.msra.mxu0 0.0
    %503 = vmatprep.subr.mxu0 0.0
    %504 = vmatpush1.msra.mxu0 0.0
    %505 = vmatprep.subr.mxu0 0.0
    %506 = vmatpush1.msra.mxu0 0.0
    %507 = vmatprep.subr.mxu0 0.0
    %508 = vmatpush1.msra.mxu0 0.0
    %509 = vmatprep.subr.mxu0 0.0
    %510 = vmatpush1.msra.mxu0 0.0
    %511 = vmatprep.subr.mxu0 0.0
    %512 = vmatpush1.msra.mxu0 0.0
    %513 = vmatprep.mubr.f32.mxu0 0.0
    %v514 = vand.u32 %v59, 4294901760
    %515 = vmatmul.mubr.f32.gmra.mrb[0].mxu0 %v514
    %v516 = vpop.f32.mrb[0].mxu0
    %v517 = vadd.f32 %v444, %v516
    %v518 = vpop.f32.mrb[0].mxu0
    %519 = vdwg.mxu0
    %520 = vmatprep.subr.mxu0 0.0
    %v521 = vand.u32 %v37, 4294901760
    %522 = vmatpush1.msra.mxu0 %v521
    %523 = vmatprep.subr.mxu0 0.0
    %v524 = vand.u32 %v38, 4294901760
    %525 = vmatpush1.msra.mxu0 %v524
    %526 = vmatprep.subr.mxu0 0.0
    %v527 = vand.u32 %v39, 4294901760
    %528 = vmatpush1.msra.mxu0 %v527
    %529 = vmatprep.subr.mxu0 0.0
    %v530 = vand.u32 %v40, 4294901760
    %531 = vmatpush1.msra.mxu0 %v530
    %532 = vmatprep.subr.mxu0 0.0
    %v533 = vand.u32 %v41, 4294901760
    %534 = vmatpush1.msra.mxu0 %v533
    %535 = vmatprep.subr.mxu0 0.0
    %v536 = vand.u32 %v42, 4294901760
    %537 = vmatpush1.msra.mxu0 %v536
    %538 = vmatprep.subr.mxu0 0.0
    %v539 = vand.u32 %v43, 4294901760
    %540 = vmatpush1.msra.mxu0 %v539
    %541 = vmatprep.subr.mxu0 0.0
    %v542 = vand.u32 %v44, 4294901760
    %543 = vmatpush1.msra.mxu0 %v542
    %544 = vmatprep.subr.mxu0 0.0
    %v545 = vand.u32 %v45, 4294901760
    %546 = vmatpush1.msra.mxu0 %v545
    %547 = vmatprep.subr.mxu0 0.0
    %v548 = vand.u32 %v46, 4294901760
    %549 = vmatpush1.msra.mxu0 %v548
    %550 = vmatprep.subr.mxu0 0.0
    %v551 = vand.u32 %v47, 4294901760
    %552 = vmatpush1.msra.mxu0 %v551
    %553 = vmatprep.subr.mxu0 0.0
    %v554 = vand.u32 %v48, 4294901760
    %555 = vmatpush1.msra.mxu0 %v554
    %556 = vmatprep.subr.mxu0 0.0
    %v557 = vand.u32 %v49, 4294901760
    %558 = vmatpush1.msra.mxu0 %v557
    %559 = vmatprep.subr.mxu0 0.0
    %v560 = vand.u32 %v50, 4294901760
    %561 = vmatpush1.msra.mxu0 %v560
    %562 = vmatprep.subr.mxu0 0.0
    %v563 = vand.u32 %v51, 4294901760
    %564 = vmatpush1.msra.mxu0 %v563
    %565 = vmatprep.subr.mxu0 0.0
    %v566 = vand.u32 %v52, 4294901760
    %567 = vmatpush1.msra.mxu0 %v566
    %568 = vmatprep.subr.mxu0 0.0
    %569 = vmatpush1.msra.mxu0 0.0
    %570 = vmatprep.subr.mxu0 0.0
    %571 = vmatpush1.msra.mxu0 0.0
    %572 = vmatprep.subr.mxu0 0.0
    %573 = vmatpush1.msra.mxu0 0.0
    %574 = vmatprep.subr.mxu0 0.0
    %575 = vmatpush1.msra.mxu0 0.0
    %576 = vmatprep.subr.mxu0 0.0
    %577 = vmatpush1.msra.mxu0 0.0
    %578 = vmatprep.subr.mxu0 0.0
    %579 = vmatpush1.msra.mxu0 0.0
    %580 = vmatprep.subr.mxu0 0.0
    %581 = vmatpush1.msra.mxu0 0.0
    %582 = vmatprep.subr.mxu0 0.0
    %583 = vmatpush1.msra.mxu0 0.0
    %584 = vmatprep.subr.mxu0 0.0
    %585 = vmatpush1.msra.mxu0 0.0
    %586 = vmatprep.subr.mxu0 0.0
    %587 = vmatpush1.msra.mxu0 0.0
    %588 = vmatprep.subr.mxu0 0.0
    %589 = vmatpush1.msra.mxu0 0.0
    %590 = vmatprep.subr.mxu0 0.0
    %591 = vmatpush1.msra.mxu0 0.0
    %592 = vmatprep.subr.mxu0 0.0
    %593 = vmatpush1.msra.mxu0 0.0
    %594 = vmatprep.subr.mxu0 0.0
    %595 = vmatpush1.msra.mxu0 0.0
    %596 = vmatprep.subr.mxu0 0.0
    %597 = vmatpush1.msra.mxu0 0.0
    %598 = vmatprep.subr.mxu0 0.0
    %599 = vmatpush1.msra.mxu0 0.0
    %600 = vmatprep.mubr.f32.mxu0 0.0
    %v601 = vand.u32 %v517, 4294901760
    %v602 = vsub.f32 %v517, %v601
    %v603 = vand.u32 %v602, 4294901760
    %v604 = vsub.f32 %v602, %v603
    %v605 = vand.u32 %v604, 4294901760
    %606 = vmatmul.mubr.f32.gmra.mrb[0].mxu0 %v605
    %v607 = vpop.f32.mrb[0].mxu0
    %v608 = vadd.f32 0.0, %v607
    %v609 = vpop.f32.mrb[0].mxu0
    %610 = vdwg.mxu0
    %611 = vmatprep.subr.mxu0 0.0
    %v612 = vand.u32 %v37, 4294901760
    %v613 = vsub.f32 %v37, %v612
    %v614 = vand.u32 %v613, 4294901760
    %v615 = vsub.f32 %v613, %v614
    %v616 = vand.u32 %v615, 4294901760
    %617 = vmatpush1.msra.mxu0 %v616
    %618 = vmatprep.subr.mxu0 0.0
    %v619 = vand.u32 %v38, 4294901760
    %v620 = vsub.f32 %v38, %v619
    %v621 = vand.u32 %v620, 4294901760
    %v622 = vsub.f32 %v620, %v621
    %v623 = vand.u32 %v622, 4294901760
    %624 = vmatpush1.msra.mxu0 %v623
    %625 = vmatprep.subr.mxu0 0.0
    %v626 = vand.u32 %v39, 4294901760
    %v627 = vsub.f32 %v39, %v626
    %v628 = vand.u32 %v627, 4294901760
    %v629 = vsub.f32 %v627, %v628
    %v630 = vand.u32 %v629, 4294901760
    %631 = vmatpush1.msra.mxu0 %v630
    %632 = vmatprep.subr.mxu0 0.0
    %v633 = vand.u32 %v40, 4294901760
    %v634 = vsub.f32 %v40, %v633
    %v635 = vand.u32 %v634, 4294901760
    %v636 = vsub.f32 %v634, %v635
    %v637 = vand.u32 %v636, 4294901760
    %638 = vmatpush1.msra.mxu0 %v637
    %639 = vmatprep.subr.mxu0 0.0
    %v640 = vand.u32 %v41, 4294901760
    %v641 = vsub.f32 %v41, %v640
    %v642 = vand.u32 %v641, 4294901760
    %v643 = vsub.f32 %v641, %v642
    %v644 = vand.u32 %v643, 4294901760
    %645 = vmatpush1.msra.mxu0 %v644
    %646 = vmatprep.subr.mxu0 0.0
    %v647 = vand.u32 %v42, 4294901760
    %v648 = vsub.f32 %v42, %v647
    %v649 = vand.u32 %v648, 4294901760
    %v650 = vsub.f32 %v648, %v649
    %v651 = vand.u32 %v650, 4294901760
    %652 = vmatpush1.msra.mxu0 %v651
    %653 = vmatprep.subr.mxu0 0.0
    %v654 = vand.u32 %v43, 4294901760
    %v655 = vsub.f32 %v43, %v654
    %v656 = vand.u32 %v655, 4294901760
    %v657 = vsub.f32 %v655, %v656
    %v658 = vand.u32 %v657, 4294901760
    %659 = vmatpush1.msra.mxu0 %v658
    %660 = vmatprep.subr.mxu0 0.0
    %v661 = vand.u32 %v44, 4294901760
    %v662 = vsub.f32 %v44, %v661
    %v663 = vand.u32 %v662, 4294901760
    %v664 = vsub.f32 %v662, %v663
    %v665 = vand.u32 %v664, 4294901760
    %666 = vmatpush1.msra.mxu0 %v665
    %667 = vmatprep.subr.mxu0 0.0
    %v668 = vand.u32 %v45, 4294901760
    %v669 = vsub.f32 %v45, %v668
    %v670 = vand.u32 %v669, 4294901760
    %v671 = vsub.f32 %v669, %v670
    %v672 = vand.u32 %v671, 4294901760
    %673 = vmatpush1.msra.mxu0 %v672
    %674 = vmatprep.subr.mxu0 0.0
    %v675 = vand.u32 %v46, 4294901760
    %v676 = vsub.f32 %v46, %v675
    %v677 = vand.u32 %v676, 4294901760
    %v678 = vsub.f32 %v676, %v677
    %v679 = vand.u32 %v678, 4294901760
    %680 = vmatpush1.msra.mxu0 %v679
    %681 = vmatprep.subr.mxu0 0.0
    %v682 = vand.u32 %v47, 4294901760
    %v683 = vsub.f32 %v47, %v682
    %v684 = vand.u32 %v683, 4294901760
    %v685 = vsub.f32 %v683, %v684
    %v686 = vand.u32 %v685, 4294901760
    %687 = vmatpush1.msra.mxu0 %v686
    %688 = vmatprep.subr.mxu0 0.0
    %v689 = vand.u32 %v48, 4294901760
    %v690 = vsub.f32 %v48, %v689
    %v691 = vand.u32 %v690, 4294901760
    %v692 = vsub.f32 %v690, %v691
    %v693 = vand.u32 %v692, 4294901760
    %694 = vmatpush1.msra.mxu0 %v693
    %695 = vmatprep.subr.mxu0 0.0
    %v696 = vand.u32 %v49, 4294901760
    %v697 = vsub.f32 %v49, %v696
    %v698 = vand.u32 %v697, 4294901760
    %v699 = vsub.f32 %v697, %v698
    %v700 = vand.u32 %v699, 4294901760
    %701 = vmatpush1.msra.mxu0 %v700
    %702 = vmatprep.subr.mxu0 0.0
    %v703 = vand.u32 %v50, 4294901760
    %v704 = vsub.f32 %v50, %v703
    %v705 = vand.u32 %v704, 4294901760
    %v706 = vsub.f32 %v704, %v705
    %v707 = vand.u32 %v706, 4294901760
    %708 = vmatpush1.msra.mxu0 %v707
    %709 = vmatprep.subr.mxu0 0.0
    %v710 = vand.u32 %v51, 4294901760
    %v711 = vsub.f32 %v51, %v710
    %v712 = vand.u32 %v711, 4294901760
    %v713 = vsub.f32 %v711, %v712
    %v714 = vand.u32 %v713, 4294901760
    %715 = vmatpush1.msra.mxu0 %v714
    %716 = vmatprep.subr.mxu0 0.0
    %v717 = vand.u32 %v52, 4294901760
    %v718 = vsub.f32 %v52, %v717
    %v719 = vand.u32 %v718, 4294901760
    %v720 = vsub.f32 %v718, %v719
    %v721 = vand.u32 %v720, 4294901760
    %722 = vmatpush1.msra.mxu0 %v721
    %723 = vmatprep.subr.mxu0 0.0
    %724 = vmatpush1.msra.mxu0 0.0
    %725 = vmatprep.subr.mxu0 0.0
    %726 = vmatpush1.msra.mxu0 0.0
    %727 = vmatprep.subr.mxu0 0.0
    %728 = vmatpush1.msra.mxu0 0.0
    %729 = vmatprep.subr.mxu0 0.0
    %730 = vmatpush1.msra.mxu0 0.0
    %731 = vmatprep.subr.mxu0 0.0
    %732 = vmatpush1.msra.mxu0 0.0
    %733 = vmatprep.subr.mxu0 0.0
    %734 = vmatpush1.msra.mxu0 0.0
    %735 = vmatprep.subr.mxu0 0.0
    %736 = vmatpush1.msra.mxu0 0.0
    %737 = vmatprep.subr.mxu0 0.0
    %738 = vmatpush1.msra.mxu0 0.0
    %739 = vmatprep.subr.mxu0 0.0
    %740 = vmatpush1.msra.mxu0 0.0
    %741 = vmatprep.subr.mxu0 0.0
    %742 = vmatpush1.msra.mxu0 0.0
    %743 = vmatprep.subr.mxu0 0.0
    %744 = vmatpush1.msra.mxu0 0.0
    %745 = vmatprep.subr.mxu0 0.0
    %746 = vmatpush1.msra.mxu0 0.0
    %747 = vmatprep.subr.mxu0 0.0
    %748 = vmatpush1.msra.mxu0 0.0
    %749 = vmatprep.subr.mxu0 0.0
    %750 = vmatpush1.msra.mxu0 0.0
    %751 = vmatprep.subr.mxu0 0.0
    %752 = vmatpush1.msra.mxu0 0.0
    %753 = vmatprep.subr.mxu0 0.0
    %754 = vmatpush1.msra.mxu0 0.0
    %755 = vmatprep.mubr.f32.mxu0 0.0
    %v756 = vand.u32 %v517, 4294901760
    %757 = vmatmul.mubr.f32.gmra.mrb[0].mxu0 %v756
    %v758 = vpop.f32.mrb[0].mxu0
    %v759 = vadd.f32 %v608, %v758
    %v760 = vpop.f32.mrb[0].mxu0
    %761 = vdwg.mxu0
    %762 = vmatprep.subr.mxu0 0.0
    %v763 = vand.u32 %v37, 4294901760
    %v764 = vsub.f32 %v37, %v763
    %765 = vmatpush1.msra.mxu0 %v764
    %766 = vmatprep.subr.mxu0 0.0
    %v767 = vand.u32 %v38, 4294901760
    %v768 = vsub.f32 %v38, %v767
    %769 = vmatpush1.msra.mxu0 %v768
    %770 = vmatprep.subr.mxu0 0.0
    %v771 = vand.u32 %v39, 4294901760
    %v772 = vsub.f32 %v39, %v771
    %773 = vmatpush1.msra.mxu0 %v772
    %774 = vmatprep.subr.mxu0 0.0
    %v775 = vand.u32 %v40, 4294901760
    %v776 = vsub.f32 %v40, %v775
    %777 = vmatpush1.msra.mxu0 %v776
    %778 = vmatprep.subr.mxu0 0.0
    %v779 = vand.u32 %v41, 4294901760
    %v780 = vsub.f32 %v41, %v779
    %781 = vmatpush1.msra.mxu0 %v780
    %782 = vmatprep.subr.mxu0 0.0
    %v783 = vand.u32 %v42, 4294901760
    %v784 = vsub.f32 %v42, %v783
    %785 = vmatpush1.msra.mxu0 %v784
    %786 = vmatprep.subr.mxu0 0.0
    %v787 = vand.u32 %v43, 4294901760
    %v788 = vsub.f32 %v43, %v787
    %789 = vmatpush1.msra.mxu0 %v788
    %790 = vmatprep.subr.mxu0 0.0
    %v791 = vand.u32 %v44, 4294901760
    %v792 = vsub.f32 %v44, %v791
    %793 = vmatpush1.msra.mxu0 %v792
    %794 = vmatprep.subr.mxu0 0.0
    %v795 = vand.u32 %v45, 4294901760
    %v796 = vsub.f32 %v45, %v795
    %797 = vmatpush1.msra.mxu0 %v796
    %798 = vmatprep.subr.mxu0 0.0
    %v799 = vand.u32 %v46, 4294901760
    %v800 = vsub.f32 %v46, %v799
    %801 = vmatpush1.msra.mxu0 %v800
    %802 = vmatprep.subr.mxu0 0.0
    %v803 = vand.u32 %v47, 4294901760
    %v804 = vsub.f32 %v47, %v803
    %805 = vmatpush1.msra.mxu0 %v804
    %806 = vmatprep.subr.mxu0 0.0
    %v807 = vand.u32 %v48, 4294901760
    %v808 = vsub.f32 %v48, %v807
    %809 = vmatpush1.msra.mxu0 %v808
    %810 = vmatprep.subr.mxu0 0.0
    %v811 = vand.u32 %v49, 4294901760
    %v812 = vsub.f32 %v49, %v811
    %813 = vmatpush1.msra.mxu0 %v812
    %814 = vmatprep.subr.mxu0 0.0
    %v815 = vand.u32 %v50, 4294901760
    %v816 = vsub.f32 %v50, %v815
    %817 = vmatpush1.msra.mxu0 %v816
    %818 = vmatprep.subr.mxu0 0.0
    %v819 = vand.u32 %v51, 4294901760
    %v820 = vsub.f32 %v51, %v819
    %821 = vmatpush1.msra.mxu0 %v820
    %822 = vmatprep.subr.mxu0 0.0
    %v823 = vand.u32 %v52, 4294901760
    %v824 = vsub.f32 %v52, %v823
    %825 = vmatpush1.msra.mxu0 %v824
    %826 = vmatprep.subr.mxu0 0.0
    %827 = vmatpush1.msra.mxu0 0.0
    %828 = vmatprep.subr.mxu0 0.0
    %829 = vmatpush1.msra.mxu0 0.0
    %830 = vmatprep.subr.mxu0 0.0
    %831 = vmatpush1.msra.mxu0 0.0
    %832 = vmatprep.subr.mxu0 0.0
    %833 = vmatpush1.msra.mxu0 0.0
    %834 = vmatprep.subr.mxu0 0.0
    %835 = vmatpush1.msra.mxu0 0.0
    %836 = vmatprep.subr.mxu0 0.0
    %837 = vmatpush1.msra.mxu0 0.0
    %838 = vmatprep.subr.mxu0 0.0
    %839 = vmatpush1.msra.mxu0 0.0
    %840 = vmatprep.subr.mxu0 0.0
    %841 = vmatpush1.msra.mxu0 0.0
    %842 = vmatprep.subr.mxu0 0.0
    %843 = vmatpush1.msra.mxu0 0.0
    %844 = vmatprep.subr.mxu0 0.0
    %845 = vmatpush1.msra.mxu0 0.0
    %846 = vmatprep.subr.mxu0 0.0
    %847 = vmatpush1.msra.mxu0 0.0
    %848 = vmatprep.subr.mxu0 0.0
    %849 = vmatpush1.msra.mxu0 0.0
    %850 = vmatprep.subr.mxu0 0.0
    %851 = vmatpush1.msra.mxu0 0.0
    %852 = vmatprep.subr.mxu0 0.0
    %853 = vmatpush1.msra.mxu0 0.0
    %854 = vmatprep.subr.mxu0 0.0
    %855 = vmatpush1.msra.mxu0 0.0
    %856 = vmatprep.subr.mxu0 0.0
    %857 = vmatpush1.msra.mxu0 0.0
    %858 = vmatprep.mubr.f32.mxu0 0.0
    %v859 = vand.u32 %v517, 4294901760
    %v860 = vsub.f32 %v517, %v859
    %861 = vmatmul.mubr.f32.gmra.mrb[0].mxu0 %v860
    %v862 = vpop.f32.mrb[0].mxu0
    %v863 = vadd.f32 %v759, %v862
    %v864 = vpop.f32.mrb[0].mxu0
    %865 = vdwg.mxu0
    %866 = vmatprep.subr.mxu0 0.0
    %v867 = vand.u32 %v37, 4294901760
    %868 = vmatpush1.msra.mxu0 %v867
    %869 = vmatprep.subr.mxu0 0.0
    %v870 = vand.u32 %v38, 4294901760
    %871 = vmatpush1.msra.mxu0 %v870
    %872 = vmatprep.subr.mxu0 0.0
    %v873 = vand.u32 %v39, 4294901760
    %874 = vmatpush1.msra.mxu0 %v873
    %875 = vmatprep.subr.mxu0 0.0
    %v876 = vand.u32 %v40, 4294901760
    %877 = vmatpush1.msra.mxu0 %v876
    %878 = vmatprep.subr.mxu0 0.0
    %v879 = vand.u32 %v41, 4294901760
    %880 = vmatpush1.msra.mxu0 %v879
    %881 = vmatprep.subr.mxu0 0.0
    %v882 = vand.u32 %v42, 4294901760
    %883 = vmatpush1.msra.mxu0 %v882
    %884 = vmatprep.subr.mxu0 0.0
    %v885 = vand.u32 %v43, 4294901760
    %886 = vmatpush1.msra.mxu0 %v885
    %887 = vmatprep.subr.mxu0 0.0
    %v888 = vand.u32 %v44, 4294901760
    %889 = vmatpush1.msra.mxu0 %v888
    %890 = vmatprep.subr.mxu0 0.0
    %v891 = vand.u32 %v45, 4294901760
    %892 = vmatpush1.msra.mxu0 %v891
    %893 = vmatprep.subr.mxu0 0.0
    %v894 = vand.u32 %v46, 4294901760
    %895 = vmatpush1.msra.mxu0 %v894
    %896 = vmatprep.subr.mxu0 0.0
    %v897 = vand.u32 %v47, 4294901760
    %898 = vmatpush1.msra.mxu0 %v897
    %899 = vmatprep.subr.mxu0 0.0
    %v900 = vand.u32 %v48, 4294901760
    %901 = vmatpush1.msra.mxu0 %v900
    %902 = vmatprep.subr.mxu0 0.0
    %v903 = vand.u32 %v49, 4294901760
    %904 = vmatpush1.msra.mxu0 %v903
    %905 = vmatprep.subr.mxu0 0.0
    %v906 = vand.u32 %v50, 4294901760
    %907 = vmatpush1.msra.mxu0 %v906
    %908 = vmatprep.subr.mxu0 0.0
    %v909 = vand.u32 %v51, 4294901760
    %910 = vmatpush1.msra.mxu0 %v909
    %911 = vmatprep.subr.mxu0 0.0
    %v912 = vand.u32 %v52, 4294901760
    %913 = vmatpush1.msra.mxu0 %v912
    %914 = vmatprep.subr.mxu0 0.0
    %915 = vmatpush1.msra.mxu0 0.0
    %916 = vmatprep.subr.mxu0 0.0
    %917 = vmatpush1.msra.mxu0 0.0
    %918 = vmatprep.subr.mxu0 0.0
    %919 = vmatpush1.msra.mxu0 0.0
    %920 = vmatprep.subr.mxu0 0.0
    %921 = vmatpush1.msra.mxu0 0.0
    %922 = vmatprep.subr.mxu0 0.0
    %923 = vmatpush1.msra.mxu0 0.0
    %924 = vmatprep.subr.mxu0 0.0
    %925 = vmatpush1.msra.mxu0 0.0
    %926 = vmatprep.subr.mxu0 0.0
    %927 = vmatpush1.msra.mxu0 0.0
    %928 = vmatprep.subr.mxu0 0.0
    %929 = vmatpush1.msra.mxu0 0.0
    %930 = vmatprep.subr.mxu0 0.0
    %931 = vmatpush1.msra.mxu0 0.0
    %932 = vmatprep.subr.mxu0 0.0
    %933 = vmatpush1.msra.mxu0 0.0
    %934 = vmatprep.subr.mxu0 0.0
    %935 = vmatpush1.msra.mxu0 0.0
    %936 = vmatprep.subr.mxu0 0.0
    %937 = vmatpush1.msra.mxu0 0.0
    %938 = vmatprep.subr.mxu0 0.0
    %939 = vmatpush1.msra.mxu0 0.0
    %940 = vmatprep.subr.mxu0 0.0
    %941 = vmatpush1.msra.mxu0 0.0
    %942 = vmatprep.subr.mxu0 0.0
    %943 = vmatpush1.msra.mxu0 0.0
    %944 = vmatprep.subr.mxu0 0.0
    %945 = vmatpush1.msra.mxu0 0.0
    %946 = vmatprep.mubr.f32.mxu0 0.0
    %v947 = vand.u32 %v517, 4294901760
    %v948 = vsub.f32 %v517, %v947
    %v949 = vand.u32 %v948, 4294901760
    %950 = vmatmul.mubr.f32.gmra.mrb[0].mxu0 %v949
    %v951 = vpop.f32.mrb[0].mxu0
    %v952 = vadd.f32 %v863, %v951
    %v953 = vpop.f32.mrb[0].mxu0
    %954 = vdwg.mxu0
    %955 = vmatprep.subr.mxu0 0.0
    %v956 = vand.u32 %v37, 4294901760
    %v957 = vsub.f32 %v37, %v956
    %v958 = vand.u32 %v957, 4294901760
    %959 = vmatpush1.msra.mxu0 %v958
    %960 = vmatprep.subr.mxu0 0.0
    %v961 = vand.u32 %v38, 4294901760
    %v962 = vsub.f32 %v38, %v961
    %v963 = vand.u32 %v962, 4294901760
    %964 = vmatpush1.msra.mxu0 %v963
    %965 = vmatprep.subr.mxu0 0.0
    %v966 = vand.u32 %v39, 4294901760
    %v967 = vsub.f32 %v39, %v966
    %v968 = vand.u32 %v967, 4294901760
    %969 = vmatpush1.msra.mxu0 %v968
    %970 = vmatprep.subr.mxu0 0.0
    %v971 = vand.u32 %v40, 4294901760
    %v972 = vsub.f32 %v40, %v971
    %v973 = vand.u32 %v972, 4294901760
    %974 = vmatpush1.msra.mxu0 %v973
    %975 = vmatprep.subr.mxu0 0.0
    %v976 = vand.u32 %v41, 4294901760
    %v977 = vsub.f32 %v41, %v976
    %v978 = vand.u32 %v977, 4294901760
    %979 = vmatpush1.msra.mxu0 %v978
    %980 = vmatprep.subr.mxu0 0.0
    %v981 = vand.u32 %v42, 4294901760
    %v982 = vsub.f32 %v42, %v981
    %v983 = vand.u32 %v982, 4294901760
    %984 = vmatpush1.msra.mxu0 %v983
    %985 = vmatprep.subr.mxu0 0.0
    %v986 = vand.u32 %v43, 4294901760
    %v987 = vsub.f32 %v43, %v986
    %v988 = vand.u32 %v987, 4294901760
    %989 = vmatpush1.msra.mxu0 %v988
    %990 = vmatprep.subr.mxu0 0.0
    %v991 = vand.u32 %v44, 4294901760
    %v992 = vsub.f32 %v44, %v991
    %v993 = vand.u32 %v992, 4294901760
    %994 = vmatpush1.msra.mxu0 %v993
    %995 = vmatprep.subr.mxu0 0.0
    %v996 = vand.u32 %v45, 4294901760
    %v997 = vsub.f32 %v45, %v996
    %v998 = vand.u32 %v997, 4294901760
    %999 = vmatpush1.msra.mxu0 %v998
    %1000 = vmatprep.subr.mxu0 0.0
    %v1001 = vand.u32 %v46, 4294901760
    %v1002 = vsub.f32 %v46, %v1001
    %v1003 = vand.u32 %v1002, 4294901760
    %1004 = vmatpush1.msra.mxu0 %v1003
    %1005 = vmatprep.subr.mxu0 0.0
    %v1006 = vand.u32 %v47, 4294901760
    %v1007 = vsub.f32 %v47, %v1006
    %v1008 = vand.u32 %v1007, 4294901760
    %1009 = vmatpush1.msra.mxu0 %v1008
    %1010 = vmatprep.subr.mxu0 0.0
    %v1011 = vand.u32 %v48, 4294901760
    %v1012 = vsub.f32 %v48, %v1011
    %v1013 = vand.u32 %v1012, 4294901760
    %1014 = vmatpush1.msra.mxu0 %v1013
    %1015 = vmatprep.subr.mxu0 0.0
    %v1016 = vand.u32 %v49, 4294901760
    %v1017 = vsub.f32 %v49, %v1016
    %v1018 = vand.u32 %v1017, 4294901760
    %1019 = vmatpush1.msra.mxu0 %v1018
    %1020 = vmatprep.subr.mxu0 0.0
    %v1021 = vand.u32 %v50, 4294901760
    %v1022 = vsub.f32 %v50, %v1021
    %v1023 = vand.u32 %v1022, 4294901760
    %1024 = vmatpush1.msra.mxu0 %v1023
    %1025 = vmatprep.subr.mxu0 0.0
    %v1026 = vand.u32 %v51, 4294901760
    %v1027 = vsub.f32 %v51, %v1026
    %v1028 = vand.u32 %v1027, 4294901760
    %1029 = vmatpush1.msra.mxu0 %v1028
    %1030 = vmatprep.subr.mxu0 0.0
    %v1031 = vand.u32 %v52, 4294901760
    %v1032 = vsub.f32 %v52, %v1031
    %v1033 = vand.u32 %v1032, 4294901760
    %1034 = vmatpush1.msra.mxu0 %v1033
    %1035 = vmatprep.subr.mxu0 0.0
    %1036 = vmatpush1.msra.mxu0 0.0
    %1037 = vmatprep.subr.mxu0 0.0
    %1038 = vmatpush1.msra.mxu0 0.0
    %1039 = vmatprep.subr.mxu0 0.0
    %1040 = vmatpush1.msra.mxu0 0.0
    %1041 = vmatprep.subr.mxu0 0.0
    %1042 = vmatpush1.msra.mxu0 0.0
    %1043 = vmatprep.subr.mxu0 0.0
    %1044 = vmatpush1.msra.mxu0 0.0
    %1045 = vmatprep.subr.mxu0 0.0
    %1046 = vmatpush1.msra.mxu0 0.0
    %1047 = vmatprep.subr.mxu0 0.0
    %1048 = vmatpush1.msra.mxu0 0.0
    %1049 = vmatprep.subr.mxu0 0.0
    %1050 = vmatpush1.msra.mxu0 0.0
    %1051 = vmatprep.subr.mxu0 0.0
    %1052 = vmatpush1.msra.mxu0 0.0
    %1053 = vmatprep.subr.mxu0 0.0
    %1054 = vmatpush1.msra.mxu0 0.0
    %1055 = vmatprep.subr.mxu0 0.0
    %1056 = vmatpush1.msra.mxu0 0.0
    %1057 = vmatprep.subr.mxu0 0.0
    %1058 = vmatpush1.msra.mxu0 0.0
    %1059 = vmatprep.subr.mxu0 0.0
    %1060 = vmatpush1.msra.mxu0 0.0
    %1061 = vmatprep.subr.mxu0 0.0
    %1062 = vmatpush1.msra.mxu0 0.0
    %1063 = vmatprep.subr.mxu0 0.0
    %1064 = vmatpush1.msra.mxu0 0.0
    %1065 = vmatprep.subr.mxu0 0.0
    %1066 = vmatpush1.msra.mxu0 0.0
    %1067 = vmatprep.mubr.f32.mxu0 0.0
    %v1068 = vand.u32 %v517, 4294901760
    %1069 = vmatmul.mubr.f32.gmra.mrb[0].mxu0 %v1068
    %v1070 = vpop.f32.mrb[0].mxu0
    %v1071 = vadd.f32 %v952, %v1070
    %v1072 = vpop.f32.mrb[0].mxu0
    %1073 = vdwg.mxu0
    %1074 = vmatprep.subr.mxu0 0.0
    %v1075 = vand.u32 %v37, 4294901760
    %1076 = vmatpush1.msra.mxu0 %v1075
    %1077 = vmatprep.subr.mxu0 0.0
    %v1078 = vand.u32 %v38, 4294901760
    %1079 = vmatpush1.msra.mxu0 %v1078
    %1080 = vmatprep.subr.mxu0 0.0
    %v1081 = vand.u32 %v39, 4294901760
    %1082 = vmatpush1.msra.mxu0 %v1081
    %1083 = vmatprep.subr.mxu0 0.0
    %v1084 = vand.u32 %v40, 4294901760
    %1085 = vmatpush1.msra.mxu0 %v1084
    %1086 = vmatprep.subr.mxu0 0.0
    %v1087 = vand.u32 %v41, 4294901760
    %1088 = vmatpush1.msra.mxu0 %v1087
    %1089 = vmatprep.subr.mxu0 0.0
    %v1090 = vand.u32 %v42, 4294901760
    %1091 = vmatpush1.msra.mxu0 %v1090
    %1092 = vmatprep.subr.mxu0 0.0
    %v1093 = vand.u32 %v43, 4294901760
    %1094 = vmatpush1.msra.mxu0 %v1093
    %1095 = vmatprep.subr.mxu0 0.0
    %v1096 = vand.u32 %v44, 4294901760
    %1097 = vmatpush1.msra.mxu0 %v1096
    %1098 = vmatprep.subr.mxu0 0.0
    %v1099 = vand.u32 %v45, 4294901760
    %1100 = vmatpush1.msra.mxu0 %v1099
    %1101 = vmatprep.subr.mxu0 0.0
    %v1102 = vand.u32 %v46, 4294901760
    %1103 = vmatpush1.msra.mxu0 %v1102
    %1104 = vmatprep.subr.mxu0 0.0
    %v1105 = vand.u32 %v47, 4294901760
    %1106 = vmatpush1.msra.mxu0 %v1105
    %1107 = vmatprep.subr.mxu0 0.0
    %v1108 = vand.u32 %v48, 4294901760
    %1109 = vmatpush1.msra.mxu0 %v1108
    %1110 = vmatprep.subr.mxu0 0.0
    %v1111 = vand.u32 %v49, 4294901760
    %1112 = vmatpush1.msra.mxu0 %v1111
    %1113 = vmatprep.subr.mxu0 0.0
    %v1114 = vand.u32 %v50, 4294901760
    %1115 = vmatpush1.msra.mxu0 %v1114
    %1116 = vmatprep.subr.mxu0 0.0
    %v1117 = vand.u32 %v51, 4294901760
    %1118 = vmatpush1.msra.mxu0 %v1117
    %1119 = vmatprep.subr.mxu0 0.0
    %v1120 = vand.u32 %v52, 4294901760
    %1121 = vmatpush1.msra.mxu0 %v1120
    %1122 = vmatprep.subr.mxu0 0.0
    %1123 = vmatpush1.msra.mxu0 0.0
    %1124 = vmatprep.subr.mxu0 0.0
    %1125 = vmatpush1.msra.mxu0 0.0
    %1126 = vmatprep.subr.mxu0 0.0
    %1127 = vmatpush1.msra.mxu0 0.0
    %1128 = vmatprep.subr.mxu0 0.0
    %1129 = vmatpush1.msra.mxu0 0.0
    %1130 = vmatprep.subr.mxu0 0.0
    %1131 = vmatpush1.msra.mxu0 0.0
    %1132 = vmatprep.subr.mxu0 0.0
    %1133 = vmatpush1.msra.mxu0 0.0
    %1134 = vmatprep.subr.mxu0 0.0
    %1135 = vmatpush1.msra.mxu0 0.0
    %1136 = vmatprep.subr.mxu0 0.0
    %1137 = vmatpush1.msra.mxu0 0.0
    %1138 = vmatprep.subr.mxu0 0.0
    %1139 = vmatpush1.msra.mxu0 0.0
    %1140 = vmatprep.subr.mxu0 0.0
    %1141 = vmatpush1.msra.mxu0 0.0
    %1142 = vmatprep.subr.mxu0 0.0
    %1143 = vmatpush1.msra.mxu0 0.0
    %1144 = vmatprep.subr.mxu0 0.0
    %1145 = vmatpush1.msra.mxu0 0.0
    %1146 = vmatprep.subr.mxu0 0.0
    %1147 = vmatpush1.msra.mxu0 0.0
    %1148 = vmatprep.subr.mxu0 0.0
    %1149 = vmatpush1.msra.mxu0 0.0
    %1150 = vmatprep.subr.mxu0 0.0
    %1151 = vmatpush1.msra.mxu0 0.0
    %1152 = vmatprep.subr.mxu0 0.0
    %1153 = vmatpush1.msra.mxu0 0.0
    %1154 = vmatprep.mubr.f32.mxu0 0.0
    %v1155 = vand.u32 %v517, 4294901760
    %1156 = vmatmul.mubr.f32.gmra.mrb[0].mxu0 %v1155
    %v1157 = vpop.f32.mrb[0].mxu0
    %v1158 = vadd.f32 %v1071, %v1157
    %v1159 = vpop.f32.mrb[0].mxu0
    %1160 = vdwg.mxu0
    %1161 = vmatprep.subr.mxu0 0.0
    %v1162 = vand.u32 %v55, 4294901760
    %1163 = vmatpush1.msra.mxu0 %v1162
    %1164 = vmatprep.subr.mxu0 0.0
    %v1165 = vand.u32 %v56, 4294901760
    %1166 = vmatpush1.msra.mxu0 %v1165
    %1167 = vmatprep.subr.mxu0 0.0
    %1168 = vmatpush1.msra.mxu0 0.0
    %1169 = vmatprep.subr.mxu0 0.0
    %1170 = vmatpush1.msra.mxu0 0.0
    %1171 = vmatprep.subr.mxu0 0.0
    %1172 = vmatpush1.msra.mxu0 0.0
    %1173 = vmatprep.subr.mxu0 0.0
    %1174 = vmatpush1.msra.mxu0 0.0
    %1175 = vmatprep.subr.mxu0 0.0
    %1176 = vmatpush1.msra.mxu0 0.0
    %1177 = vmatprep.subr.mxu0 0.0
    %1178 = vmatpush1.msra.mxu0 0.0
    %1179 = vmatprep.subr.mxu0 0.0
    %1180 = vmatpush1.msra.mxu0 0.0
    %1181 = vmatprep.subr.mxu0 0.0
    %1182 = vmatpush1.msra.mxu0 0.0
    %1183 = vmatprep.subr.mxu0 0.0
    %1184 = vmatpush1.msra.mxu0 0.0
    %1185 = vmatprep.subr.mxu0 0.0
    %1186 = vmatpush1.msra.mxu0 0.0
    %1187 = vmatprep.subr.mxu0 0.0
    %1188 = vmatpush1.msra.mxu0 0.0
    %1189 = vmatprep.subr.mxu0 0.0
    %1190 = vmatpush1.msra.mxu0 0.0
    %1191 = vmatprep.subr.mxu0 0.0
    %1192 = vmatpush1.msra.mxu0 0.0
    %1193 = vmatprep.subr.mxu0 0.0
    %1194 = vmatpush1.msra.mxu0 0.0
    %1195 = vmatprep.subr.mxu0 0.0
    %1196 = vmatpush1.msra.mxu0 0.0
    %1197 = vmatprep.subr.mxu0 0.0
    %1198 = vmatpush1.msra.mxu0 0.0
    %1199 = vmatprep.subr.mxu0 0.0
    %1200 = vmatpush1.msra.mxu0 0.0
    %1201 = vmatprep.subr.mxu0 0.0
    %1202 = vmatpush1.msra.mxu0 0.0
    %1203 = vmatprep.subr.mxu0 0.0
    %1204 = vmatpush1.msra.mxu0 0.0
    %1205 = vmatprep.subr.mxu0 0.0
    %1206 = vmatpush1.msra.mxu0 0.0
    %1207 = vmatprep.subr.mxu0 0.0
    %1208 = vmatpush1.msra.mxu0 0.0
    %1209 = vmatprep.subr.mxu0 0.0
    %1210 = vmatpush1.msra.mxu0 0.0
    %1211 = vmatprep.subr.mxu0 0.0
    %1212 = vmatpush1.msra.mxu0 0.0
    %1213 = vmatprep.subr.mxu0 0.0
    %1214 = vmatpush1.msra.mxu0 0.0
    %1215 = vmatprep.subr.mxu0 0.0
    %1216 = vmatpush1.msra.mxu0 0.0
    %1217 = vmatprep.subr.mxu0 0.0
    %1218 = vmatpush1.msra.mxu0 0.0
    %1219 = vmatprep.subr.mxu0 0.0
    %1220 = vmatpush1.msra.mxu0 0.0
    %1221 = vmatprep.subr.mxu0 0.0
    %1222 = vmatpush1.msra.mxu0 0.0
    %1223 = vmatprep.subr.mxu0 0.0
    %1224 = vmatpush1.msra.mxu0 0.0
    %1225 = vmatprep.subr.mxu0 0.0
    %1226 = vmatpush1.msra.mxu0 0.0
    %1227 = vmatprep.mubr.f32.mxu0 0.0
    %v1228 = vand.u32 %v59, 4294901760
    %v1229 = vsub.f32 %v59, %v1228
    %v1230 = vand.u32 %v1229, 4294901760
    %v1231 = vsub.f32 %v1229, %v1230
    %v1232 = vand.u32 %v1231, 4294901760
    %1233 = vmatmul.mubr.f32.gmra.mrb[0].mxu0 %v1232
    %v1234 = vpop.f32.mrb[0].mxu0
    %v1235 = vadd.f32 0.0, %v1234
    %v1236 = vpop.f32.mrb[0].mxu0
    %1237 = vdwg.mxu0
    %1238 = vmatprep.subr.mxu0 0.0
    %v1239 = vand.u32 %v55, 4294901760
    %v1240 = vsub.f32 %v55, %v1239
    %v1241 = vand.u32 %v1240, 4294901760
    %v1242 = vsub.f32 %v1240, %v1241
    %v1243 = vand.u32 %v1242, 4294901760
    %1244 = vmatpush1.msra.mxu0 %v1243
    %1245 = vmatprep.subr.mxu0 0.0
    %v1246 = vand.u32 %v56, 4294901760
    %v1247 = vsub.f32 %v56, %v1246
    %v1248 = vand.u32 %v1247, 4294901760
    %v1249 = vsub.f32 %v1247, %v1248
    %v1250 = vand.u32 %v1249, 4294901760
    %1251 = vmatpush1.msra.mxu0 %v1250
    %1252 = vmatprep.subr.mxu0 0.0
    %1253 = vmatpush1.msra.mxu0 0.0
    %1254 = vmatprep.subr.mxu0 0.0
    %1255 = vmatpush1.msra.mxu0 0.0
    %1256 = vmatprep.subr.mxu0 0.0
    %1257 = vmatpush1.msra.mxu0 0.0
    %1258 = vmatprep.subr.mxu0 0.0
    %1259 = vmatpush1.msra.mxu0 0.0
    %1260 = vmatprep.subr.mxu0 0.0
    %1261 = vmatpush1.msra.mxu0 0.0
    %1262 = vmatprep.subr.mxu0 0.0
    %1263 = vmatpush1.msra.mxu0 0.0
    %1264 = vmatprep.subr.mxu0 0.0
    %1265 = vmatpush1.msra.mxu0 0.0
    %1266 = vmatprep.subr.mxu0 0.0
    %1267 = vmatpush1.msra.mxu0 0.0
    %1268 = vmatprep.subr.mxu0 0.0
    %1269 = vmatpush1.msra.mxu0 0.0
    %1270 = vmatprep.subr.mxu0 0.0
    %1271 = vmatpush1.msra.mxu0 0.0
    %1272 = vmatprep.subr.mxu0 0.0
    %1273 = vmatpush1.msra.mxu0 0.0
    %1274 = vmatprep.subr.mxu0 0.0
    %1275 = vmatpush1.msra.mxu0 0.0
    %1276 = vmatprep.subr.mxu0 0.0
    %1277 = vmatpush1.msra.mxu0 0.0
    %1278 = vmatprep.subr.mxu0 0.0
    %1279 = vmatpush1.msra.mxu0 0.0
    %1280 = vmatprep.subr.mxu0 0.0
    %1281 = vmatpush1.msra.mxu0 0.0
    %1282 = vmatprep.subr.mxu0 0.0
    %1283 = vmatpush1.msra.mxu0 0.0
    %1284 = vmatprep.subr.mxu0 0.0
    %1285 = vmatpush1.msra.mxu0 0.0
    %1286 = vmatprep.subr.mxu0 0.0
    %1287 = vmatpush1.msra.mxu0 0.0
    %1288 = vmatprep.subr.mxu0 0.0
    %1289 = vmatpush1.msra.mxu0 0.0
    %1290 = vmatprep.subr.mxu0 0.0
    %1291 = vmatpush1.msra.mxu0 0.0
    %1292 = vmatprep.subr.mxu0 0.0
    %1293 = vmatpush1.msra.mxu0 0.0
    %1294 = vmatprep.subr.mxu0 0.0
    %1295 = vmatpush1.msra.mxu0 0.0
    %1296 = vmatprep.subr.mxu0 0.0
    %1297 = vmatpush1.msra.mxu0 0.0
    %1298 = vmatprep.subr.mxu0 0.0
    %1299 = vmatpush1.msra.mxu0 0.0
    %1300 = vmatprep.subr.mxu0 0.0
    %1301 = vmatpush1.msra.mxu0 0.0
    %1302 = vmatprep.subr.mxu0 0.0
    %1303 = vmatpush1.msra.mxu0 0.0
    %1304 = vmatprep.subr.mxu0 0.0
    %1305 = vmatpush1.msra.mxu0 0.0
    %1306 = vmatprep.subr.mxu0 0.0
    %1307 = vmatpush1.msra.mxu0 0.0
    %1308 = vmatprep.subr.mxu0 0.0
    %1309 = vmatpush1.msra.mxu0 0.0
    %1310 = vmatprep.subr.mxu0 0.0
    %1311 = vmatpush1.msra.mxu0 0.0
    %1312 = vmatprep.mubr.f32.mxu0 0.0
    %v1313 = vand.u32 %v59, 4294901760
    %1314 = vmatmul.mubr.f32.gmra.mrb[0].mxu0 %v1313
    %v1315 = vpop.f32.mrb[0].mxu0
    %v1316 = vadd.f32 %v1235, %v1315
    %v1317 = vpop.f32.mrb[0].mxu0
    %1318 = vdwg.mxu0
    %1319 = vmatprep.subr.mxu0 0.0
    %v1320 = vand.u32 %v55, 4294901760
    %v1321 = vsub.f32 %v55, %v1320
    %1322 = vmatpush1.msra.mxu0 %v1321
    %1323 = vmatprep.subr.mxu0 0.0
    %v1324 = vand.u32 %v56, 4294901760
    %v1325 = vsub.f32 %v56, %v1324
    %1326 = vmatpush1.msra.mxu0 %v1325
    %1327 = vmatprep.subr.mxu0 0.0
    %1328 = vmatpush1.msra.mxu0 0.0
    %1329 = vmatprep.subr.mxu0 0.0
    %1330 = vmatpush1.msra.mxu0 0.0
    %1331 = vmatprep.subr.mxu0 0.0
    %1332 = vmatpush1.msra.mxu0 0.0
    %1333 = vmatprep.subr.mxu0 0.0
    %1334 = vmatpush1.msra.mxu0 0.0
    %1335 = vmatprep.subr.mxu0 0.0
    %1336 = vmatpush1.msra.mxu0 0.0
    %1337 = vmatprep.subr.mxu0 0.0
    %1338 = vmatpush1.msra.mxu0 0.0
    %1339 = vmatprep.subr.mxu0 0.0
    %1340 = vmatpush1.msra.mxu0 0.0
    %1341 = vmatprep.subr.mxu0 0.0
    %1342 = vmatpush1.msra.mxu0 0.0
    %1343 = vmatprep.subr.mxu0 0.0
    %1344 = vmatpush1.msra.mxu0 0.0
    %1345 = vmatprep.subr.mxu0 0.0
    %1346 = vmatpush1.msra.mxu0 0.0
    %1347 = vmatprep.subr.mxu0 0.0
    %1348 = vmatpush1.msra.mxu0 0.0
    %1349 = vmatprep.subr.mxu0 0.0
    %1350 = vmatpush1.msra.mxu0 0.0
    %1351 = vmatprep.subr.mxu0 0.0
    %1352 = vmatpush1.msra.mxu0 0.0
    %1353 = vmatprep.subr.mxu0 0.0
    %1354 = vmatpush1.msra.mxu0 0.0
    %1355 = vmatprep.subr.mxu0 0.0
    %1356 = vmatpush1.msra.mxu0 0.0
    %1357 = vmatprep.subr.mxu0 0.0
    %1358 = vmatpush1.msra.mxu0 0.0
    %1359 = vmatprep.subr.mxu0 0.0
    %1360 = vmatpush1.msra.mxu0 0.0
    %1361 = vmatprep.subr.mxu0 0.0
    %1362 = vmatpush1.msra.mxu0 0.0
    %1363 = vmatprep.subr.mxu0 0.0
    %1364 = vmatpush1.msra.mxu0 0.0
    %1365 = vmatprep.subr.mxu0 0.0
    %1366 = vmatpush1.msra.mxu0 0.0
    %1367 = vmatprep.subr.mxu0 0.0
    %1368 = vmatpush1.msra.mxu0 0.0
    %1369 = vmatprep.subr.mxu0 0.0
    %1370 = vmatpush1.msra.mxu0 0.0
    %1371 = vmatprep.subr.mxu0 0.0
    %1372 = vmatpush1.msra.mxu0 0.0
    %1373 = vmatprep.subr.mxu0 0.0
    %1374 = vmatpush1.msra.mxu0 0.0
    %1375 = vmatprep.subr.mxu0 0.0
    %1376 = vmatpush1.msra.mxu0 0.0
    %1377 = vmatprep.subr.mxu0 0.0
    %1378 = vmatpush1.msra.mxu0 0.0
    %1379 = vmatprep.subr.mxu0 0.0
    %1380 = vmatpush1.msra.mxu0 0.0
    %1381 = vmatprep.subr.mxu0 0.0
    %1382 = vmatpush1.msra.mxu0 0.0
    %1383 = vmatprep.subr.mxu0 0.0
    %1384 = vmatpush1.msra.mxu0 0.0
    %1385 = vmatprep.subr.mxu0 0.0
    %1386 = vmatpush1.msra.mxu0 0.0
    %1387 = vmatprep.mubr.f32.mxu0 0.0
    %v1388 = vand.u32 %v59, 4294901760
    %v1389 = vsub.f32 %v59, %v1388
    %1390 = vmatmul.mubr.f32.gmra.mrb[0].mxu0 %v1389
    %v1391 = vpop.f32.mrb[0].mxu0
    %v1392 = vadd.f32 %v1316, %v1391
    %v1393 = vpop.f32.mrb[0].mxu0
    %1394 = vdwg.mxu0
    %1395 = vmatprep.subr.mxu0 0.0
    %v1396 = vand.u32 %v55, 4294901760
    %1397 = vmatpush1.msra.mxu0 %v1396
    %1398 = vmatprep.subr.mxu0 0.0
    %v1399 = vand.u32 %v56, 4294901760
    %1400 = vmatpush1.msra.mxu0 %v1399
    %1401 = vmatprep.subr.mxu0 0.0
    %1402 = vmatpush1.msra.mxu0 0.0
    %1403 = vmatprep.subr.mxu0 0.0
    %1404 = vmatpush1.msra.mxu0 0.0
    %1405 = vmatprep.subr.mxu0 0.0
    %1406 = vmatpush1.msra.mxu0 0.0
    %1407 = vmatprep.subr.mxu0 0.0
    %1408 = vmatpush1.msra.mxu0 0.0
    %1409 = vmatprep.subr.mxu0 0.0
    %1410 = vmatpush1.msra.mxu0 0.0
    %1411 = vmatprep.subr.mxu0 0.0
    %1412 = vmatpush1.msra.mxu0 0.0
    %1413 = vmatprep.subr.mxu0 0.0
    %1414 = vmatpush1.msra.mxu0 0.0
    %1415 = vmatprep.subr.mxu0 0.0
    %1416 = vmatpush1.msra.mxu0 0.0
    %1417 = vmatprep.subr.mxu0 0.0
    %1418 = vmatpush1.msra.mxu0 0.0
    %1419 = vmatprep.subr.mxu0 0.0
    %1420 = vmatpush1.msra.mxu0 0.0
    %1421 = vmatprep.subr.mxu0 0.0
    %1422 = vmatpush1.msra.mxu0 0.0
    %1423 = vmatprep.subr.mxu0 0.0
    %1424 = vmatpush1.msra.mxu0 0.0
    %1425 = vmatprep.subr.mxu0 0.0
    %1426 = vmatpush1.msra.mxu0 0.0
    %1427 = vmatprep.subr.mxu0 0.0
    %1428 = vmatpush1.msra.mxu0 0.0
    %1429 = vmatprep.subr.mxu0 0.0
    %1430 = vmatpush1.msra.mxu0 0.0
    %1431 = vmatprep.subr.mxu0 0.0
    %1432 = vmatpush1.msra.mxu0 0.0
    %1433 = vmatprep.subr.mxu0 0.0
    %1434 = vmatpush1.msra.mxu0 0.0
    %1435 = vmatprep.subr.mxu0 0.0
    %1436 = vmatpush1.msra.mxu0 0.0
    %1437 = vmatprep.subr.mxu0 0.0
    %1438 = vmatpush1.msra.mxu0 0.0
    %1439 = vmatprep.subr.mxu0 0.0
    %1440 = vmatpush1.msra.mxu0 0.0
    %1441 = vmatprep.subr.mxu0 0.0
    %1442 = vmatpush1.msra.mxu0 0.0
    %1443 = vmatprep.subr.mxu0 0.0
    %1444 = vmatpush1.msra.mxu0 0.0
    %1445 = vmatprep.subr.mxu0 0.0
    %1446 = vmatpush1.msra.mxu0 0.0
    %1447 = vmatprep.subr.mxu0 0.0
    %1448 = vmatpush1.msra.mxu0 0.0
    %1449 = vmatprep.subr.mxu0 0.0
    %1450 = vmatpush1.msra.mxu0 0.0
    %1451 = vmatprep.subr.mxu0 0.0
    %1452 = vmatpush1.msra.mxu0 0.0
    %1453 = vmatprep.subr.mxu0 0.0
    %1454 = vmatpush1.msra.mxu0 0.0
    %1455 = vmatprep.subr.mxu0 0.0
    %1456 = vmatpush1.msra.mxu0 0.0
    %1457 = vmatprep.subr.mxu0 0.0
    %1458 = vmatpush1.msra.mxu0 0.0
    %1459 = vmatprep.subr.mxu0 0.0
    %1460 = vmatpush1.msra.mxu0 0.0
    %1461 = vmatprep.mubr.f32.mxu0 0.0
    %v1462 = vand.u32 %v59, 4294901760
    %v1463 = vsub.f32 %v59, %v1462
    %v1464 = vand.u32 %v1463, 4294901760
    %1465 = vmatmul.mubr.f32.gmra.mrb[0].mxu0 %v1464
    %v1466 = vpop.f32.mrb[0].mxu0
    %v1467 = vadd.f32 %v1392, %v1466
    %v1468 = vpop.f32.mrb[0].mxu0
    %1469 = vdwg.mxu0
    %1470 = vmatprep.subr.mxu0 0.0
    %v1471 = vand.u32 %v55, 4294901760
    %v1472 = vsub.f32 %v55, %v1471
    %v1473 = vand.u32 %v1472, 4294901760
    %1474 = vmatpush1.msra.mxu0 %v1473
    %1475 = vmatprep.subr.mxu0 0.0
    %v1476 = vand.u32 %v56, 4294901760
    %v1477 = vsub.f32 %v56, %v1476
    %v1478 = vand.u32 %v1477, 4294901760
    %1479 = vmatpush1.msra.mxu0 %v1478
    %1480 = vmatprep.subr.mxu0 0.0
    %1481 = vmatpush1.msra.mxu0 0.0
    %1482 = vmatprep.subr.mxu0 0.0
    %1483 = vmatpush1.msra.mxu0 0.0
    %1484 = vmatprep.subr.mxu0 0.0
    %1485 = vmatpush1.msra.mxu0 0.0
    %1486 = vmatprep.subr.mxu0 0.0
    %1487 = vmatpush1.msra.mxu0 0.0
    %1488 = vmatprep.subr.mxu0 0.0
    %1489 = vmatpush1.msra.mxu0 0.0
    %1490 = vmatprep.subr.mxu0 0.0
    %1491 = vmatpush1.msra.mxu0 0.0
    %1492 = vmatprep.subr.mxu0 0.0
    %1493 = vmatpush1.msra.mxu0 0.0
    %1494 = vmatprep.subr.mxu0 0.0
    %1495 = vmatpush1.msra.mxu0 0.0
    %1496 = vmatprep.subr.mxu0 0.0
    %1497 = vmatpush1.msra.mxu0 0.0
    %1498 = vmatprep.subr.mxu0 0.0
    %1499 = vmatpush1.msra.mxu0 0.0
    %1500 = vmatprep.subr.mxu0 0.0
    %1501 = vmatpush1.msra.mxu0 0.0
    %1502 = vmatprep.subr.mxu0 0.0
    %1503 = vmatpush1.msra.mxu0 0.0
    %1504 = vmatprep.subr.mxu0 0.0
    %1505 = vmatpush1.msra.mxu0 0.0
    %1506 = vmatprep.subr.mxu0 0.0
    %1507 = vmatpush1.msra.mxu0 0.0
    %1508 = vmatprep.subr.mxu0 0.0
    %1509 = vmatpush1.msra.mxu0 0.0
    %1510 = vmatprep.subr.mxu0 0.0
    %1511 = vmatpush1.msra.mxu0 0.0
    %1512 = vmatprep.subr.mxu0 0.0
    %1513 = vmatpush1.msra.mxu0 0.0
    %1514 = vmatprep.subr.mxu0 0.0
    %1515 = vmatpush1.msra.mxu0 0.0
    %1516 = vmatprep.subr.mxu0 0.0
    %1517 = vmatpush1.msra.mxu0 0.0
    %1518 = vmatprep.subr.mxu0 0.0
    %1519 = vmatpush1.msra.mxu0 0.0
    %1520 = vmatprep.subr.mxu0 0.0
    %1521 = vmatpush1.msra.mxu0 0.0
    %1522 = vmatprep.subr.mxu0 0.0
    %1523 = vmatpush1.msra.mxu0 0.0
    %1524 = vmatprep.subr.mxu0 0.0
    %1525 = vmatpush1.msra.mxu0 0.0
    %1526 = vmatprep.subr.mxu0 0.0
    %1527 = vmatpush1.msra.mxu0 0.0
    %1528 = vmatprep.subr.mxu0 0.0
    %1529 = vmatpush1.msra.mxu0 0.0
    %1530 = vmatprep.subr.mxu0 0.0
    %1531 = vmatpush1.msra.mxu0 0.0
    %1532 = vmatprep.subr.mxu0 0.0
    %1533 = vmatpush1.msra.mxu0 0.0
    %1534 = vmatprep.subr.mxu0 0.0
    %1535 = vmatpush1.msra.mxu0 0.0
    %1536 = vmatprep.subr.mxu0 0.0
    %1537 = vmatpush1.msra.mxu0 0.0
    %1538 = vmatprep.subr.mxu0 0.0
    %1539 = vmatpush1.msra.mxu0 0.0
    %1540 = vmatprep.mubr.f32.mxu0 0.0
    %v1541 = vand.u32 %v59, 4294901760
    %1542 = vmatmul.mubr.f32.gmra.mrb[0].mxu0 %v1541
    %v1543 = vpop.f32.mrb[0].mxu0
    %v1544 = vadd.f32 %v1467, %v1543
    %v1545 = vpop.f32.mrb[0].mxu0
    %1546 = vdwg.mxu0
    %1547 = vmatprep.subr.mxu0 0.0
    %v1548 = vand.u32 %v55, 4294901760
    %1549 = vmatpush1.msra.mxu0 %v1548
    %1550 = vmatprep.subr.mxu0 0.0
    %v1551 = vand.u32 %v56, 4294901760
    %1552 = vmatpush1.msra.mxu0 %v1551
    %1553 = vmatprep.subr.mxu0 0.0
    %1554 = vmatpush1.msra.mxu0 0.0
    %1555 = vmatprep.subr.mxu0 0.0
    %1556 = vmatpush1.msra.mxu0 0.0
    %1557 = vmatprep.subr.mxu0 0.0
    %1558 = vmatpush1.msra.mxu0 0.0
    %1559 = vmatprep.subr.mxu0 0.0
    %1560 = vmatpush1.msra.mxu0 0.0
    %1561 = vmatprep.subr.mxu0 0.0
    %1562 = vmatpush1.msra.mxu0 0.0
    %1563 = vmatprep.subr.mxu0 0.0
    %1564 = vmatpush1.msra.mxu0 0.0
    %1565 = vmatprep.subr.mxu0 0.0
    %1566 = vmatpush1.msra.mxu0 0.0
    %1567 = vmatprep.subr.mxu0 0.0
    %1568 = vmatpush1.msra.mxu0 0.0
    %1569 = vmatprep.subr.mxu0 0.0
    %1570 = vmatpush1.msra.mxu0 0.0
    %1571 = vmatprep.subr.mxu0 0.0
    %1572 = vmatpush1.msra.mxu0 0.0
    %1573 = vmatprep.subr.mxu0 0.0
    %1574 = vmatpush1.msra.mxu0 0.0
    %1575 = vmatprep.subr.mxu0 0.0
    %1576 = vmatpush1.msra.mxu0 0.0
    %1577 = vmatprep.subr.mxu0 0.0
    %1578 = vmatpush1.msra.mxu0 0.0
    %1579 = vmatprep.subr.mxu0 0.0
    %1580 = vmatpush1.msra.mxu0 0.0
    %1581 = vmatprep.subr.mxu0 0.0
    %1582 = vmatpush1.msra.mxu0 0.0
    %1583 = vmatprep.subr.mxu0 0.0
    %1584 = vmatpush1.msra.mxu0 0.0
    %1585 = vmatprep.subr.mxu0 0.0
    %1586 = vmatpush1.msra.mxu0 0.0
    %1587 = vmatprep.subr.mxu0 0.0
    %1588 = vmatpush1.msra.mxu0 0.0
    %1589 = vmatprep.subr.mxu0 0.0
    %1590 = vmatpush1.msra.mxu0 0.0
    %1591 = vmatprep.subr.mxu0 0.0
    %1592 = vmatpush1.msra.mxu0 0.0
    %1593 = vmatprep.subr.mxu0 0.0
    %1594 = vmatpush1.msra.mxu0 0.0
    %1595 = vmatprep.subr.mxu0 0.0
    %1596 = vmatpush1.msra.mxu0 0.0
    %1597 = vmatprep.subr.mxu0 0.0
    %1598 = vmatpush1.msra.mxu0 0.0
    %1599 = vmatprep.subr.mxu0 0.0
    %1600 = vmatpush1.msra.mxu0 0.0
    %1601 = vmatprep.subr.mxu0 0.0
    %1602 = vmatpush1.msra.mxu0 0.0
    %1603 = vmatprep.subr.mxu0 0.0
    %1604 = vmatpush1.msra.mxu0 0.0
    %1605 = vmatprep.subr.mxu0 0.0
    %1606 = vmatpush1.msra.mxu0 0.0
    %1607 = vmatprep.subr.mxu0 0.0
    %1608 = vmatpush1.msra.mxu0 0.0
    %1609 = vmatprep.subr.mxu0 0.0
    %1610 = vmatpush1.msra.mxu0 0.0
    %1611 = vmatprep.subr.mxu0 0.0
    %1612 = vmatpush1.msra.mxu0 0.0
    %1613 = vmatprep.mubr.f32.mxu0 0.0
    %v1614 = vand.u32 %v59, 4294901760
    %1615 = vmatmul.mubr.f32.gmra.mrb[0].mxu0 %v1614
    %v1616 = vpop.f32.mrb[0].mxu0
    %v1617 = vadd.f32 %v1544, %v1616
    %v1618 = vpop.f32.mrb[0].mxu0
    %1619 = vdwg.mxu0
    %1620 = vmatprep.subr.mxu0 0.0
    %v1621 = vand.u32 %v37, 4294901760
    %1622 = vmatpush1.msra.mxu0 %v1621
    %1623 = vmatprep.subr.mxu0 0.0
    %v1624 = vand.u32 %v38, 4294901760
    %1625 = vmatpush1.msra.mxu0 %v1624
    %1626 = vmatprep.subr.mxu0 0.0
    %v1627 = vand.u32 %v39, 4294901760
    %1628 = vmatpush1.msra.mxu0 %v1627
    %1629 = vmatprep.subr.mxu0 0.0
    %v1630 = vand.u32 %v40, 4294901760
    %1631 = vmatpush1.msra.mxu0 %v1630
    %1632 = vmatprep.subr.mxu0 0.0
    %v1633 = vand.u32 %v41, 4294901760
    %1634 = vmatpush1.msra.mxu0 %v1633
    %1635 = vmatprep.subr.mxu0 0.0
    %v1636 = vand.u32 %v42, 4294901760
    %1637 = vmatpush1.msra.mxu0 %v1636
    %1638 = vmatprep.subr.mxu0 0.0
    %v1639 = vand.u32 %v43, 4294901760
    %1640 = vmatpush1.msra.mxu0 %v1639
    %1641 = vmatprep.subr.mxu0 0.0
    %v1642 = vand.u32 %v44, 4294901760
    %1643 = vmatpush1.msra.mxu0 %v1642
    %1644 = vmatprep.subr.mxu0 0.0
    %v1645 = vand.u32 %v45, 4294901760
    %1646 = vmatpush1.msra.mxu0 %v1645
    %1647 = vmatprep.subr.mxu0 0.0
    %v1648 = vand.u32 %v46, 4294901760
    %1649 = vmatpush1.msra.mxu0 %v1648
    %1650 = vmatprep.subr.mxu0 0.0
    %v1651 = vand.u32 %v47, 4294901760
    %1652 = vmatpush1.msra.mxu0 %v1651
    %1653 = vmatprep.subr.mxu0 0.0
    %v1654 = vand.u32 %v48, 4294901760
    %1655 = vmatpush1.msra.mxu0 %v1654
    %1656 = vmatprep.subr.mxu0 0.0
    %v1657 = vand.u32 %v49, 4294901760
    %1658 = vmatpush1.msra.mxu0 %v1657
    %1659 = vmatprep.subr.mxu0 0.0
    %v1660 = vand.u32 %v50, 4294901760
    %1661 = vmatpush1.msra.mxu0 %v1660
    %1662 = vmatprep.subr.mxu0 0.0
    %v1663 = vand.u32 %v51, 4294901760
    %1664 = vmatpush1.msra.mxu0 %v1663
    %1665 = vmatprep.subr.mxu0 0.0
    %v1666 = vand.u32 %v52, 4294901760
    %1667 = vmatpush1.msra.mxu0 %v1666
    %1668 = vmatprep.subr.mxu0 0.0
    %1669 = vmatpush1.msra.mxu0 0.0
    %1670 = vmatprep.subr.mxu0 0.0
    %1671 = vmatpush1.msra.mxu0 0.0
    %1672 = vmatprep.subr.mxu0 0.0
    %1673 = vmatpush1.msra.mxu0 0.0
    %1674 = vmatprep.subr.mxu0 0.0
    %1675 = vmatpush1.msra.mxu0 0.0
    %1676 = vmatprep.subr.mxu0 0.0
    %1677 = vmatpush1.msra.mxu0 0.0
    %1678 = vmatprep.subr.mxu0 0.0
    %1679 = vmatpush1.msra.mxu0 0.0
    %1680 = vmatprep.subr.mxu0 0.0
    %1681 = vmatpush1.msra.mxu0 0.0
    %1682 = vmatprep.subr.mxu0 0.0
    %1683 = vmatpush1.msra.mxu0 0.0
    %1684 = vmatprep.subr.mxu0 0.0
    %1685 = vmatpush1.msra.mxu0 0.0
    %1686 = vmatprep.subr.mxu0 0.0
    %1687 = vmatpush1.msra.mxu0 0.0
    %1688 = vmatprep.subr.mxu0 0.0
    %1689 = vmatpush1.msra.mxu0 0.0
    %1690 = vmatprep.subr.mxu0 0.0
    %1691 = vmatpush1.msra.mxu0 0.0
    %1692 = vmatprep.subr.mxu0 0.0
    %1693 = vmatpush1.msra.mxu0 0.0
    %1694 = vmatprep.subr.mxu0 0.0
    %1695 = vmatpush1.msra.mxu0 0.0
    %1696 = vmatprep.subr.mxu0 0.0
    %1697 = vmatpush1.msra.mxu0 0.0
    %1698 = vmatprep.subr.mxu0 0.0
    %1699 = vmatpush1.msra.mxu0 0.0
    %1700 = vmatprep.mubr.f32.mxu0 0.0
    %v1701 = vand.u32 %v1617, 4294901760
    %v1702 = vsub.f32 %v1617, %v1701
    %v1703 = vand.u32 %v1702, 4294901760
    %v1704 = vsub.f32 %v1702, %v1703
    %v1705 = vand.u32 %v1704, 4294901760
    %1706 = vmatmul.mubr.f32.gmra.mrb[0].mxu0 %v1705
    %v1707 = vpop.f32.mrb[0].mxu0
    %v1708 = vadd.f32 0.0, %v1707
    %v1709 = vpop.f32.mrb[0].mxu0
    %1710 = vdwg.mxu0
    %1711 = vmatprep.subr.mxu0 0.0
    %v1712 = vand.u32 %v37, 4294901760
    %v1713 = vsub.f32 %v37, %v1712
    %v1714 = vand.u32 %v1713, 4294901760
    %v1715 = vsub.f32 %v1713, %v1714
    %v1716 = vand.u32 %v1715, 4294901760
    %1717 = vmatpush1.msra.mxu0 %v1716
    %1718 = vmatprep.subr.mxu0 0.0
    %v1719 = vand.u32 %v38, 4294901760
    %v1720 = vsub.f32 %v38, %v1719
    %v1721 = vand.u32 %v1720, 4294901760
    %v1722 = vsub.f32 %v1720, %v1721
    %v1723 = vand.u32 %v1722, 4294901760
    %1724 = vmatpush1.msra.mxu0 %v1723
    %1725 = vmatprep.subr.mxu0 0.0
    %v1726 = vand.u32 %v39, 4294901760
    %v1727 = vsub.f32 %v39, %v1726
    %v1728 = vand.u32 %v1727, 4294901760
    %v1729 = vsub.f32 %v1727, %v1728
    %v1730 = vand.u32 %v1729, 4294901760
    %1731 = vmatpush1.msra.mxu0 %v1730
    %1732 = vmatprep.subr.mxu0 0.0
    %v1733 = vand.u32 %v40, 4294901760
    %v1734 = vsub.f32 %v40, %v1733
    %v1735 = vand.u32 %v1734, 4294901760
    %v1736 = vsub.f32 %v1734, %v1735
    %v1737 = vand.u32 %v1736, 4294901760
    %1738 = vmatpush1.msra.mxu0 %v1737
    %1739 = vmatprep.subr.mxu0 0.0
    %v1740 = vand.u32 %v41, 4294901760
    %v1741 = vsub.f32 %v41, %v1740
    %v1742 = vand.u32 %v1741, 4294901760
    %v1743 = vsub.f32 %v1741, %v1742
    %v1744 = vand.u32 %v1743, 4294901760
    %1745 = vmatpush1.msra.mxu0 %v1744
    %1746 = vmatprep.subr.mxu0 0.0
    %v1747 = vand.u32 %v42, 4294901760
    %v1748 = vsub.f32 %v42, %v1747
    %v1749 = vand.u32 %v1748, 4294901760
    %v1750 = vsub.f32 %v1748, %v1749
    %v1751 = vand.u32 %v1750, 4294901760
    %1752 = vmatpush1.msra.mxu0 %v1751
    %1753 = vmatprep.subr.mxu0 0.0
    %v1754 = vand.u32 %v43, 4294901760
    %v1755 = vsub.f32 %v43, %v1754
    %v1756 = vand.u32 %v1755, 4294901760
    %v1757 = vsub.f32 %v1755, %v1756
    %v1758 = vand.u32 %v1757, 4294901760
    %1759 = vmatpush1.msra.mxu0 %v1758
    %1760 = vmatprep.subr.mxu0 0.0
    %v1761 = vand.u32 %v44, 4294901760
    %v1762 = vsub.f32 %v44, %v1761
    %v1763 = vand.u32 %v1762, 4294901760
    %v1764 = vsub.f32 %v1762, %v1763
    %v1765 = vand.u32 %v1764, 4294901760
    %1766 = vmatpush1.msra.mxu0 %v1765
    %1767 = vmatprep.subr.mxu0 0.0
    %v1768 = vand.u32 %v45, 4294901760
    %v1769 = vsub.f32 %v45, %v1768
    %v1770 = vand.u32 %v1769, 4294901760
    %v1771 = vsub.f32 %v1769, %v1770
    %v1772 = vand.u32 %v1771, 4294901760
    %1773 = vmatpush1.msra.mxu0 %v1772
    %1774 = vmatprep.subr.mxu0 0.0
    %v1775 = vand.u32 %v46, 4294901760
    %v1776 = vsub.f32 %v46, %v1775
    %v1777 = vand.u32 %v1776, 4294901760
    %v1778 = vsub.f32 %v1776, %v1777
    %v1779 = vand.u32 %v1778, 4294901760
    %1780 = vmatpush1.msra.mxu0 %v1779
    %1781 = vmatprep.subr.mxu0 0.0
    %v1782 = vand.u32 %v47, 4294901760
    %v1783 = vsub.f32 %v47, %v1782
    %v1784 = vand.u32 %v1783, 4294901760
    %v1785 = vsub.f32 %v1783, %v1784
    %v1786 = vand.u32 %v1785, 4294901760
    %1787 = vmatpush1.msra.mxu0 %v1786
    %1788 = vmatprep.subr.mxu0 0.0
    %v1789 = vand.u32 %v48, 4294901760
    %v1790 = vsub.f32 %v48, %v1789
    %v1791 = vand.u32 %v1790, 4294901760
    %v1792 = vsub.f32 %v1790, %v1791
    %v1793 = vand.u32 %v1792, 4294901760
    %1794 = vmatpush1.msra.mxu0 %v1793
    %1795 = vmatprep.subr.mxu0 0.0
    %v1796 = vand.u32 %v49, 4294901760
    %v1797 = vsub.f32 %v49, %v1796
    %v1798 = vand.u32 %v1797, 4294901760
    %v1799 = vsub.f32 %v1797, %v1798
    %v1800 = vand.u32 %v1799, 4294901760
    %1801 = vmatpush1.msra.mxu0 %v1800
    %1802 = vmatprep.subr.mxu0 0.0
    %v1803 = vand.u32 %v50, 4294901760
    %v1804 = vsub.f32 %v50, %v1803
    %v1805 = vand.u32 %v1804, 4294901760
    %v1806 = vsub.f32 %v1804, %v1805
    %v1807 = vand.u32 %v1806, 4294901760
    %1808 = vmatpush1.msra.mxu0 %v1807
    %1809 = vmatprep.subr.mxu0 0.0
    %v1810 = vand.u32 %v51, 4294901760
    %v1811 = vsub.f32 %v51, %v1810
    %v1812 = vand.u32 %v1811, 4294901760
    %v1813 = vsub.f32 %v1811, %v1812
    %v1814 = vand.u32 %v1813, 4294901760
    %1815 = vmatpush1.msra.mxu0 %v1814
    %1816 = vmatprep.subr.mxu0 0.0
    %v1817 = vand.u32 %v52, 4294901760
    %v1818 = vsub.f32 %v52, %v1817
    %v1819 = vand.u32 %v1818, 4294901760
    %v1820 = vsub.f32 %v1818, %v1819
    %v1821 = vand.u32 %v1820, 4294901760
    %1822 = vmatpush1.msra.mxu0 %v1821
    %1823 = vmatprep.subr.mxu0 0.0
    %1824 = vmatpush1.msra.mxu0 0.0
    %1825 = vmatprep.subr.mxu0 0.0
    %1826 = vmatpush1.msra.mxu0 0.0
    %1827 = vmatprep.subr.mxu0 0.0
    %1828 = vmatpush1.msra.mxu0 0.0
    %1829 = vmatprep.subr.mxu0 0.0
    %1830 = vmatpush1.msra.mxu0 0.0
    %1831 = vmatprep.subr.mxu0 0.0
    %1832 = vmatpush1.msra.mxu0 0.0
    %1833 = vmatprep.subr.mxu0 0.0
    %1834 = vmatpush1.msra.mxu0 0.0
    %1835 = vmatprep.subr.mxu0 0.0
    %1836 = vmatpush1.msra.mxu0 0.0
    %1837 = vmatprep.subr.mxu0 0.0
    %1838 = vmatpush1.msra.mxu0 0.0
    %1839 = vmatprep.subr.mxu0 0.0
    %1840 = vmatpush1.msra.mxu0 0.0
    %1841 = vmatprep.subr.mxu0 0.0
    %1842 = vmatpush1.msra.mxu0 0.0
    %1843 = vmatprep.subr.mxu0 0.0
    %1844 = vmatpush1.msra.mxu0 0.0
    %1845 = vmatprep.subr.mxu0 0.0
    %1846 = vmatpush1.msra.mxu0 0.0
    %1847 = vmatprep.subr.mxu0 0.0
    %1848 = vmatpush1.msra.mxu0 0.0
    %1849 = vmatprep.subr.mxu0 0.0
    %1850 = vmatpush1.msra.mxu0 0.0
    %1851 = vmatprep.subr.mxu0 0.0
    %1852 = vmatpush1.msra.mxu0 0.0
    %1853 = vmatprep.subr.mxu0 0.0
    %1854 = vmatpush1.msra.mxu0 0.0
    %1855 = vmatprep.mubr.f32.mxu0 0.0
    %v1856 = vand.u32 %v1617, 4294901760
    %1857 = vmatmul.mubr.f32.gmra.mrb[0].mxu0 %v1856
    %v1858 = vpop.f32.mrb[0].mxu0
    %v1859 = vadd.f32 %v1708, %v1858
    %v1860 = vpop.f32.mrb[0].mxu0
    %1861 = vdwg.mxu0
    %1862 = vmatprep.subr.mxu0 0.0
    %v1863 = vand.u32 %v37, 4294901760
    %v1864 = vsub.f32 %v37, %v1863
    %1865 = vmatpush1.msra.mxu0 %v1864
    %1866 = vmatprep.subr.mxu0 0.0
    %v1867 = vand.u32 %v38, 4294901760
    %v1868 = vsub.f32 %v38, %v1867
    %1869 = vmatpush1.msra.mxu0 %v1868
    %1870 = vmatprep.subr.mxu0 0.0
    %v1871 = vand.u32 %v39, 4294901760
    %v1872 = vsub.f32 %v39, %v1871
    %1873 = vmatpush1.msra.mxu0 %v1872
    %1874 = vmatprep.subr.mxu0 0.0
    %v1875 = vand.u32 %v40, 4294901760
    %v1876 = vsub.f32 %v40, %v1875
    %1877 = vmatpush1.msra.mxu0 %v1876
    %1878 = vmatprep.subr.mxu0 0.0
    %v1879 = vand.u32 %v41, 4294901760
    %v1880 = vsub.f32 %v41, %v1879
    %1881 = vmatpush1.msra.mxu0 %v1880
    %1882 = vmatprep.subr.mxu0 0.0
    %v1883 = vand.u32 %v42, 4294901760
    %v1884 = vsub.f32 %v42, %v1883
    %1885 = vmatpush1.msra.mxu0 %v1884
    %1886 = vmatprep.subr.mxu0 0.0
    %v1887 = vand.u32 %v43, 4294901760
    %v1888 = vsub.f32 %v43, %v1887
    %1889 = vmatpush1.msra.mxu0 %v1888
    %1890 = vmatprep.subr.mxu0 0.0
    %v1891 = vand.u32 %v44, 4294901760
    %v1892 = vsub.f32 %v44, %v1891
    %1893 = vmatpush1.msra.mxu0 %v1892
    %1894 = vmatprep.subr.mxu0 0.0
    %v1895 = vand.u32 %v45, 4294901760
    %v1896 = vsub.f32 %v45, %v1895
    %1897 = vmatpush1.msra.mxu0 %v1896
    %1898 = vmatprep.subr.mxu0 0.0
    %v1899 = vand.u32 %v46, 4294901760
    %v1900 = vsub.f32 %v46, %v1899
    %1901 = vmatpush1.msra.mxu0 %v1900
    %1902 = vmatprep.subr.mxu0 0.0
    %v1903 = vand.u32 %v47, 4294901760
    %v1904 = vsub.f32 %v47, %v1903
    %1905 = vmatpush1.msra.mxu0 %v1904
    %1906 = vmatprep.subr.mxu0 0.0
    %v1907 = vand.u32 %v48, 4294901760
    %v1908 = vsub.f32 %v48, %v1907
    %1909 = vmatpush1.msra.mxu0 %v1908
    %1910 = vmatprep.subr.mxu0 0.0
    %v1911 = vand.u32 %v49, 4294901760
    %v1912 = vsub.f32 %v49, %v1911
    %1913 = vmatpush1.msra.mxu0 %v1912
    %1914 = vmatprep.subr.mxu0 0.0
    %v1915 = vand.u32 %v50, 4294901760
    %v1916 = vsub.f32 %v50, %v1915
    %1917 = vmatpush1.msra.mxu0 %v1916
    %1918 = vmatprep.subr.mxu0 0.0
    %v1919 = vand.u32 %v51, 4294901760
    %v1920 = vsub.f32 %v51, %v1919
    %1921 = vmatpush1.msra.mxu0 %v1920
    %1922 = vmatprep.subr.mxu0 0.0
    %v1923 = vand.u32 %v52, 4294901760
    %v1924 = vsub.f32 %v52, %v1923
    %1925 = vmatpush1.msra.mxu0 %v1924
    %1926 = vmatprep.subr.mxu0 0.0
    %1927 = vmatpush1.msra.mxu0 0.0
    %1928 = vmatprep.subr.mxu0 0.0
    %1929 = vmatpush1.msra.mxu0 0.0
    %1930 = vmatprep.subr.mxu0 0.0
    %1931 = vmatpush1.msra.mxu0 0.0
    %1932 = vmatprep.subr.mxu0 0.0
    %1933 = vmatpush1.msra.mxu0 0.0
    %1934 = vmatprep.subr.mxu0 0.0
    %1935 = vmatpush1.msra.mxu0 0.0
    %1936 = vmatprep.subr.mxu0 0.0
    %1937 = vmatpush1.msra.mxu0 0.0
    %1938 = vmatprep.subr.mxu0 0.0
    %1939 = vmatpush1.msra.mxu0 0.0
    %1940 = vmatprep.subr.mxu0 0.0
    %1941 = vmatpush1.msra.mxu0 0.0
    %1942 = vmatprep.subr.mxu0 0.0
    %1943 = vmatpush1.msra.mxu0 0.0
    %1944 = vmatprep.subr.mxu0 0.0
    %1945 = vmatpush1.msra.mxu0 0.0
    %1946 = vmatprep.subr.mxu0 0.0
    %1947 = vmatpush1.msra.mxu0 0.0
    %1948 = vmatprep.subr.mxu0 0.0
    %1949 = vmatpush1.msra.mxu0 0.0
    %1950 = vmatprep.subr.mxu0 0.0
    %1951 = vmatpush1.msra.mxu0 0.0
    %1952 = vmatprep.subr.mxu0 0.0
    %1953 = vmatpush1.msra.mxu0 0.0
    %1954 = vmatprep.subr.mxu0 0.0
    %1955 = vmatpush1.msra.mxu0 0.0
    %1956 = vmatprep.subr.mxu0 0.0
    %1957 = vmatpush1.msra.mxu0 0.0
    %1958 = vmatprep.mubr.f32.mxu0 0.0
    %v1959 = vand.u32 %v1617, 4294901760
    %v1960 = vsub.f32 %v1617, %v1959
    %1961 = vmatmul.mubr.f32.gmra.mrb[0].mxu0 %v1960
    %v1962 = vpop.f32.mrb[0].mxu0
    %v1963 = vadd.f32 %v1859, %v1962
    %v1964 = vpop.f32.mrb[0].mxu0
    %1965 = vdwg.mxu0
    %1966 = vmatprep.subr.mxu0 0.0
    %v1967 = vand.u32 %v37, 4294901760
    %1968 = vmatpush1.msra.mxu0 %v1967
    %1969 = vmatprep.subr.mxu0 0.0
    %v1970 = vand.u32 %v38, 4294901760
    %1971 = vmatpush1.msra.mxu0 %v1970
    %1972 = vmatprep.subr.mxu0 0.0
    %v1973 = vand.u32 %v39, 4294901760
    %1974 = vmatpush1.msra.mxu0 %v1973
    %1975 = vmatprep.subr.mxu0 0.0
    %v1976 = vand.u32 %v40, 4294901760
    %1977 = vmatpush1.msra.mxu0 %v1976
    %1978 = vmatprep.subr.mxu0 0.0
    %v1979 = vand.u32 %v41, 4294901760
    %1980 = vmatpush1.msra.mxu0 %v1979
    %1981 = vmatprep.subr.mxu0 0.0
    %v1982 = vand.u32 %v42, 4294901760
    %1983 = vmatpush1.msra.mxu0 %v1982
    %1984 = vmatprep.subr.mxu0 0.0
    %v1985 = vand.u32 %v43, 4294901760
    %1986 = vmatpush1.msra.mxu0 %v1985
    %1987 = vmatprep.subr.mxu0 0.0
    %v1988 = vand.u32 %v44, 4294901760
    %1989 = vmatpush1.msra.mxu0 %v1988
    %1990 = vmatprep.subr.mxu0 0.0
    %v1991 = vand.u32 %v45, 4294901760
    %1992 = vmatpush1.msra.mxu0 %v1991
    %1993 = vmatprep.subr.mxu0 0.0
    %v1994 = vand.u32 %v46, 4294901760
    %1995 = vmatpush1.msra.mxu0 %v1994
    %1996 = vmatprep.subr.mxu0 0.0
    %v1997 = vand.u32 %v47, 4294901760
    %1998 = vmatpush1.msra.mxu0 %v1997
    %1999 = vmatprep.subr.mxu0 0.0
    %v2000 = vand.u32 %v48, 4294901760
    %2001 = vmatpush1.msra.mxu0 %v2000
    %2002 = vmatprep.subr.mxu0 0.0
    %v2003 = vand.u32 %v49, 4294901760
    %2004 = vmatpush1.msra.mxu0 %v2003
    %2005 = vmatprep.subr.mxu0 0.0
    %v2006 = vand.u32 %v50, 4294901760
    %2007 = vmatpush1.msra.mxu0 %v2006
    %2008 = vmatprep.subr.mxu0 0.0
    %v2009 = vand.u32 %v51, 4294901760
    %2010 = vmatpush1.msra.mxu0 %v2009
    %2011 = vmatprep.subr.mxu0 0.0
    %v2012 = vand.u32 %v52, 4294901760
    %2013 = vmatpush1.msra.mxu0 %v2012
    %2014 = vmatprep.subr.mxu0 0.0
    %2015 = vmatpush1.msra.mxu0 0.0
    %2016 = vmatprep.subr.mxu0 0.0
    %2017 = vmatpush1.msra.mxu0 0.0
    %2018 = vmatprep.subr.mxu0 0.0
    %2019 = vmatpush1.msra.mxu0 0.0
    %2020 = vmatprep.subr.mxu0 0.0
    %2021 = vmatpush1.msra.mxu0 0.0
    %2022 = vmatprep.subr.mxu0 0.0
    %2023 = vmatpush1.msra.mxu0 0.0
    %2024 = vmatprep.subr.mxu0 0.0
    %2025 = vmatpush1.msra.mxu0 0.0
    %2026 = vmatprep.subr.mxu0 0.0
    %2027 = vmatpush1.msra.mxu0 0.0
    %2028 = vmatprep.subr.mxu0 0.0
    %2029 = vmatpush1.msra.mxu0 0.0
    %2030 = vmatprep.subr.mxu0 0.0
    %2031 = vmatpush1.msra.mxu0 0.0
    %2032 = vmatprep.subr.mxu0 0.0
    %2033 = vmatpush1.msra.mxu0 0.0
    %2034 = vmatprep.subr.mxu0 0.0
    %2035 = vmatpush1.msra.mxu0 0.0
    %2036 = vmatprep.subr.mxu0 0.0
    %2037 = vmatpush1.msra.mxu0 0.0
    %2038 = vmatprep.subr.mxu0 0.0
    %2039 = vmatpush1.msra.mxu0 0.0
    %2040 = vmatprep.subr.mxu0 0.0
    %2041 = vmatpush1.msra.mxu0 0.0
    %2042 = vmatprep.subr.mxu0 0.0
    %2043 = vmatpush1.msra.mxu0 0.0
    %2044 = vmatprep.subr.mxu0 0.0
    %2045 = vmatpush1.msra.mxu0 0.0
    %2046 = vmatprep.mubr.f32.mxu0 0.0
    %v2047 = vand.u32 %v1617, 4294901760
    %v2048 = vsub.f32 %v1617, %v2047
    %v2049 = vand.u32 %v2048, 4294901760
    %2050 = vmatmul.mubr.f32.gmra.mrb[0].mxu0 %v2049
    %v2051 = vpop.f32.mrb[0].mxu0
    %v2052 = vadd.f32 %v1963, %v2051
    %v2053 = vpop.f32.mrb[0].mxu0
    %2054 = vdwg.mxu0
    %2055 = vmatprep.subr.mxu0 0.0
    %v2056 = vand.u32 %v37, 4294901760
    %v2057 = vsub.f32 %v37, %v2056
    %v2058 = vand.u32 %v2057, 4294901760
    %2059 = vmatpush1.msra.mxu0 %v2058
    %2060 = vmatprep.subr.mxu0 0.0
    %v2061 = vand.u32 %v38, 4294901760
    %v2062 = vsub.f32 %v38, %v2061
    %v2063 = vand.u32 %v2062, 4294901760
    %2064 = vmatpush1.msra.mxu0 %v2063
    %2065 = vmatprep.subr.mxu0 0.0
    %v2066 = vand.u32 %v39, 4294901760
    %v2067 = vsub.f32 %v39, %v2066
    %v2068 = vand.u32 %v2067, 4294901760
    %2069 = vmatpush1.msra.mxu0 %v2068
    %2070 = vmatprep.subr.mxu0 0.0
    %v2071 = vand.u32 %v40, 4294901760
    %v2072 = vsub.f32 %v40, %v2071
    %v2073 = vand.u32 %v2072, 4294901760
    %2074 = vmatpush1.msra.mxu0 %v2073
    %2075 = vmatprep.subr.mxu0 0.0
    %v2076 = vand.u32 %v41, 4294901760
    %v2077 = vsub.f32 %v41, %v2076
    %v2078 = vand.u32 %v2077, 4294901760
    %2079 = vmatpush1.msra.mxu0 %v2078
    %2080 = vmatprep.subr.mxu0 0.0
    %v2081 = vand.u32 %v42, 4294901760
    %v2082 = vsub.f32 %v42, %v2081
    %v2083 = vand.u32 %v2082, 4294901760
    %2084 = vmatpush1.msra.mxu0 %v2083
    %2085 = vmatprep.subr.mxu0 0.0
    %v2086 = vand.u32 %v43, 4294901760
    %v2087 = vsub.f32 %v43, %v2086
    %v2088 = vand.u32 %v2087, 4294901760
    %2089 = vmatpush1.msra.mxu0 %v2088
    %2090 = vmatprep.subr.mxu0 0.0
    %v2091 = vand.u32 %v44, 4294901760
    %v2092 = vsub.f32 %v44, %v2091
    %v2093 = vand.u32 %v2092, 4294901760
    %2094 = vmatpush1.msra.mxu0 %v2093
    %2095 = vmatprep.subr.mxu0 0.0
    %v2096 = vand.u32 %v45, 4294901760
    %v2097 = vsub.f32 %v45, %v2096
    %v2098 = vand.u32 %v2097, 4294901760
    %2099 = vmatpush1.msra.mxu0 %v2098
    %2100 = vmatprep.subr.mxu0 0.0
    %v2101 = vand.u32 %v46, 4294901760
    %v2102 = vsub.f32 %v46, %v2101
    %v2103 = vand.u32 %v2102, 4294901760
    %2104 = vmatpush1.msra.mxu0 %v2103
    %2105 = vmatprep.subr.mxu0 0.0
    %v2106 = vand.u32 %v47, 4294901760
    %v2107 = vsub.f32 %v47, %v2106
    %v2108 = vand.u32 %v2107, 4294901760
    %2109 = vmatpush1.msra.mxu0 %v2108
    %2110 = vmatprep.subr.mxu0 0.0
    %v2111 = vand.u32 %v48, 4294901760
    %v2112 = vsub.f32 %v48, %v2111
    %v2113 = vand.u32 %v2112, 4294901760
    %2114 = vmatpush1.msra.mxu0 %v2113
    %2115 = vmatprep.subr.mxu0 0.0
    %v2116 = vand.u32 %v49, 4294901760
    %v2117 = vsub.f32 %v49, %v2116
    %v2118 = vand.u32 %v2117, 4294901760
    %2119 = vmatpush1.msra.mxu0 %v2118
    %2120 = vmatprep.subr.mxu0 0.0
    %v2121 = vand.u32 %v50, 4294901760
    %v2122 = vsub.f32 %v50, %v2121
    %v2123 = vand.u32 %v2122, 4294901760
    %2124 = vmatpush1.msra.mxu0 %v2123
    %2125 = vmatprep.subr.mxu0 0.0
    %v2126 = vand.u32 %v51, 4294901760
    %v2127 = vsub.f32 %v51, %v2126
    %v2128 = vand.u32 %v2127, 4294901760
    %2129 = vmatpush1.msra.mxu0 %v2128
    %2130 = vmatprep.subr.mxu0 0.0
    %v2131 = vand.u32 %v52, 4294901760
    %v2132 = vsub.f32 %v52, %v2131
    %v2133 = vand.u32 %v2132, 4294901760
    %2134 = vmatpush1.msra.mxu0 %v2133
    %2135 = vmatprep.subr.mxu0 0.0
    %2136 = vmatpush1.msra.mxu0 0.0
    %2137 = vmatprep.subr.mxu0 0.0
    %2138 = vmatpush1.msra.mxu0 0.0
    %2139 = vmatprep.subr.mxu0 0.0
    %2140 = vmatpush1.msra.mxu0 0.0
    %2141 = vmatprep.subr.mxu0 0.0
    %2142 = vmatpush1.msra.mxu0 0.0
    %2143 = vmatprep.subr.mxu0 0.0
    %2144 = vmatpush1.msra.mxu0 0.0
    %2145 = vmatprep.subr.mxu0 0.0
    %2146 = vmatpush1.msra.mxu0 0.0
    %2147 = vmatprep.subr.mxu0 0.0
    %2148 = vmatpush1.msra.mxu0 0.0
    %2149 = vmatprep.subr.mxu0 0.0
    %2150 = vmatpush1.msra.mxu0 0.0
    %2151 = vmatprep.subr.mxu0 0.0
    %2152 = vmatpush1.msra.mxu0 0.0
    %2153 = vmatprep.subr.mxu0 0.0
    %2154 = vmatpush1.msra.mxu0 0.0
    %2155 = vmatprep.subr.mxu0 0.0
    %2156 = vmatpush1.msra.mxu0 0.0
    %2157 = vmatprep.subr.mxu0 0.0
    %2158 = vmatpush1.msra.mxu0 0.0
    %2159 = vmatprep.subr.mxu0 0.0
    %2160 = vmatpush1.msra.mxu0 0.0
    %2161 = vmatprep.subr.mxu0 0.0
    %2162 = vmatpush1.msra.mxu0 0.0
    %2163 = vmatprep.subr.mxu0 0.0
    %2164 = vmatpush1.msra.mxu0 0.0
    %2165 = vmatprep.subr.mxu0 0.0
    %2166 = vmatpush1.msra.mxu0 0.0
    %2167 = vmatprep.mubr.f32.mxu0 0.0
    %v2168 = vand.u32 %v1617, 4294901760
    %2169 = vmatmul.mubr.f32.gmra.mrb[0].mxu0 %v2168
    %v2170 = vpop.f32.mrb[0].mxu0
    %v2171 = vadd.f32 %v2052, %v2170
    %v2172 = vpop.f32.mrb[0].mxu0
    %2173 = vdwg.mxu0
    %2174 = vmatprep.subr.mxu0 0.0
    %v2175 = vand.u32 %v37, 4294901760
    %2176 = vmatpush1.msra.mxu0 %v2175
    %2177 = vmatprep.subr.mxu0 0.0
    %v2178 = vand.u32 %v38, 4294901760
    %2179 = vmatpush1.msra.mxu0 %v2178
    %2180 = vmatprep.subr.mxu0 0.0
    %v2181 = vand.u32 %v39, 4294901760
    %2182 = vmatpush1.msra.mxu0 %v2181
    %2183 = vmatprep.subr.mxu0 0.0
    %v2184 = vand.u32 %v40, 4294901760
    %2185 = vmatpush1.msra.mxu0 %v2184
    %2186 = vmatprep.subr.mxu0 0.0
    %v2187 = vand.u32 %v41, 4294901760
    %2188 = vmatpush1.msra.mxu0 %v2187
    %2189 = vmatprep.subr.mxu0 0.0
    %v2190 = vand.u32 %v42, 4294901760
    %2191 = vmatpush1.msra.mxu0 %v2190
    %2192 = vmatprep.subr.mxu0 0.0
    %v2193 = vand.u32 %v43, 4294901760
    %2194 = vmatpush1.msra.mxu0 %v2193
    %2195 = vmatprep.subr.mxu0 0.0
    %v2196 = vand.u32 %v44, 4294901760
    %2197 = vmatpush1.msra.mxu0 %v2196
    %2198 = vmatprep.subr.mxu0 0.0
    %v2199 = vand.u32 %v45, 4294901760
    %2200 = vmatpush1.msra.mxu0 %v2199
    %2201 = vmatprep.subr.mxu0 0.0
    %v2202 = vand.u32 %v46, 4294901760
    %2203 = vmatpush1.msra.mxu0 %v2202
    %2204 = vmatprep.subr.mxu0 0.0
    %v2205 = vand.u32 %v47, 4294901760
    %2206 = vmatpush1.msra.mxu0 %v2205
    %2207 = vmatprep.subr.mxu0 0.0
    %v2208 = vand.u32 %v48, 4294901760
    %2209 = vmatpush1.msra.mxu0 %v2208
    %2210 = vmatprep.subr.mxu0 0.0
    %v2211 = vand.u32 %v49, 4294901760
    %2212 = vmatpush1.msra.mxu0 %v2211
    %2213 = vmatprep.subr.mxu0 0.0
    %v2214 = vand.u32 %v50, 4294901760
    %2215 = vmatpush1.msra.mxu0 %v2214
    %2216 = vmatprep.subr.mxu0 0.0
    %v2217 = vand.u32 %v51, 4294901760
    %2218 = vmatpush1.msra.mxu0 %v2217
    %2219 = vmatprep.subr.mxu0 0.0
    %v2220 = vand.u32 %v52, 4294901760
    %2221 = vmatpush1.msra.mxu0 %v2220
    %2222 = vmatprep.subr.mxu0 0.0
    %2223 = vmatpush1.msra.mxu0 0.0
    %2224 = vmatprep.subr.mxu0 0.0
    %2225 = vmatpush1.msra.mxu0 0.0
    %2226 = vmatprep.subr.mxu0 0.0
    %2227 = vmatpush1.msra.mxu0 0.0
    %2228 = vmatprep.subr.mxu0 0.0
    %2229 = vmatpush1.msra.mxu0 0.0
    %2230 = vmatprep.subr.mxu0 0.0
    %2231 = vmatpush1.msra.mxu0 0.0
    %2232 = vmatprep.subr.mxu0 0.0
    %2233 = vmatpush1.msra.mxu0 0.0
    %2234 = vmatprep.subr.mxu0 0.0
    %2235 = vmatpush1.msra.mxu0 0.0
    %2236 = vmatprep.subr.mxu0 0.0
    %2237 = vmatpush1.msra.mxu0 0.0
    %2238 = vmatprep.subr.mxu0 0.0
    %2239 = vmatpush1.msra.mxu0 0.0
    %2240 = vmatprep.subr.mxu0 0.0
    %2241 = vmatpush1.msra.mxu0 0.0
    %2242 = vmatprep.subr.mxu0 0.0
    %2243 = vmatpush1.msra.mxu0 0.0
    %2244 = vmatprep.subr.mxu0 0.0
    %2245 = vmatpush1.msra.mxu0 0.0
    %2246 = vmatprep.subr.mxu0 0.0
    %2247 = vmatpush1.msra.mxu0 0.0
    %2248 = vmatprep.subr.mxu0 0.0
    %2249 = vmatpush1.msra.mxu0 0.0
    %2250 = vmatprep.subr.mxu0 0.0
    %2251 = vmatpush1.msra.mxu0 0.0
    %2252 = vmatprep.subr.mxu0 0.0
    %2253 = vmatpush1.msra.mxu0 0.0
    %2254 = vmatprep.mubr.f32.mxu0 0.0
    %v2255 = vand.u32 %v1617, 4294901760
    %2256 = vmatmul.mubr.f32.gmra.mrb[0].mxu0 %v2255
    %v2257 = vpop.f32.mrb[0].mxu0
    %v2258 = vadd.f32 %v2171, %v2257
    %v2259 = vpop.f32.mrb[0].mxu0
    %2260 = vdwg.mxu0
    %v2261 = vmul.f32 %v1158, %v1158
    %v2262 = vmul.f32 %v2258, %v2258
    %v2263 = vmul.f32 %v1158, %v2258
    %v2264 = vmul.f32 %v53, %v53
    %v2265 = vmul.f32 %v54, %v54
    %2266 = vmatprep.subr.mxu0 0.0
    %v2267 = vand.u32 %v2264, 4294901760
    %2268 = vmatpush1.msra.mxu0 %v2267
    %2269 = vmatprep.subr.mxu0 0.0
    %v2270 = vand.u32 %v2265, 4294901760
    %2271 = vmatpush1.msra.mxu0 %v2270
    %2272 = vmatprep.subr.mxu0 0.0
    %2273 = vmatpush1.msra.mxu0 0.0
    %2274 = vmatprep.subr.mxu0 0.0
    %2275 = vmatpush1.msra.mxu0 0.0
    %2276 = vmatprep.subr.mxu0 0.0
    %2277 = vmatpush1.msra.mxu0 0.0
    %2278 = vmatprep.subr.mxu0 0.0
    %2279 = vmatpush1.msra.mxu0 0.0
    %2280 = vmatprep.subr.mxu0 0.0
    %2281 = vmatpush1.msra.mxu0 0.0
    %2282 = vmatprep.subr.mxu0 0.0
    %2283 = vmatpush1.msra.mxu0 0.0
    %2284 = vmatprep.subr.mxu0 0.0
    %2285 = vmatpush1.msra.mxu0 0.0
    %2286 = vmatprep.subr.mxu0 0.0
    %2287 = vmatpush1.msra.mxu0 0.0
    %2288 = vmatprep.subr.mxu0 0.0
    %2289 = vmatpush1.msra.mxu0 0.0
    %2290 = vmatprep.subr.mxu0 0.0
    %2291 = vmatpush1.msra.mxu0 0.0
    %2292 = vmatprep.subr.mxu0 0.0
    %2293 = vmatpush1.msra.mxu0 0.0
    %2294 = vmatprep.subr.mxu0 0.0
    %2295 = vmatpush1.msra.mxu0 0.0
    %2296 = vmatprep.subr.mxu0 0.0
    %2297 = vmatpush1.msra.mxu0 0.0
    %2298 = vmatprep.subr.mxu0 0.0
    %2299 = vmatpush1.msra.mxu0 0.0
    %2300 = vmatprep.subr.mxu0 0.0
    %2301 = vmatpush1.msra.mxu0 0.0
    %2302 = vmatprep.subr.mxu0 0.0
    %2303 = vmatpush1.msra.mxu0 0.0
    %2304 = vmatprep.subr.mxu0 0.0
    %2305 = vmatpush1.msra.mxu0 0.0
    %2306 = vmatprep.subr.mxu0 0.0
    %2307 = vmatpush1.msra.mxu0 0.0
    %2308 = vmatprep.subr.mxu0 0.0
    %2309 = vmatpush1.msra.mxu0 0.0
    %2310 = vmatprep.subr.mxu0 0.0
    %2311 = vmatpush1.msra.mxu0 0.0
    %2312 = vmatprep.subr.mxu0 0.0
    %2313 = vmatpush1.msra.mxu0 0.0
    %2314 = vmatprep.subr.mxu0 0.0
    %2315 = vmatpush1.msra.mxu0 0.0
    %2316 = vmatprep.subr.mxu0 0.0
    %2317 = vmatpush1.msra.mxu0 0.0
    %2318 = vmatprep.subr.mxu0 0.0
    %2319 = vmatpush1.msra.mxu0 0.0
    %2320 = vmatprep.subr.mxu0 0.0
    %2321 = vmatpush1.msra.mxu0 0.0
    %2322 = vmatprep.subr.mxu0 0.0
    %2323 = vmatpush1.msra.mxu0 0.0
    %2324 = vmatprep.subr.mxu0 0.0
    %2325 = vmatpush1.msra.mxu0 0.0
    %2326 = vmatprep.subr.mxu0 0.0
    %2327 = vmatpush1.msra.mxu0 0.0
    %2328 = vmatprep.subr.mxu0 0.0
    %2329 = vmatpush1.msra.mxu0 0.0
    %2330 = vmatprep.subr.mxu0 0.0
    %2331 = vmatpush1.msra.mxu0 0.0
    %2332 = vmatprep.mubr.f32.mxu0 0.0
    %v2333 = vand.u32 %v59, 4294901760
    %v2334 = vsub.f32 %v59, %v2333
    %v2335 = vand.u32 %v2334, 4294901760
    %v2336 = vsub.f32 %v2334, %v2335
    %v2337 = vand.u32 %v2336, 4294901760
    %2338 = vmatmul.mubr.f32.gmra.mrb[0].mxu0 %v2337
    %v2339 = vpop.f32.mrb[0].mxu0
    %v2340 = vadd.f32 0.0, %v2339
    %v2341 = vpop.f32.mrb[0].mxu0
    %2342 = vdwg.mxu0
    %2343 = vmatprep.subr.mxu0 0.0
    %v2344 = vand.u32 %v2264, 4294901760
    %v2345 = vsub.f32 %v2264, %v2344
    %v2346 = vand.u32 %v2345, 4294901760
    %v2347 = vsub.f32 %v2345, %v2346
    %v2348 = vand.u32 %v2347, 4294901760
    %2349 = vmatpush1.msra.mxu0 %v2348
    %2350 = vmatprep.subr.mxu0 0.0
    %v2351 = vand.u32 %v2265, 4294901760
    %v2352 = vsub.f32 %v2265, %v2351
    %v2353 = vand.u32 %v2352, 4294901760
    %v2354 = vsub.f32 %v2352, %v2353
    %v2355 = vand.u32 %v2354, 4294901760
    %2356 = vmatpush1.msra.mxu0 %v2355
    %2357 = vmatprep.subr.mxu0 0.0
    %2358 = vmatpush1.msra.mxu0 0.0
    %2359 = vmatprep.subr.mxu0 0.0
    %2360 = vmatpush1.msra.mxu0 0.0
    %2361 = vmatprep.subr.mxu0 0.0
    %2362 = vmatpush1.msra.mxu0 0.0
    %2363 = vmatprep.subr.mxu0 0.0
    %2364 = vmatpush1.msra.mxu0 0.0
    %2365 = vmatprep.subr.mxu0 0.0
    %2366 = vmatpush1.msra.mxu0 0.0
    %2367 = vmatprep.subr.mxu0 0.0
    %2368 = vmatpush1.msra.mxu0 0.0
    %2369 = vmatprep.subr.mxu0 0.0
    %2370 = vmatpush1.msra.mxu0 0.0
    %2371 = vmatprep.subr.mxu0 0.0
    %2372 = vmatpush1.msra.mxu0 0.0
    %2373 = vmatprep.subr.mxu0 0.0
    %2374 = vmatpush1.msra.mxu0 0.0
    %2375 = vmatprep.subr.mxu0 0.0
    %2376 = vmatpush1.msra.mxu0 0.0
    %2377 = vmatprep.subr.mxu0 0.0
    %2378 = vmatpush1.msra.mxu0 0.0
    %2379 = vmatprep.subr.mxu0 0.0
    %2380 = vmatpush1.msra.mxu0 0.0
    %2381 = vmatprep.subr.mxu0 0.0
    %2382 = vmatpush1.msra.mxu0 0.0
    %2383 = vmatprep.subr.mxu0 0.0
    %2384 = vmatpush1.msra.mxu0 0.0
    %2385 = vmatprep.subr.mxu0 0.0
    %2386 = vmatpush1.msra.mxu0 0.0
    %2387 = vmatprep.subr.mxu0 0.0
    %2388 = vmatpush1.msra.mxu0 0.0
    %2389 = vmatprep.subr.mxu0 0.0
    %2390 = vmatpush1.msra.mxu0 0.0
    %2391 = vmatprep.subr.mxu0 0.0
    %2392 = vmatpush1.msra.mxu0 0.0
    %2393 = vmatprep.subr.mxu0 0.0
    %2394 = vmatpush1.msra.mxu0 0.0
    %2395 = vmatprep.subr.mxu0 0.0
    %2396 = vmatpush1.msra.mxu0 0.0
    %2397 = vmatprep.subr.mxu0 0.0
    %2398 = vmatpush1.msra.mxu0 0.0
    %2399 = vmatprep.subr.mxu0 0.0
    %2400 = vmatpush1.msra.mxu0 0.0
    %2401 = vmatprep.subr.mxu0 0.0
    %2402 = vmatpush1.msra.mxu0 0.0
    %2403 = vmatprep.subr.mxu0 0.0
    %2404 = vmatpush1.msra.mxu0 0.0
    %2405 = vmatprep.subr.mxu0 0.0
    %2406 = vmatpush1.msra.mxu0 0.0
    %2407 = vmatprep.subr.mxu0 0.0
    %2408 = vmatpush1.msra.mxu0 0.0
    %2409 = vmatprep.subr.mxu0 0.0
    %2410 = vmatpush1.msra.mxu0 0.0
    %2411 = vmatprep.subr.mxu0 0.0
    %2412 = vmatpush1.msra.mxu0 0.0
    %2413 = vmatprep.subr.mxu0 0.0
    %2414 = vmatpush1.msra.mxu0 0.0
    %2415 = vmatprep.subr.mxu0 0.0
    %2416 = vmatpush1.msra.mxu0 0.0
    %2417 = vmatprep.mubr.f32.mxu0 0.0
    %v2418 = vand.u32 %v59, 4294901760
    %2419 = vmatmul.mubr.f32.gmra.mrb[0].mxu0 %v2418
    %v2420 = vpop.f32.mrb[0].mxu0
    %v2421 = vadd.f32 %v2340, %v2420
    %v2422 = vpop.f32.mrb[0].mxu0
    %2423 = vdwg.mxu0
    %2424 = vmatprep.subr.mxu0 0.0
    %v2425 = vand.u32 %v2264, 4294901760
    %v2426 = vsub.f32 %v2264, %v2425
    %2427 = vmatpush1.msra.mxu0 %v2426
    %2428 = vmatprep.subr.mxu0 0.0
    %v2429 = vand.u32 %v2265, 4294901760
    %v2430 = vsub.f32 %v2265, %v2429
    %2431 = vmatpush1.msra.mxu0 %v2430
    %2432 = vmatprep.subr.mxu0 0.0
    %2433 = vmatpush1.msra.mxu0 0.0
    %2434 = vmatprep.subr.mxu0 0.0
    %2435 = vmatpush1.msra.mxu0 0.0
    %2436 = vmatprep.subr.mxu0 0.0
    %2437 = vmatpush1.msra.mxu0 0.0
    %2438 = vmatprep.subr.mxu0 0.0
    %2439 = vmatpush1.msra.mxu0 0.0
    %2440 = vmatprep.subr.mxu0 0.0
    %2441 = vmatpush1.msra.mxu0 0.0
    %2442 = vmatprep.subr.mxu0 0.0
    %2443 = vmatpush1.msra.mxu0 0.0
    %2444 = vmatprep.subr.mxu0 0.0
    %2445 = vmatpush1.msra.mxu0 0.0
    %2446 = vmatprep.subr.mxu0 0.0
    %2447 = vmatpush1.msra.mxu0 0.0
    %2448 = vmatprep.subr.mxu0 0.0
    %2449 = vmatpush1.msra.mxu0 0.0
    %2450 = vmatprep.subr.mxu0 0.0
    %2451 = vmatpush1.msra.mxu0 0.0
    %2452 = vmatprep.subr.mxu0 0.0
    %2453 = vmatpush1.msra.mxu0 0.0
    %2454 = vmatprep.subr.mxu0 0.0
    %2455 = vmatpush1.msra.mxu0 0.0
    %2456 = vmatprep.subr.mxu0 0.0
    %2457 = vmatpush1.msra.mxu0 0.0
    %2458 = vmatprep.subr.mxu0 0.0
    %2459 = vmatpush1.msra.mxu0 0.0
    %2460 = vmatprep.subr.mxu0 0.0
    %2461 = vmatpush1.msra.mxu0 0.0
    %2462 = vmatprep.subr.mxu0 0.0
    %2463 = vmatpush1.msra.mxu0 0.0
    %2464 = vmatprep.subr.mxu0 0.0
    %2465 = vmatpush1.msra.mxu0 0.0
    %2466 = vmatprep.subr.mxu0 0.0
    %2467 = vmatpush1.msra.mxu0 0.0
    %2468 = vmatprep.subr.mxu0 0.0
    %2469 = vmatpush1.msra.mxu0 0.0
    %2470 = vmatprep.subr.mxu0 0.0
    %2471 = vmatpush1.msra.mxu0 0.0
    %2472 = vmatprep.subr.mxu0 0.0
    %2473 = vmatpush1.msra.mxu0 0.0
    %2474 = vmatprep.subr.mxu0 0.0
    %2475 = vmatpush1.msra.mxu0 0.0
    %2476 = vmatprep.subr.mxu0 0.0
    %2477 = vmatpush1.msra.mxu0 0.0
    %2478 = vmatprep.subr.mxu0 0.0
    %2479 = vmatpush1.msra.mxu0 0.0
    %2480 = vmatprep.subr.mxu0 0.0
    %2481 = vmatpush1.msra.mxu0 0.0
    %2482 = vmatprep.subr.mxu0 0.0
    %2483 = vmatpush1.msra.mxu0 0.0
    %2484 = vmatprep.subr.mxu0 0.0
    %2485 = vmatpush1.msra.mxu0 0.0
    %2486 = vmatprep.subr.mxu0 0.0
    %2487 = vmatpush1.msra.mxu0 0.0
    %2488 = vmatprep.subr.mxu0 0.0
    %2489 = vmatpush1.msra.mxu0 0.0
    %2490 = vmatprep.subr.mxu0 0.0
    %2491 = vmatpush1.msra.mxu0 0.0
    %2492 = vmatprep.mubr.f32.mxu0 0.0
    %v2493 = vand.u32 %v59, 4294901760
    %v2494 = vsub.f32 %v59, %v2493
    %2495 = vmatmul.mubr.f32.gmra.mrb[0].mxu0 %v2494
    %v2496 = vpop.f32.mrb[0].mxu0
    %v2497 = vadd.f32 %v2421, %v2496
    %v2498 = vpop.f32.mrb[0].mxu0
    %2499 = vdwg.mxu0
    %2500 = vmatprep.subr.mxu0 0.0
    %v2501 = vand.u32 %v2264, 4294901760
    %2502 = vmatpush1.msra.mxu0 %v2501
    %2503 = vmatprep.subr.mxu0 0.0
    %v2504 = vand.u32 %v2265, 4294901760
    %2505 = vmatpush1.msra.mxu0 %v2504
    %2506 = vmatprep.subr.mxu0 0.0
    %2507 = vmatpush1.msra.mxu0 0.0
    %2508 = vmatprep.subr.mxu0 0.0
    %2509 = vmatpush1.msra.mxu0 0.0
    %2510 = vmatprep.subr.mxu0 0.0
    %2511 = vmatpush1.msra.mxu0 0.0
    %2512 = vmatprep.subr.mxu0 0.0
    %2513 = vmatpush1.msra.mxu0 0.0
    %2514 = vmatprep.subr.mxu0 0.0
    %2515 = vmatpush1.msra.mxu0 0.0
    %2516 = vmatprep.subr.mxu0 0.0
    %2517 = vmatpush1.msra.mxu0 0.0
    %2518 = vmatprep.subr.mxu0 0.0
    %2519 = vmatpush1.msra.mxu0 0.0
    %2520 = vmatprep.subr.mxu0 0.0
    %2521 = vmatpush1.msra.mxu0 0.0
    %2522 = vmatprep.subr.mxu0 0.0
    %2523 = vmatpush1.msra.mxu0 0.0
    %2524 = vmatprep.subr.mxu0 0.0
    %2525 = vmatpush1.msra.mxu0 0.0
    %2526 = vmatprep.subr.mxu0 0.0
    %2527 = vmatpush1.msra.mxu0 0.0
    %2528 = vmatprep.subr.mxu0 0.0
    %2529 = vmatpush1.msra.mxu0 0.0
    %2530 = vmatprep.subr.mxu0 0.0
    %2531 = vmatpush1.msra.mxu0 0.0
    %2532 = vmatprep.subr.mxu0 0.0
    %2533 = vmatpush1.msra.mxu0 0.0
    %2534 = vmatprep.subr.mxu0 0.0
    %2535 = vmatpush1.msra.mxu0 0.0
    %2536 = vmatprep.subr.mxu0 0.0
    %2537 = vmatpush1.msra.mxu0 0.0
    %2538 = vmatprep.subr.mxu0 0.0
    %2539 = vmatpush1.msra.mxu0 0.0
    %2540 = vmatprep.subr.mxu0 0.0
    %2541 = vmatpush1.msra.mxu0 0.0
    %2542 = vmatprep.subr.mxu0 0.0
    %2543 = vmatpush1.msra.mxu0 0.0
    %2544 = vmatprep.subr.mxu0 0.0
    %2545 = vmatpush1.msra.mxu0 0.0
    %2546 = vmatprep.subr.mxu0 0.0
    %2547 = vmatpush1.msra.mxu0 0.0
    %2548 = vmatprep.subr.mxu0 0.0
    %2549 = vmatpush1.msra.mxu0 0.0
    %2550 = vmatprep.subr.mxu0 0.0
    %2551 = vmatpush1.msra.mxu0 0.0
    %2552 = vmatprep.subr.mxu0 0.0
    %2553 = vmatpush1.msra.mxu0 0.0
    %2554 = vmatprep.subr.mxu0 0.0
    %2555 = vmatpush1.msra.mxu0 0.0
    %2556 = vmatprep.subr.mxu0 0.0
    %2557 = vmatpush1.msra.mxu0 0.0
    %2558 = vmatprep.subr.mxu0 0.0
    %2559 = vmatpush1.msra.mxu0 0.0
    %2560 = vmatprep.subr.mxu0 0.0
    %2561 = vmatpush1.msra.mxu0 0.0
    %2562 = vmatprep.subr.mxu0 0.0
    %2563 = vmatpush1.msra.mxu0 0.0
    %2564 = vmatprep.subr.mxu0 0.0
    %2565 = vmatpush1.msra.mxu0 0.0
    %2566 = vmatprep.mubr.f32.mxu0 0.0
    %v2567 = vand.u32 %v59, 4294901760
    %v2568 = vsub.f32 %v59, %v2567
    %v2569 = vand.u32 %v2568, 4294901760
    %2570 = vmatmul.mubr.f32.gmra.mrb[0].mxu0 %v2569
    %v2571 = vpop.f32.mrb[0].mxu0
    %v2572 = vadd.f32 %v2497, %v2571
    %v2573 = vpop.f32.mrb[0].mxu0
    %2574 = vdwg.mxu0
    %2575 = vmatprep.subr.mxu0 0.0
    %v2576 = vand.u32 %v2264, 4294901760
    %v2577 = vsub.f32 %v2264, %v2576
    %v2578 = vand.u32 %v2577, 4294901760
    %2579 = vmatpush1.msra.mxu0 %v2578
    %2580 = vmatprep.subr.mxu0 0.0
    %v2581 = vand.u32 %v2265, 4294901760
    %v2582 = vsub.f32 %v2265, %v2581
    %v2583 = vand.u32 %v2582, 4294901760
    %2584 = vmatpush1.msra.mxu0 %v2583
    %2585 = vmatprep.subr.mxu0 0.0
    %2586 = vmatpush1.msra.mxu0 0.0
    %2587 = vmatprep.subr.mxu0 0.0
    %2588 = vmatpush1.msra.mxu0 0.0
    %2589 = vmatprep.subr.mxu0 0.0
    %2590 = vmatpush1.msra.mxu0 0.0
    %2591 = vmatprep.subr.mxu0 0.0
    %2592 = vmatpush1.msra.mxu0 0.0
    %2593 = vmatprep.subr.mxu0 0.0
    %2594 = vmatpush1.msra.mxu0 0.0
    %2595 = vmatprep.subr.mxu0 0.0
    %2596 = vmatpush1.msra.mxu0 0.0
    %2597 = vmatprep.subr.mxu0 0.0
    %2598 = vmatpush1.msra.mxu0 0.0
    %2599 = vmatprep.subr.mxu0 0.0
    %2600 = vmatpush1.msra.mxu0 0.0
    %2601 = vmatprep.subr.mxu0 0.0
    %2602 = vmatpush1.msra.mxu0 0.0
    %2603 = vmatprep.subr.mxu0 0.0
    %2604 = vmatpush1.msra.mxu0 0.0
    %2605 = vmatprep.subr.mxu0 0.0
    %2606 = vmatpush1.msra.mxu0 0.0
    %2607 = vmatprep.subr.mxu0 0.0
    %2608 = vmatpush1.msra.mxu0 0.0
    %2609 = vmatprep.subr.mxu0 0.0
    %2610 = vmatpush1.msra.mxu0 0.0
    %2611 = vmatprep.subr.mxu0 0.0
    %2612 = vmatpush1.msra.mxu0 0.0
    %2613 = vmatprep.subr.mxu0 0.0
    %2614 = vmatpush1.msra.mxu0 0.0
    %2615 = vmatprep.subr.mxu0 0.0
    %2616 = vmatpush1.msra.mxu0 0.0
    %2617 = vmatprep.subr.mxu0 0.0
    %2618 = vmatpush1.msra.mxu0 0.0
    %2619 = vmatprep.subr.mxu0 0.0
    %2620 = vmatpush1.msra.mxu0 0.0
    %2621 = vmatprep.subr.mxu0 0.0
    %2622 = vmatpush1.msra.mxu0 0.0
    %2623 = vmatprep.subr.mxu0 0.0
    %2624 = vmatpush1.msra.mxu0 0.0
    %2625 = vmatprep.subr.mxu0 0.0
    %2626 = vmatpush1.msra.mxu0 0.0
    %2627 = vmatprep.subr.mxu0 0.0
    %2628 = vmatpush1.msra.mxu0 0.0
    %2629 = vmatprep.subr.mxu0 0.0
    %2630 = vmatpush1.msra.mxu0 0.0
    %2631 = vmatprep.subr.mxu0 0.0
    %2632 = vmatpush1.msra.mxu0 0.0
    %2633 = vmatprep.subr.mxu0 0.0
    %2634 = vmatpush1.msra.mxu0 0.0
    %2635 = vmatprep.subr.mxu0 0.0
    %2636 = vmatpush1.msra.mxu0 0.0
    %2637 = vmatprep.subr.mxu0 0.0
    %2638 = vmatpush1.msra.mxu0 0.0
    %2639 = vmatprep.subr.mxu0 0.0
    %2640 = vmatpush1.msra.mxu0 0.0
    %2641 = vmatprep.subr.mxu0 0.0
    %2642 = vmatpush1.msra.mxu0 0.0
    %2643 = vmatprep.subr.mxu0 0.0
    %2644 = vmatpush1.msra.mxu0 0.0
    %2645 = vmatprep.mubr.f32.mxu0 0.0
    %v2646 = vand.u32 %v59, 4294901760
    %2647 = vmatmul.mubr.f32.gmra.mrb[0].mxu0 %v2646
    %v2648 = vpop.f32.mrb[0].mxu0
    %v2649 = vadd.f32 %v2572, %v2648
    %v2650 = vpop.f32.mrb[0].mxu0
    %2651 = vdwg.mxu0
    %2652 = vmatprep.subr.mxu0 0.0
    %v2653 = vand.u32 %v2264, 4294901760
    %2654 = vmatpush1.msra.mxu0 %v2653
    %2655 = vmatprep.subr.mxu0 0.0
    %v2656 = vand.u32 %v2265, 4294901760
    %2657 = vmatpush1.msra.mxu0 %v2656
    %2658 = vmatprep.subr.mxu0 0.0
    %2659 = vmatpush1.msra.mxu0 0.0
    %2660 = vmatprep.subr.mxu0 0.0
    %2661 = vmatpush1.msra.mxu0 0.0
    %2662 = vmatprep.subr.mxu0 0.0
    %2663 = vmatpush1.msra.mxu0 0.0
    %2664 = vmatprep.subr.mxu0 0.0
    %2665 = vmatpush1.msra.mxu0 0.0
    %2666 = vmatprep.subr.mxu0 0.0
    %2667 = vmatpush1.msra.mxu0 0.0
    %2668 = vmatprep.subr.mxu0 0.0
    %2669 = vmatpush1.msra.mxu0 0.0
    %2670 = vmatprep.subr.mxu0 0.0
    %2671 = vmatpush1.msra.mxu0 0.0
    %2672 = vmatprep.subr.mxu0 0.0
    %2673 = vmatpush1.msra.mxu0 0.0
    %2674 = vmatprep.subr.mxu0 0.0
    %2675 = vmatpush1.msra.mxu0 0.0
    %2676 = vmatprep.subr.mxu0 0.0
    %2677 = vmatpush1.msra.mxu0 0.0
    %2678 = vmatprep.subr.mxu0 0.0
    %2679 = vmatpush1.msra.mxu0 0.0
    %2680 = vmatprep.subr.mxu0 0.0
    %2681 = vmatpush1.msra.mxu0 0.0
    %2682 = vmatprep.subr.mxu0 0.0
    %2683 = vmatpush1.msra.mxu0 0.0
    %2684 = vmatprep.subr.mxu0 0.0
    %2685 = vmatpush1.msra.mxu0 0.0
    %2686 = vmatprep.subr.mxu0 0.0
    %2687 = vmatpush1.msra.mxu0 0.0
    %2688 = vmatprep.subr.mxu0 0.0
    %2689 = vmatpush1.msra.mxu0 0.0
    %2690 = vmatprep.subr.mxu0 0.0
    %2691 = vmatpush1.msra.mxu0 0.0
    %2692 = vmatprep.subr.mxu0 0.0
    %2693 = vmatpush1.msra.mxu0 0.0
    %2694 = vmatprep.subr.mxu0 0.0
    %2695 = vmatpush1.msra.mxu0 0.0
    %2696 = vmatprep.subr.mxu0 0.0
    %2697 = vmatpush1.msra.mxu0 0.0
    %2698 = vmatprep.subr.mxu0 0.0
    %2699 = vmatpush1.msra.mxu0 0.0
    %2700 = vmatprep.subr.mxu0 0.0
    %2701 = vmatpush1.msra.mxu0 0.0
    %2702 = vmatprep.subr.mxu0 0.0
    %2703 = vmatpush1.msra.mxu0 0.0
    %2704 = vmatprep.subr.mxu0 0.0
    %2705 = vmatpush1.msra.mxu0 0.0
    %2706 = vmatprep.subr.mxu0 0.0
    %2707 = vmatpush1.msra.mxu0 0.0
    %2708 = vmatprep.subr.mxu0 0.0
    %2709 = vmatpush1.msra.mxu0 0.0
    %2710 = vmatprep.subr.mxu0 0.0
    %2711 = vmatpush1.msra.mxu0 0.0
    %2712 = vmatprep.subr.mxu0 0.0
    %2713 = vmatpush1.msra.mxu0 0.0
    %2714 = vmatprep.subr.mxu0 0.0
    %2715 = vmatpush1.msra.mxu0 0.0
    %2716 = vmatprep.subr.mxu0 0.0
    %2717 = vmatpush1.msra.mxu0 0.0
    %2718 = vmatprep.mubr.f32.mxu0 0.0
    %v2719 = vand.u32 %v59, 4294901760
    %2720 = vmatmul.mubr.f32.gmra.mrb[0].mxu0 %v2719
    %v2721 = vpop.f32.mrb[0].mxu0
    %v2722 = vadd.f32 %v2649, %v2721
    %v2723 = vpop.f32.mrb[0].mxu0
    %2724 = vdwg.mxu0
    %2725 = vmatprep.subr.mxu0 0.0
    %v2726 = vand.u32 %v37, 4294901760
    %2727 = vmatpush1.msra.mxu0 %v2726
    %2728 = vmatprep.subr.mxu0 0.0
    %v2729 = vand.u32 %v38, 4294901760
    %2730 = vmatpush1.msra.mxu0 %v2729
    %2731 = vmatprep.subr.mxu0 0.0
    %v2732 = vand.u32 %v39, 4294901760
    %2733 = vmatpush1.msra.mxu0 %v2732
    %2734 = vmatprep.subr.mxu0 0.0
    %v2735 = vand.u32 %v40, 4294901760
    %2736 = vmatpush1.msra.mxu0 %v2735
    %2737 = vmatprep.subr.mxu0 0.0
    %v2738 = vand.u32 %v41, 4294901760
    %2739 = vmatpush1.msra.mxu0 %v2738
    %2740 = vmatprep.subr.mxu0 0.0
    %v2741 = vand.u32 %v42, 4294901760
    %2742 = vmatpush1.msra.mxu0 %v2741
    %2743 = vmatprep.subr.mxu0 0.0
    %v2744 = vand.u32 %v43, 4294901760
    %2745 = vmatpush1.msra.mxu0 %v2744
    %2746 = vmatprep.subr.mxu0 0.0
    %v2747 = vand.u32 %v44, 4294901760
    %2748 = vmatpush1.msra.mxu0 %v2747
    %2749 = vmatprep.subr.mxu0 0.0
    %v2750 = vand.u32 %v45, 4294901760
    %2751 = vmatpush1.msra.mxu0 %v2750
    %2752 = vmatprep.subr.mxu0 0.0
    %v2753 = vand.u32 %v46, 4294901760
    %2754 = vmatpush1.msra.mxu0 %v2753
    %2755 = vmatprep.subr.mxu0 0.0
    %v2756 = vand.u32 %v47, 4294901760
    %2757 = vmatpush1.msra.mxu0 %v2756
    %2758 = vmatprep.subr.mxu0 0.0
    %v2759 = vand.u32 %v48, 4294901760
    %2760 = vmatpush1.msra.mxu0 %v2759
    %2761 = vmatprep.subr.mxu0 0.0
    %v2762 = vand.u32 %v49, 4294901760
    %2763 = vmatpush1.msra.mxu0 %v2762
    %2764 = vmatprep.subr.mxu0 0.0
    %v2765 = vand.u32 %v50, 4294901760
    %2766 = vmatpush1.msra.mxu0 %v2765
    %2767 = vmatprep.subr.mxu0 0.0
    %v2768 = vand.u32 %v51, 4294901760
    %2769 = vmatpush1.msra.mxu0 %v2768
    %2770 = vmatprep.subr.mxu0 0.0
    %v2771 = vand.u32 %v52, 4294901760
    %2772 = vmatpush1.msra.mxu0 %v2771
    %2773 = vmatprep.subr.mxu0 0.0
    %2774 = vmatpush1.msra.mxu0 0.0
    %2775 = vmatprep.subr.mxu0 0.0
    %2776 = vmatpush1.msra.mxu0 0.0
    %2777 = vmatprep.subr.mxu0 0.0
    %2778 = vmatpush1.msra.mxu0 0.0
    %2779 = vmatprep.subr.mxu0 0.0
    %2780 = vmatpush1.msra.mxu0 0.0
    %2781 = vmatprep.subr.mxu0 0.0
    %2782 = vmatpush1.msra.mxu0 0.0
    %2783 = vmatprep.subr.mxu0 0.0
    %2784 = vmatpush1.msra.mxu0 0.0
    %2785 = vmatprep.subr.mxu0 0.0
    %2786 = vmatpush1.msra.mxu0 0.0
    %2787 = vmatprep.subr.mxu0 0.0
    %2788 = vmatpush1.msra.mxu0 0.0
    %2789 = vmatprep.subr.mxu0 0.0
    %2790 = vmatpush1.msra.mxu0 0.0
    %2791 = vmatprep.subr.mxu0 0.0
    %2792 = vmatpush1.msra.mxu0 0.0
    %2793 = vmatprep.subr.mxu0 0.0
    %2794 = vmatpush1.msra.mxu0 0.0
    %2795 = vmatprep.subr.mxu0 0.0
    %2796 = vmatpush1.msra.mxu0 0.0
    %2797 = vmatprep.subr.mxu0 0.0
    %2798 = vmatpush1.msra.mxu0 0.0
    %2799 = vmatprep.subr.mxu0 0.0
    %2800 = vmatpush1.msra.mxu0 0.0
    %2801 = vmatprep.subr.mxu0 0.0
    %2802 = vmatpush1.msra.mxu0 0.0
    %2803 = vmatprep.subr.mxu0 0.0
    %2804 = vmatpush1.msra.mxu0 0.0
    %2805 = vmatprep.mubr.f32.mxu0 0.0
    %v2806 = vand.u32 %v2722, 4294901760
    %v2807 = vsub.f32 %v2722, %v2806
    %v2808 = vand.u32 %v2807, 4294901760
    %v2809 = vsub.f32 %v2807, %v2808
    %v2810 = vand.u32 %v2809, 4294901760
    %2811 = vmatmul.mubr.f32.gmra.mrb[0].mxu0 %v2810
    %v2812 = vpop.f32.mrb[0].mxu0
    %v2813 = vadd.f32 0.0, %v2812
    %v2814 = vpop.f32.mrb[0].mxu0
    %2815 = vdwg.mxu0
    %2816 = vmatprep.subr.mxu0 0.0
    %v2817 = vand.u32 %v37, 4294901760
    %v2818 = vsub.f32 %v37, %v2817
    %v2819 = vand.u32 %v2818, 4294901760
    %v2820 = vsub.f32 %v2818, %v2819
    %v2821 = vand.u32 %v2820, 4294901760
    %2822 = vmatpush1.msra.mxu0 %v2821
    %2823 = vmatprep.subr.mxu0 0.0
    %v2824 = vand.u32 %v38, 4294901760
    %v2825 = vsub.f32 %v38, %v2824
    %v2826 = vand.u32 %v2825, 4294901760
    %v2827 = vsub.f32 %v2825, %v2826
    %v2828 = vand.u32 %v2827, 4294901760
    %2829 = vmatpush1.msra.mxu0 %v2828
    %2830 = vmatprep.subr.mxu0 0.0
    %v2831 = vand.u32 %v39, 4294901760
    %v2832 = vsub.f32 %v39, %v2831
    %v2833 = vand.u32 %v2832, 4294901760
    %v2834 = vsub.f32 %v2832, %v2833
    %v2835 = vand.u32 %v2834, 4294901760
    %2836 = vmatpush1.msra.mxu0 %v2835
    %2837 = vmatprep.subr.mxu0 0.0
    %v2838 = vand.u32 %v40, 4294901760
    %v2839 = vsub.f32 %v40, %v2838
    %v2840 = vand.u32 %v2839, 4294901760
    %v2841 = vsub.f32 %v2839, %v2840
    %v2842 = vand.u32 %v2841, 4294901760
    %2843 = vmatpush1.msra.mxu0 %v2842
    %2844 = vmatprep.subr.mxu0 0.0
    %v2845 = vand.u32 %v41, 4294901760
    %v2846 = vsub.f32 %v41, %v2845
    %v2847 = vand.u32 %v2846, 4294901760
    %v2848 = vsub.f32 %v2846, %v2847
    %v2849 = vand.u32 %v2848, 4294901760
    %2850 = vmatpush1.msra.mxu0 %v2849
    %2851 = vmatprep.subr.mxu0 0.0
    %v2852 = vand.u32 %v42, 4294901760
    %v2853 = vsub.f32 %v42, %v2852
    %v2854 = vand.u32 %v2853, 4294901760
    %v2855 = vsub.f32 %v2853, %v2854
    %v2856 = vand.u32 %v2855, 4294901760
    %2857 = vmatpush1.msra.mxu0 %v2856
    %2858 = vmatprep.subr.mxu0 0.0
    %v2859 = vand.u32 %v43, 4294901760
    %v2860 = vsub.f32 %v43, %v2859
    %v2861 = vand.u32 %v2860, 4294901760
    %v2862 = vsub.f32 %v2860, %v2861
    %v2863 = vand.u32 %v2862, 4294901760
    %2864 = vmatpush1.msra.mxu0 %v2863
    %2865 = vmatprep.subr.mxu0 0.0
    %v2866 = vand.u32 %v44, 4294901760
    %v2867 = vsub.f32 %v44, %v2866
    %v2868 = vand.u32 %v2867, 4294901760
    %v2869 = vsub.f32 %v2867, %v2868
    %v2870 = vand.u32 %v2869, 4294901760
    %2871 = vmatpush1.msra.mxu0 %v2870
    %2872 = vmatprep.subr.mxu0 0.0
    %v2873 = vand.u32 %v45, 4294901760
    %v2874 = vsub.f32 %v45, %v2873
    %v2875 = vand.u32 %v2874, 4294901760
    %v2876 = vsub.f32 %v2874, %v2875
    %v2877 = vand.u32 %v2876, 4294901760
    %2878 = vmatpush1.msra.mxu0 %v2877
    %2879 = vmatprep.subr.mxu0 0.0
    %v2880 = vand.u32 %v46, 4294901760
    %v2881 = vsub.f32 %v46, %v2880
    %v2882 = vand.u32 %v2881, 4294901760
    %v2883 = vsub.f32 %v2881, %v2882
    %v2884 = vand.u32 %v2883, 4294901760
    %2885 = vmatpush1.msra.mxu0 %v2884
    %2886 = vmatprep.subr.mxu0 0.0
    %v2887 = vand.u32 %v47, 4294901760
    %v2888 = vsub.f32 %v47, %v2887
    %v2889 = vand.u32 %v2888, 4294901760
    %v2890 = vsub.f32 %v2888, %v2889
    %v2891 = vand.u32 %v2890, 4294901760
    %2892 = vmatpush1.msra.mxu0 %v2891
    %2893 = vmatprep.subr.mxu0 0.0
    %v2894 = vand.u32 %v48, 4294901760
    %v2895 = vsub.f32 %v48, %v2894
    %v2896 = vand.u32 %v2895, 4294901760
    %v2897 = vsub.f32 %v2895, %v2896
    %v2898 = vand.u32 %v2897, 4294901760
    %2899 = vmatpush1.msra.mxu0 %v2898
    %2900 = vmatprep.subr.mxu0 0.0
    %v2901 = vand.u32 %v49, 4294901760
    %v2902 = vsub.f32 %v49, %v2901
    %v2903 = vand.u32 %v2902, 4294901760
    %v2904 = vsub.f32 %v2902, %v2903
    %v2905 = vand.u32 %v2904, 4294901760
    %2906 = vmatpush1.msra.mxu0 %v2905
    %2907 = vmatprep.subr.mxu0 0.0
    %v2908 = vand.u32 %v50, 4294901760
    %v2909 = vsub.f32 %v50, %v2908
    %v2910 = vand.u32 %v2909, 4294901760
    %v2911 = vsub.f32 %v2909, %v2910
    %v2912 = vand.u32 %v2911, 4294901760
    %2913 = vmatpush1.msra.mxu0 %v2912
    %2914 = vmatprep.subr.mxu0 0.0
    %v2915 = vand.u32 %v51, 4294901760
    %v2916 = vsub.f32 %v51, %v2915
    %v2917 = vand.u32 %v2916, 4294901760
    %v2918 = vsub.f32 %v2916, %v2917
    %v2919 = vand.u32 %v2918, 4294901760
    %2920 = vmatpush1.msra.mxu0 %v2919
    %2921 = vmatprep.subr.mxu0 0.0
    %v2922 = vand.u32 %v52, 4294901760
    %v2923 = vsub.f32 %v52, %v2922
    %v2924 = vand.u32 %v2923, 4294901760
    %v2925 = vsub.f32 %v2923, %v2924
    %v2926 = vand.u32 %v2925, 4294901760
    %2927 = vmatpush1.msra.mxu0 %v2926
    %2928 = vmatprep.subr.mxu0 0.0
    %2929 = vmatpush1.msra.mxu0 0.0
    %2930 = vmatprep.subr.mxu0 0.0
    %2931 = vmatpush1.msra.mxu0 0.0
    %2932 = vmatprep.subr.mxu0 0.0
    %2933 = vmatpush1.msra.mxu0 0.0
    %2934 = vmatprep.subr.mxu0 0.0
    %2935 = vmatpush1.msra.mxu0 0.0
    %2936 = vmatprep.subr.mxu0 0.0
    %2937 = vmatpush1.msra.mxu0 0.0
    %2938 = vmatprep.subr.mxu0 0.0
    %2939 = vmatpush1.msra.mxu0 0.0
    %2940 = vmatprep.subr.mxu0 0.0
    %2941 = vmatpush1.msra.mxu0 0.0
    %2942 = vmatprep.subr.mxu0 0.0
    %2943 = vmatpush1.msra.mxu0 0.0
    %2944 = vmatprep.subr.mxu0 0.0
    %2945 = vmatpush1.msra.mxu0 0.0
    %2946 = vmatprep.subr.mxu0 0.0
    %2947 = vmatpush1.msra.mxu0 0.0
    %2948 = vmatprep.subr.mxu0 0.0
    %2949 = vmatpush1.msra.mxu0 0.0
    %2950 = vmatprep.subr.mxu0 0.0
    %2951 = vmatpush1.msra.mxu0 0.0
    %2952 = vmatprep.subr.mxu0 0.0
    %2953 = vmatpush1.msra.mxu0 0.0
    %2954 = vmatprep.subr.mxu0 0.0
    %2955 = vmatpush1.msra.mxu0 0.0
    %2956 = vmatprep.subr.mxu0 0.0
    %2957 = vmatpush1.msra.mxu0 0.0
    %2958 = vmatprep.subr.mxu0 0.0
    %2959 = vmatpush1.msra.mxu0 0.0
    %2960 = vmatprep.mubr.f32.mxu0 0.0
    %v2961 = vand.u32 %v2722, 4294901760
    %2962 = vmatmul.mubr.f32.gmra.mrb[0].mxu0 %v2961
    %v2963 = vpop.f32.mrb[0].mxu0
    %v2964 = vadd.f32 %v2813, %v2963
    %v2965 = vpop.f32.mrb[0].mxu0
    %2966 = vdwg.mxu0
    %2967 = vmatprep.subr.mxu0 0.0
    %v2968 = vand.u32 %v37, 4294901760
    %v2969 = vsub.f32 %v37, %v2968
    %2970 = vmatpush1.msra.mxu0 %v2969
    %2971 = vmatprep.subr.mxu0 0.0
    %v2972 = vand.u32 %v38, 4294901760
    %v2973 = vsub.f32 %v38, %v2972
    %2974 = vmatpush1.msra.mxu0 %v2973
    %2975 = vmatprep.subr.mxu0 0.0
    %v2976 = vand.u32 %v39, 4294901760
    %v2977 = vsub.f32 %v39, %v2976
    %2978 = vmatpush1.msra.mxu0 %v2977
    %2979 = vmatprep.subr.mxu0 0.0
    %v2980 = vand.u32 %v40, 4294901760
    %v2981 = vsub.f32 %v40, %v2980
    %2982 = vmatpush1.msra.mxu0 %v2981
    %2983 = vmatprep.subr.mxu0 0.0
    %v2984 = vand.u32 %v41, 4294901760
    %v2985 = vsub.f32 %v41, %v2984
    %2986 = vmatpush1.msra.mxu0 %v2985
    %2987 = vmatprep.subr.mxu0 0.0
    %v2988 = vand.u32 %v42, 4294901760
    %v2989 = vsub.f32 %v42, %v2988
    %2990 = vmatpush1.msra.mxu0 %v2989
    %2991 = vmatprep.subr.mxu0 0.0
    %v2992 = vand.u32 %v43, 4294901760
    %v2993 = vsub.f32 %v43, %v2992
    %2994 = vmatpush1.msra.mxu0 %v2993
    %2995 = vmatprep.subr.mxu0 0.0
    %v2996 = vand.u32 %v44, 4294901760
    %v2997 = vsub.f32 %v44, %v2996
    %2998 = vmatpush1.msra.mxu0 %v2997
    %2999 = vmatprep.subr.mxu0 0.0
    %v3000 = vand.u32 %v45, 4294901760
    %v3001 = vsub.f32 %v45, %v3000
    %3002 = vmatpush1.msra.mxu0 %v3001
    %3003 = vmatprep.subr.mxu0 0.0
    %v3004 = vand.u32 %v46, 4294901760
    %v3005 = vsub.f32 %v46, %v3004
    %3006 = vmatpush1.msra.mxu0 %v3005
    %3007 = vmatprep.subr.mxu0 0.0
    %v3008 = vand.u32 %v47, 4294901760
    %v3009 = vsub.f32 %v47, %v3008
    %3010 = vmatpush1.msra.mxu0 %v3009
    %3011 = vmatprep.subr.mxu0 0.0
    %v3012 = vand.u32 %v48, 4294901760
    %v3013 = vsub.f32 %v48, %v3012
    %3014 = vmatpush1.msra.mxu0 %v3013
    %3015 = vmatprep.subr.mxu0 0.0
    %v3016 = vand.u32 %v49, 4294901760
    %v3017 = vsub.f32 %v49, %v3016
    %3018 = vmatpush1.msra.mxu0 %v3017
    %3019 = vmatprep.subr.mxu0 0.0
    %v3020 = vand.u32 %v50, 4294901760
    %v3021 = vsub.f32 %v50, %v3020
    %3022 = vmatpush1.msra.mxu0 %v3021
    %3023 = vmatprep.subr.mxu0 0.0
    %v3024 = vand.u32 %v51, 4294901760
    %v3025 = vsub.f32 %v51, %v3024
    %3026 = vmatpush1.msra.mxu0 %v3025
    %3027 = vmatprep.subr.mxu0 0.0
    %v3028 = vand.u32 %v52, 4294901760
    %v3029 = vsub.f32 %v52, %v3028
    %3030 = vmatpush1.msra.mxu0 %v3029
    %3031 = vmatprep.subr.mxu0 0.0
    %3032 = vmatpush1.msra.mxu0 0.0
    %3033 = vmatprep.subr.mxu0 0.0
    %3034 = vmatpush1.msra.mxu0 0.0
    %3035 = vmatprep.subr.mxu0 0.0
    %3036 = vmatpush1.msra.mxu0 0.0
    %3037 = vmatprep.subr.mxu0 0.0
    %3038 = vmatpush1.msra.mxu0 0.0
    %3039 = vmatprep.subr.mxu0 0.0
    %3040 = vmatpush1.msra.mxu0 0.0
    %3041 = vmatprep.subr.mxu0 0.0
    %3042 = vmatpush1.msra.mxu0 0.0
    %3043 = vmatprep.subr.mxu0 0.0
    %3044 = vmatpush1.msra.mxu0 0.0
    %3045 = vmatprep.subr.mxu0 0.0
    %3046 = vmatpush1.msra.mxu0 0.0
    %3047 = vmatprep.subr.mxu0 0.0
    %3048 = vmatpush1.msra.mxu0 0.0
    %3049 = vmatprep.subr.mxu0 0.0
    %3050 = vmatpush1.msra.mxu0 0.0
    %3051 = vmatprep.subr.mxu0 0.0
    %3052 = vmatpush1.msra.mxu0 0.0
    %3053 = vmatprep.subr.mxu0 0.0
    %3054 = vmatpush1.msra.mxu0 0.0
    %3055 = vmatprep.subr.mxu0 0.0
    %3056 = vmatpush1.msra.mxu0 0.0
    %3057 = vmatprep.subr.mxu0 0.0
    %3058 = vmatpush1.msra.mxu0 0.0
    %3059 = vmatprep.subr.mxu0 0.0
    %3060 = vmatpush1.msra.mxu0 0.0
    %3061 = vmatprep.subr.mxu0 0.0
    %3062 = vmatpush1.msra.mxu0 0.0
    %3063 = vmatprep.mubr.f32.mxu0 0.0
    %v3064 = vand.u32 %v2722, 4294901760
    %v3065 = vsub.f32 %v2722, %v3064
    %3066 = vmatmul.mubr.f32.gmra.mrb[0].mxu0 %v3065
    %v3067 = vpop.f32.mrb[0].mxu0
    %v3068 = vadd.f32 %v2964, %v3067
    %v3069 = vpop.f32.mrb[0].mxu0
    %3070 = vdwg.mxu0
    %3071 = vmatprep.subr.mxu0 0.0
    %v3072 = vand.u32 %v37, 4294901760
    %3073 = vmatpush1.msra.mxu0 %v3072
    %3074 = vmatprep.subr.mxu0 0.0
    %v3075 = vand.u32 %v38, 4294901760
    %3076 = vmatpush1.msra.mxu0 %v3075
    %3077 = vmatprep.subr.mxu0 0.0
    %v3078 = vand.u32 %v39, 4294901760
    %3079 = vmatpush1.msra.mxu0 %v3078
    %3080 = vmatprep.subr.mxu0 0.0
    %v3081 = vand.u32 %v40, 4294901760
    %3082 = vmatpush1.msra.mxu0 %v3081
    %3083 = vmatprep.subr.mxu0 0.0
    %v3084 = vand.u32 %v41, 4294901760
    %3085 = vmatpush1.msra.mxu0 %v3084
    %3086 = vmatprep.subr.mxu0 0.0
    %v3087 = vand.u32 %v42, 4294901760
    %3088 = vmatpush1.msra.mxu0 %v3087
    %3089 = vmatprep.subr.mxu0 0.0
    %v3090 = vand.u32 %v43, 4294901760
    %3091 = vmatpush1.msra.mxu0 %v3090
    %3092 = vmatprep.subr.mxu0 0.0
    %v3093 = vand.u32 %v44, 4294901760
    %3094 = vmatpush1.msra.mxu0 %v3093
    %3095 = vmatprep.subr.mxu0 0.0
    %v3096 = vand.u32 %v45, 4294901760
    %3097 = vmatpush1.msra.mxu0 %v3096
    %3098 = vmatprep.subr.mxu0 0.0
    %v3099 = vand.u32 %v46, 4294901760
    %3100 = vmatpush1.msra.mxu0 %v3099
    %3101 = vmatprep.subr.mxu0 0.0
    %v3102 = vand.u32 %v47, 4294901760
    %3103 = vmatpush1.msra.mxu0 %v3102
    %3104 = vmatprep.subr.mxu0 0.0
    %v3105 = vand.u32 %v48, 4294901760
    %3106 = vmatpush1.msra.mxu0 %v3105
    %3107 = vmatprep.subr.mxu0 0.0
    %v3108 = vand.u32 %v49, 4294901760
    %3109 = vmatpush1.msra.mxu0 %v3108
    %3110 = vmatprep.subr.mxu0 0.0
    %v3111 = vand.u32 %v50, 4294901760
    %3112 = vmatpush1.msra.mxu0 %v3111
    %3113 = vmatprep.subr.mxu0 0.0
    %v3114 = vand.u32 %v51, 4294901760
    %3115 = vmatpush1.msra.mxu0 %v3114
    %3116 = vmatprep.subr.mxu0 0.0
    %v3117 = vand.u32 %v52, 4294901760
    %3118 = vmatpush1.msra.mxu0 %v3117
    %3119 = vmatprep.subr.mxu0 0.0
    %3120 = vmatpush1.msra.mxu0 0.0
    %3121 = vmatprep.subr.mxu0 0.0
    %3122 = vmatpush1.msra.mxu0 0.0
    %3123 = vmatprep.subr.mxu0 0.0
    %3124 = vmatpush1.msra.mxu0 0.0
    %3125 = vmatprep.subr.mxu0 0.0
    %3126 = vmatpush1.msra.mxu0 0.0
    %3127 = vmatprep.subr.mxu0 0.0
    %3128 = vmatpush1.msra.mxu0 0.0
    %3129 = vmatprep.subr.mxu0 0.0
    %3130 = vmatpush1.msra.mxu0 0.0
    %3131 = vmatprep.subr.mxu0 0.0
    %3132 = vmatpush1.msra.mxu0 0.0
    %3133 = vmatprep.subr.mxu0 0.0
    %3134 = vmatpush1.msra.mxu0 0.0
    %3135 = vmatprep.subr.mxu0 0.0
    %3136 = vmatpush1.msra.mxu0 0.0
    %3137 = vmatprep.subr.mxu0 0.0
    %3138 = vmatpush1.msra.mxu0 0.0
    %3139 = vmatprep.subr.mxu0 0.0
    %3140 = vmatpush1.msra.mxu0 0.0
    %3141 = vmatprep.subr.mxu0 0.0
    %3142 = vmatpush1.msra.mxu0 0.0
    %3143 = vmatprep.subr.mxu0 0.0
    %3144 = vmatpush1.msra.mxu0 0.0
    %3145 = vmatprep.subr.mxu0 0.0
    %3146 = vmatpush1.msra.mxu0 0.0
    %3147 = vmatprep.subr.mxu0 0.0
    %3148 = vmatpush1.msra.mxu0 0.0
    %3149 = vmatprep.subr.mxu0 0.0
    %3150 = vmatpush1.msra.mxu0 0.0
    %3151 = vmatprep.mubr.f32.mxu0 0.0
    %v3152 = vand.u32 %v2722, 4294901760
    %v3153 = vsub.f32 %v2722, %v3152
    %v3154 = vand.u32 %v3153, 4294901760
    %3155 = vmatmul.mubr.f32.gmra.mrb[0].mxu0 %v3154
    %v3156 = vpop.f32.mrb[0].mxu0
    %v3157 = vadd.f32 %v3068, %v3156
    %v3158 = vpop.f32.mrb[0].mxu0
    %3159 = vdwg.mxu0
    %3160 = vmatprep.subr.mxu0 0.0
    %v3161 = vand.u32 %v37, 4294901760
    %v3162 = vsub.f32 %v37, %v3161
    %v3163 = vand.u32 %v3162, 4294901760
    %3164 = vmatpush1.msra.mxu0 %v3163
    %3165 = vmatprep.subr.mxu0 0.0
    %v3166 = vand.u32 %v38, 4294901760
    %v3167 = vsub.f32 %v38, %v3166
    %v3168 = vand.u32 %v3167, 4294901760
    %3169 = vmatpush1.msra.mxu0 %v3168
    %3170 = vmatprep.subr.mxu0 0.0
    %v3171 = vand.u32 %v39, 4294901760
    %v3172 = vsub.f32 %v39, %v3171
    %v3173 = vand.u32 %v3172, 4294901760
    %3174 = vmatpush1.msra.mxu0 %v3173
    %3175 = vmatprep.subr.mxu0 0.0
    %v3176 = vand.u32 %v40, 4294901760
    %v3177 = vsub.f32 %v40, %v3176
    %v3178 = vand.u32 %v3177, 4294901760
    %3179 = vmatpush1.msra.mxu0 %v3178
    %3180 = vmatprep.subr.mxu0 0.0
    %v3181 = vand.u32 %v41, 4294901760
    %v3182 = vsub.f32 %v41, %v3181
    %v3183 = vand.u32 %v3182, 4294901760
    %3184 = vmatpush1.msra.mxu0 %v3183
    %3185 = vmatprep.subr.mxu0 0.0
    %v3186 = vand.u32 %v42, 4294901760
    %v3187 = vsub.f32 %v42, %v3186
    %v3188 = vand.u32 %v3187, 4294901760
    %3189 = vmatpush1.msra.mxu0 %v3188
    %3190 = vmatprep.subr.mxu0 0.0
    %v3191 = vand.u32 %v43, 4294901760
    %v3192 = vsub.f32 %v43, %v3191
    %v3193 = vand.u32 %v3192, 4294901760
    %3194 = vmatpush1.msra.mxu0 %v3193
    %3195 = vmatprep.subr.mxu0 0.0
    %v3196 = vand.u32 %v44, 4294901760
    %v3197 = vsub.f32 %v44, %v3196
    %v3198 = vand.u32 %v3197, 4294901760
    %3199 = vmatpush1.msra.mxu0 %v3198
    %3200 = vmatprep.subr.mxu0 0.0
    %v3201 = vand.u32 %v45, 4294901760
    %v3202 = vsub.f32 %v45, %v3201
    %v3203 = vand.u32 %v3202, 4294901760
    %3204 = vmatpush1.msra.mxu0 %v3203
    %3205 = vmatprep.subr.mxu0 0.0
    %v3206 = vand.u32 %v46, 4294901760
    %v3207 = vsub.f32 %v46, %v3206
    %v3208 = vand.u32 %v3207, 4294901760
    %3209 = vmatpush1.msra.mxu0 %v3208
    %3210 = vmatprep.subr.mxu0 0.0
    %v3211 = vand.u32 %v47, 4294901760
    %v3212 = vsub.f32 %v47, %v3211
    %v3213 = vand.u32 %v3212, 4294901760
    %3214 = vmatpush1.msra.mxu0 %v3213
    %3215 = vmatprep.subr.mxu0 0.0
    %v3216 = vand.u32 %v48, 4294901760
    %v3217 = vsub.f32 %v48, %v3216
    %v3218 = vand.u32 %v3217, 4294901760
    %3219 = vmatpush1.msra.mxu0 %v3218
    %3220 = vmatprep.subr.mxu0 0.0
    %v3221 = vand.u32 %v49, 4294901760
    %v3222 = vsub.f32 %v49, %v3221
    %v3223 = vand.u32 %v3222, 4294901760
    %3224 = vmatpush1.msra.mxu0 %v3223
    %3225 = vmatprep.subr.mxu0 0.0
    %v3226 = vand.u32 %v50, 4294901760
    %v3227 = vsub.f32 %v50, %v3226
    %v3228 = vand.u32 %v3227, 4294901760
    %3229 = vmatpush1.msra.mxu0 %v3228
    %3230 = vmatprep.subr.mxu0 0.0
    %v3231 = vand.u32 %v51, 4294901760
    %v3232 = vsub.f32 %v51, %v3231
    %v3233 = vand.u32 %v3232, 4294901760
    %3234 = vmatpush1.msra.mxu0 %v3233
    %3235 = vmatprep.subr.mxu0 0.0
    %v3236 = vand.u32 %v52, 4294901760
    %v3237 = vsub.f32 %v52, %v3236
    %v3238 = vand.u32 %v3237, 4294901760
    %3239 = vmatpush1.msra.mxu0 %v3238
    %3240 = vmatprep.subr.mxu0 0.0
    %3241 = vmatpush1.msra.mxu0 0.0
    %3242 = vmatprep.subr.mxu0 0.0
    %3243 = vmatpush1.msra.mxu0 0.0
    %3244 = vmatprep.subr.mxu0 0.0
    %3245 = vmatpush1.msra.mxu0 0.0
    %3246 = vmatprep.subr.mxu0 0.0
    %3247 = vmatpush1.msra.mxu0 0.0
    %3248 = vmatprep.subr.mxu0 0.0
    %3249 = vmatpush1.msra.mxu0 0.0
    %3250 = vmatprep.subr.mxu0 0.0
    %3251 = vmatpush1.msra.mxu0 0.0
    %3252 = vmatprep.subr.mxu0 0.0
    %3253 = vmatpush1.msra.mxu0 0.0
    %3254 = vmatprep.subr.mxu0 0.0
    %3255 = vmatpush1.msra.mxu0 0.0
    %3256 = vmatprep.subr.mxu0 0.0
    %3257 = vmatpush1.msra.mxu0 0.0
    %3258 = vmatprep.subr.mxu0 0.0
    %3259 = vmatpush1.msra.mxu0 0.0
    %3260 = vmatprep.subr.mxu0 0.0
    %3261 = vmatpush1.msra.mxu0 0.0
    %3262 = vmatprep.subr.mxu0 0.0
    %3263 = vmatpush1.msra.mxu0 0.0
    %3264 = vmatprep.subr.mxu0 0.0
    %3265 = vmatpush1.msra.mxu0 0.0
    %3266 = vmatprep.subr.mxu0 0.0
    %3267 = vmatpush1.msra.mxu0 0.0
    %3268 = vmatprep.subr.mxu0 0.0
    %3269 = vmatpush1.msra.mxu0 0.0
    %3270 = vmatprep.subr.mxu0 0.0
    %3271 = vmatpush1.msra.mxu0 0.0
    %3272 = vmatprep.mubr.f32.mxu0 0.0
    %v3273 = vand.u32 %v2722, 4294901760
    %3274 = vmatmul.mubr.f32.gmra.mrb[0].mxu0 %v3273
    %v3275 = vpop.f32.mrb[0].mxu0
    %v3276 = vadd.f32 %v3157, %v3275
    %v3277 = vpop.f32.mrb[0].mxu0
    %3278 = vdwg.mxu0
    %3279 = vmatprep.subr.mxu0 0.0
    %v3280 = vand.u32 %v37, 4294901760
    %3281 = vmatpush1.msra.mxu0 %v3280
    %3282 = vmatprep.subr.mxu0 0.0
    %v3283 = vand.u32 %v38, 4294901760
    %3284 = vmatpush1.msra.mxu0 %v3283
    %3285 = vmatprep.subr.mxu0 0.0
    %v3286 = vand.u32 %v39, 4294901760
    %3287 = vmatpush1.msra.mxu0 %v3286
    %3288 = vmatprep.subr.mxu0 0.0
    %v3289 = vand.u32 %v40, 4294901760
    %3290 = vmatpush1.msra.mxu0 %v3289
    %3291 = vmatprep.subr.mxu0 0.0
    %v3292 = vand.u32 %v41, 4294901760
    %3293 = vmatpush1.msra.mxu0 %v3292
    %3294 = vmatprep.subr.mxu0 0.0
    %v3295 = vand.u32 %v42, 4294901760
    %3296 = vmatpush1.msra.mxu0 %v3295
    %3297 = vmatprep.subr.mxu0 0.0
    %v3298 = vand.u32 %v43, 4294901760
    %3299 = vmatpush1.msra.mxu0 %v3298
    %3300 = vmatprep.subr.mxu0 0.0
    %v3301 = vand.u32 %v44, 4294901760
    %3302 = vmatpush1.msra.mxu0 %v3301
    %3303 = vmatprep.subr.mxu0 0.0
    %v3304 = vand.u32 %v45, 4294901760
    %3305 = vmatpush1.msra.mxu0 %v3304
    %3306 = vmatprep.subr.mxu0 0.0
    %v3307 = vand.u32 %v46, 4294901760
    %3308 = vmatpush1.msra.mxu0 %v3307
    %3309 = vmatprep.subr.mxu0 0.0
    %v3310 = vand.u32 %v47, 4294901760
    %3311 = vmatpush1.msra.mxu0 %v3310
    %3312 = vmatprep.subr.mxu0 0.0
    %v3313 = vand.u32 %v48, 4294901760
    %3314 = vmatpush1.msra.mxu0 %v3313
    %3315 = vmatprep.subr.mxu0 0.0
    %v3316 = vand.u32 %v49, 4294901760
    %3317 = vmatpush1.msra.mxu0 %v3316
    %3318 = vmatprep.subr.mxu0 0.0
    %v3319 = vand.u32 %v50, 4294901760
    %3320 = vmatpush1.msra.mxu0 %v3319
    %3321 = vmatprep.subr.mxu0 0.0
    %v3322 = vand.u32 %v51, 4294901760
    %3323 = vmatpush1.msra.mxu0 %v3322
    %3324 = vmatprep.subr.mxu0 0.0
    %v3325 = vand.u32 %v52, 4294901760
    %3326 = vmatpush1.msra.mxu0 %v3325
    %3327 = vmatprep.subr.mxu0 0.0
    %3328 = vmatpush1.msra.mxu0 0.0
    %3329 = vmatprep.subr.mxu0 0.0
    %3330 = vmatpush1.msra.mxu0 0.0
    %3331 = vmatprep.subr.mxu0 0.0
    %3332 = vmatpush1.msra.mxu0 0.0
    %3333 = vmatprep.subr.mxu0 0.0
    %3334 = vmatpush1.msra.mxu0 0.0
    %3335 = vmatprep.subr.mxu0 0.0
    %3336 = vmatpush1.msra.mxu0 0.0
    %3337 = vmatprep.subr.mxu0 0.0
    %3338 = vmatpush1.msra.mxu0 0.0
    %3339 = vmatprep.subr.mxu0 0.0
    %3340 = vmatpush1.msra.mxu0 0.0
    %3341 = vmatprep.subr.mxu0 0.0
    %3342 = vmatpush1.msra.mxu0 0.0
    %3343 = vmatprep.subr.mxu0 0.0
    %3344 = vmatpush1.msra.mxu0 0.0
    %3345 = vmatprep.subr.mxu0 0.0
    %3346 = vmatpush1.msra.mxu0 0.0
    %3347 = vmatprep.subr.mxu0 0.0
    %3348 = vmatpush1.msra.mxu0 0.0
    %3349 = vmatprep.subr.mxu0 0.0
    %3350 = vmatpush1.msra.mxu0 0.0
    %3351 = vmatprep.subr.mxu0 0.0
    %3352 = vmatpush1.msra.mxu0 0.0
    %3353 = vmatprep.subr.mxu0 0.0
    %3354 = vmatpush1.msra.mxu0 0.0
    %3355 = vmatprep.subr.mxu0 0.0
    %3356 = vmatpush1.msra.mxu0 0.0
    %3357 = vmatprep.subr.mxu0 0.0
    %3358 = vmatpush1.msra.mxu0 0.0
    %3359 = vmatprep.mubr.f32.mxu0 0.0
    %v3360 = vand.u32 %v2722, 4294901760
    %3361 = vmatmul.mubr.f32.gmra.mrb[0].mxu0 %v3360
    %v3362 = vpop.f32.mrb[0].mxu0
    %v3363 = vadd.f32 %v3276, %v3362
    %v3364 = vpop.f32.mrb[0].mxu0
    %3365 = vdwg.mxu0
    %v3366 = vsub.f32 %v3363, %v2261
    %v3367 = vmul.f32 %v55, %v55
    %v3368 = vmul.f32 %v56, %v56
    %3369 = vmatprep.subr.mxu0 0.0
    %v3370 = vand.u32 %v3367, 4294901760
    %3371 = vmatpush1.msra.mxu0 %v3370
    %3372 = vmatprep.subr.mxu0 0.0
    %v3373 = vand.u32 %v3368, 4294901760
    %3374 = vmatpush1.msra.mxu0 %v3373
    %3375 = vmatprep.subr.mxu0 0.0
    %3376 = vmatpush1.msra.mxu0 0.0
    %3377 = vmatprep.subr.mxu0 0.0
    %3378 = vmatpush1.msra.mxu0 0.0
    %3379 = vmatprep.subr.mxu0 0.0
    %3380 = vmatpush1.msra.mxu0 0.0
    %3381 = vmatprep.subr.mxu0 0.0
    %3382 = vmatpush1.msra.mxu0 0.0
    %3383 = vmatprep.subr.mxu0 0.0
    %3384 = vmatpush1.msra.mxu0 0.0
    %3385 = vmatprep.subr.mxu0 0.0
    %3386 = vmatpush1.msra.mxu0 0.0
    %3387 = vmatprep.subr.mxu0 0.0
    %3388 = vmatpush1.msra.mxu0 0.0
    %3389 = vmatprep.subr.mxu0 0.0
    %3390 = vmatpush1.msra.mxu0 0.0
    %3391 = vmatprep.subr.mxu0 0.0
    %3392 = vmatpush1.msra.mxu0 0.0
    %3393 = vmatprep.subr.mxu0 0.0
    %3394 = vmatpush1.msra.mxu0 0.0
    %3395 = vmatprep.subr.mxu0 0.0
    %3396 = vmatpush1.msra.mxu0 0.0
    %3397 = vmatprep.subr.mxu0 0.0
    %3398 = vmatpush1.msra.mxu0 0.0
    %3399 = vmatprep.subr.mxu0 0.0
    %3400 = vmatpush1.msra.mxu0 0.0
    %3401 = vmatprep.subr.mxu0 0.0
    %3402 = vmatpush1.msra.mxu0 0.0
    %3403 = vmatprep.subr.mxu0 0.0
    %3404 = vmatpush1.msra.mxu0 0.0
    %3405 = vmatprep.subr.mxu0 0.0
    %3406 = vmatpush1.msra.mxu0 0.0
    %3407 = vmatprep.subr.mxu0 0.0
    %3408 = vmatpush1.msra.mxu0 0.0
    %3409 = vmatprep.subr.mxu0 0.0
    %3410 = vmatpush1.msra.mxu0 0.0
    %3411 = vmatprep.subr.mxu0 0.0
    %3412 = vmatpush1.msra.mxu0 0.0
    %3413 = vmatprep.subr.mxu0 0.0
    %3414 = vmatpush1.msra.mxu0 0.0
    %3415 = vmatprep.subr.mxu0 0.0
    %3416 = vmatpush1.msra.mxu0 0.0
    %3417 = vmatprep.subr.mxu0 0.0
    %3418 = vmatpush1.msra.mxu0 0.0
    %3419 = vmatprep.subr.mxu0 0.0
    %3420 = vmatpush1.msra.mxu0 0.0
    %3421 = vmatprep.subr.mxu0 0.0
    %3422 = vmatpush1.msra.mxu0 0.0
    %3423 = vmatprep.subr.mxu0 0.0
    %3424 = vmatpush1.msra.mxu0 0.0
    %3425 = vmatprep.subr.mxu0 0.0
    %3426 = vmatpush1.msra.mxu0 0.0
    %3427 = vmatprep.subr.mxu0 0.0
    %3428 = vmatpush1.msra.mxu0 0.0
    %3429 = vmatprep.subr.mxu0 0.0
    %3430 = vmatpush1.msra.mxu0 0.0
    %3431 = vmatprep.subr.mxu0 0.0
    %3432 = vmatpush1.msra.mxu0 0.0
    %3433 = vmatprep.subr.mxu0 0.0
    %3434 = vmatpush1.msra.mxu0 0.0
    %3435 = vmatprep.mubr.f32.mxu0 0.0
    %v3436 = vand.u32 %v59, 4294901760
    %v3437 = vsub.f32 %v59, %v3436
    %v3438 = vand.u32 %v3437, 4294901760
    %v3439 = vsub.f32 %v3437, %v3438
    %v3440 = vand.u32 %v3439, 4294901760
    %3441 = vmatmul.mubr.f32.gmra.mrb[0].mxu0 %v3440
    %v3442 = vpop.f32.mrb[0].mxu0
    %v3443 = vadd.f32 0.0, %v3442
    %v3444 = vpop.f32.mrb[0].mxu0
    %3445 = vdwg.mxu0
    %3446 = vmatprep.subr.mxu0 0.0
    %v3447 = vand.u32 %v3367, 4294901760
    %v3448 = vsub.f32 %v3367, %v3447
    %v3449 = vand.u32 %v3448, 4294901760
    %v3450 = vsub.f32 %v3448, %v3449
    %v3451 = vand.u32 %v3450, 4294901760
    %3452 = vmatpush1.msra.mxu0 %v3451
    %3453 = vmatprep.subr.mxu0 0.0
    %v3454 = vand.u32 %v3368, 4294901760
    %v3455 = vsub.f32 %v3368, %v3454
    %v3456 = vand.u32 %v3455, 4294901760
    %v3457 = vsub.f32 %v3455, %v3456
    %v3458 = vand.u32 %v3457, 4294901760
    %3459 = vmatpush1.msra.mxu0 %v3458
    %3460 = vmatprep.subr.mxu0 0.0
    %3461 = vmatpush1.msra.mxu0 0.0
    %3462 = vmatprep.subr.mxu0 0.0
    %3463 = vmatpush1.msra.mxu0 0.0
    %3464 = vmatprep.subr.mxu0 0.0
    %3465 = vmatpush1.msra.mxu0 0.0
    %3466 = vmatprep.subr.mxu0 0.0
    %3467 = vmatpush1.msra.mxu0 0.0
    %3468 = vmatprep.subr.mxu0 0.0
    %3469 = vmatpush1.msra.mxu0 0.0
    %3470 = vmatprep.subr.mxu0 0.0
    %3471 = vmatpush1.msra.mxu0 0.0
    %3472 = vmatprep.subr.mxu0 0.0
    %3473 = vmatpush1.msra.mxu0 0.0
    %3474 = vmatprep.subr.mxu0 0.0
    %3475 = vmatpush1.msra.mxu0 0.0
    %3476 = vmatprep.subr.mxu0 0.0
    %3477 = vmatpush1.msra.mxu0 0.0
    %3478 = vmatprep.subr.mxu0 0.0
    %3479 = vmatpush1.msra.mxu0 0.0
    %3480 = vmatprep.subr.mxu0 0.0
    %3481 = vmatpush1.msra.mxu0 0.0
    %3482 = vmatprep.subr.mxu0 0.0
    %3483 = vmatpush1.msra.mxu0 0.0
    %3484 = vmatprep.subr.mxu0 0.0
    %3485 = vmatpush1.msra.mxu0 0.0
    %3486 = vmatprep.subr.mxu0 0.0
    %3487 = vmatpush1.msra.mxu0 0.0
    %3488 = vmatprep.subr.mxu0 0.0
    %3489 = vmatpush1.msra.mxu0 0.0
    %3490 = vmatprep.subr.mxu0 0.0
    %3491 = vmatpush1.msra.mxu0 0.0
    %3492 = vmatprep.subr.mxu0 0.0
    %3493 = vmatpush1.msra.mxu0 0.0
    %3494 = vmatprep.subr.mxu0 0.0
    %3495 = vmatpush1.msra.mxu0 0.0
    %3496 = vmatprep.subr.mxu0 0.0
    %3497 = vmatpush1.msra.mxu0 0.0
    %3498 = vmatprep.subr.mxu0 0.0
    %3499 = vmatpush1.msra.mxu0 0.0
    %3500 = vmatprep.subr.mxu0 0.0
    %3501 = vmatpush1.msra.mxu0 0.0
    %3502 = vmatprep.subr.mxu0 0.0
    %3503 = vmatpush1.msra.mxu0 0.0
    %3504 = vmatprep.subr.mxu0 0.0
    %3505 = vmatpush1.msra.mxu0 0.0
    %3506 = vmatprep.subr.mxu0 0.0
    %3507 = vmatpush1.msra.mxu0 0.0
    %3508 = vmatprep.subr.mxu0 0.0
    %3509 = vmatpush1.msra.mxu0 0.0
    %3510 = vmatprep.subr.mxu0 0.0
    %3511 = vmatpush1.msra.mxu0 0.0
    %3512 = vmatprep.subr.mxu0 0.0
    %3513 = vmatpush1.msra.mxu0 0.0
    %3514 = vmatprep.subr.mxu0 0.0
    %3515 = vmatpush1.msra.mxu0 0.0
    %3516 = vmatprep.subr.mxu0 0.0
    %3517 = vmatpush1.msra.mxu0 0.0
    %3518 = vmatprep.subr.mxu0 0.0
    %3519 = vmatpush1.msra.mxu0 0.0
    %3520 = vmatprep.mubr.f32.mxu0 0.0
    %v3521 = vand.u32 %v59, 4294901760
    %3522 = vmatmul.mubr.f32.gmra.mrb[0].mxu0 %v3521
    %v3523 = vpop.f32.mrb[0].mxu0
    %v3524 = vadd.f32 %v3443, %v3523
    %v3525 = vpop.f32.mrb[0].mxu0
    %3526 = vdwg.mxu0
    %3527 = vmatprep.subr.mxu0 0.0
    %v3528 = vand.u32 %v3367, 4294901760
    %v3529 = vsub.f32 %v3367, %v3528
    %3530 = vmatpush1.msra.mxu0 %v3529
    %3531 = vmatprep.subr.mxu0 0.0
    %v3532 = vand.u32 %v3368, 4294901760
    %v3533 = vsub.f32 %v3368, %v3532
    %3534 = vmatpush1.msra.mxu0 %v3533
    %3535 = vmatprep.subr.mxu0 0.0
    %3536 = vmatpush1.msra.mxu0 0.0
    %3537 = vmatprep.subr.mxu0 0.0
    %3538 = vmatpush1.msra.mxu0 0.0
    %3539 = vmatprep.subr.mxu0 0.0
    %3540 = vmatpush1.msra.mxu0 0.0
    %3541 = vmatprep.subr.mxu0 0.0
    %3542 = vmatpush1.msra.mxu0 0.0
    %3543 = vmatprep.subr.mxu0 0.0
    %3544 = vmatpush1.msra.mxu0 0.0
    %3545 = vmatprep.subr.mxu0 0.0
    %3546 = vmatpush1.msra.mxu0 0.0
    %3547 = vmatprep.subr.mxu0 0.0
    %3548 = vmatpush1.msra.mxu0 0.0
    %3549 = vmatprep.subr.mxu0 0.0
    %3550 = vmatpush1.msra.mxu0 0.0
    %3551 = vmatprep.subr.mxu0 0.0
    %3552 = vmatpush1.msra.mxu0 0.0
    %3553 = vmatprep.subr.mxu0 0.0
    %3554 = vmatpush1.msra.mxu0 0.0
    %3555 = vmatprep.subr.mxu0 0.0
    %3556 = vmatpush1.msra.mxu0 0.0
    %3557 = vmatprep.subr.mxu0 0.0
    %3558 = vmatpush1.msra.mxu0 0.0
    %3559 = vmatprep.subr.mxu0 0.0
    %3560 = vmatpush1.msra.mxu0 0.0
    %3561 = vmatprep.subr.mxu0 0.0
    %3562 = vmatpush1.msra.mxu0 0.0
    %3563 = vmatprep.subr.mxu0 0.0
    %3564 = vmatpush1.msra.mxu0 0.0
    %3565 = vmatprep.subr.mxu0 0.0
    %3566 = vmatpush1.msra.mxu0 0.0
    %3567 = vmatprep.subr.mxu0 0.0
    %3568 = vmatpush1.msra.mxu0 0.0
    %3569 = vmatprep.subr.mxu0 0.0
    %3570 = vmatpush1.msra.mxu0 0.0
    %3571 = vmatprep.subr.mxu0 0.0
    %3572 = vmatpush1.msra.mxu0 0.0
    %3573 = vmatprep.subr.mxu0 0.0
    %3574 = vmatpush1.msra.mxu0 0.0
    %3575 = vmatprep.subr.mxu0 0.0
    %3576 = vmatpush1.msra.mxu0 0.0
    %3577 = vmatprep.subr.mxu0 0.0
    %3578 = vmatpush1.msra.mxu0 0.0
    %3579 = vmatprep.subr.mxu0 0.0
    %3580 = vmatpush1.msra.mxu0 0.0
    %3581 = vmatprep.subr.mxu0 0.0
    %3582 = vmatpush1.msra.mxu0 0.0
    %3583 = vmatprep.subr.mxu0 0.0
    %3584 = vmatpush1.msra.mxu0 0.0
    %3585 = vmatprep.subr.mxu0 0.0
    %3586 = vmatpush1.msra.mxu0 0.0
    %3587 = vmatprep.subr.mxu0 0.0
    %3588 = vmatpush1.msra.mxu0 0.0
    %3589 = vmatprep.subr.mxu0 0.0
    %3590 = vmatpush1.msra.mxu0 0.0
    %3591 = vmatprep.subr.mxu0 0.0
    %3592 = vmatpush1.msra.mxu0 0.0
    %3593 = vmatprep.subr.mxu0 0.0
    %3594 = vmatpush1.msra.mxu0 0.0
    %3595 = vmatprep.mubr.f32.mxu0 0.0
    %v3596 = vand.u32 %v59, 4294901760
    %v3597 = vsub.f32 %v59, %v3596
    %3598 = vmatmul.mubr.f32.gmra.mrb[0].mxu0 %v3597
    %v3599 = vpop.f32.mrb[0].mxu0
    %v3600 = vadd.f32 %v3524, %v3599
    %v3601 = vpop.f32.mrb[0].mxu0
    %3602 = vdwg.mxu0
    %3603 = vmatprep.subr.mxu0 0.0
    %v3604 = vand.u32 %v3367, 4294901760
    %3605 = vmatpush1.msra.mxu0 %v3604
    %3606 = vmatprep.subr.mxu0 0.0
    %v3607 = vand.u32 %v3368, 4294901760
    %3608 = vmatpush1.msra.mxu0 %v3607
    %3609 = vmatprep.subr.mxu0 0.0
    %3610 = vmatpush1.msra.mxu0 0.0
    %3611 = vmatprep.subr.mxu0 0.0
    %3612 = vmatpush1.msra.mxu0 0.0
    %3613 = vmatprep.subr.mxu0 0.0
    %3614 = vmatpush1.msra.mxu0 0.0
    %3615 = vmatprep.subr.mxu0 0.0
    %3616 = vmatpush1.msra.mxu0 0.0
    %3617 = vmatprep.subr.mxu0 0.0
    %3618 = vmatpush1.msra.mxu0 0.0
    %3619 = vmatprep.subr.mxu0 0.0
    %3620 = vmatpush1.msra.mxu0 0.0
    %3621 = vmatprep.subr.mxu0 0.0
    %3622 = vmatpush1.msra.mxu0 0.0
    %3623 = vmatprep.subr.mxu0 0.0
    %3624 = vmatpush1.msra.mxu0 0.0
    %3625 = vmatprep.subr.mxu0 0.0
    %3626 = vmatpush1.msra.mxu0 0.0
    %3627 = vmatprep.subr.mxu0 0.0
    %3628 = vmatpush1.msra.mxu0 0.0
    %3629 = vmatprep.subr.mxu0 0.0
    %3630 = vmatpush1.msra.mxu0 0.0
    %3631 = vmatprep.subr.mxu0 0.0
    %3632 = vmatpush1.msra.mxu0 0.0
    %3633 = vmatprep.subr.mxu0 0.0
    %3634 = vmatpush1.msra.mxu0 0.0
    %3635 = vmatprep.subr.mxu0 0.0
    %3636 = vmatpush1.msra.mxu0 0.0
    %3637 = vmatprep.subr.mxu0 0.0
    %3638 = vmatpush1.msra.mxu0 0.0
    %3639 = vmatprep.subr.mxu0 0.0
    %3640 = vmatpush1.msra.mxu0 0.0
    %3641 = vmatprep.subr.mxu0 0.0
    %3642 = vmatpush1.msra.mxu0 0.0
    %3643 = vmatprep.subr.mxu0 0.0
    %3644 = vmatpush1.msra.mxu0 0.0
    %3645 = vmatprep.subr.mxu0 0.0
    %3646 = vmatpush1.msra.mxu0 0.0
    %3647 = vmatprep.subr.mxu0 0.0
    %3648 = vmatpush1.msra.mxu0 0.0
    %3649 = vmatprep.subr.mxu0 0.0
    %3650 = vmatpush1.msra.mxu0 0.0
    %3651 = vmatprep.subr.mxu0 0.0
    %3652 = vmatpush1.msra.mxu0 0.0
    %3653 = vmatprep.subr.mxu0 0.0
    %3654 = vmatpush1.msra.mxu0 0.0
    %3655 = vmatprep.subr.mxu0 0.0
    %3656 = vmatpush1.msra.mxu0 0.0
    %3657 = vmatprep.subr.mxu0 0.0
    %3658 = vmatpush1.msra.mxu0 0.0
    %3659 = vmatprep.subr.mxu0 0.0
    %3660 = vmatpush1.msra.mxu0 0.0
    %3661 = vmatprep.subr.mxu0 0.0
    %3662 = vmatpush1.msra.mxu0 0.0
    %3663 = vmatprep.subr.mxu0 0.0
    %3664 = vmatpush1.msra.mxu0 0.0
    %3665 = vmatprep.subr.mxu0 0.0
    %3666 = vmatpush1.msra.mxu0 0.0
    %3667 = vmatprep.subr.mxu0 0.0
    %3668 = vmatpush1.msra.mxu0 0.0
    %3669 = vmatprep.mubr.f32.mxu0 0.0
    %v3670 = vand.u32 %v59, 4294901760
    %v3671 = vsub.f32 %v59, %v3670
    %v3672 = vand.u32 %v3671, 4294901760
    %3673 = vmatmul.mubr.f32.gmra.mrb[0].mxu0 %v3672
    %v3674 = vpop.f32.mrb[0].mxu0
    %v3675 = vadd.f32 %v3600, %v3674
    %v3676 = vpop.f32.mrb[0].mxu0
    %3677 = vdwg.mxu0
    %3678 = vmatprep.subr.mxu0 0.0
    %v3679 = vand.u32 %v3367, 4294901760
    %v3680 = vsub.f32 %v3367, %v3679
    %v3681 = vand.u32 %v3680, 4294901760
    %3682 = vmatpush1.msra.mxu0 %v3681
    %3683 = vmatprep.subr.mxu0 0.0
    %v3684 = vand.u32 %v3368, 4294901760
    %v3685 = vsub.f32 %v3368, %v3684
    %v3686 = vand.u32 %v3685, 4294901760
    %3687 = vmatpush1.msra.mxu0 %v3686
    %3688 = vmatprep.subr.mxu0 0.0
    %3689 = vmatpush1.msra.mxu0 0.0
    %3690 = vmatprep.subr.mxu0 0.0
    %3691 = vmatpush1.msra.mxu0 0.0
    %3692 = vmatprep.subr.mxu0 0.0
    %3693 = vmatpush1.msra.mxu0 0.0
    %3694 = vmatprep.subr.mxu0 0.0
    %3695 = vmatpush1.msra.mxu0 0.0
    %3696 = vmatprep.subr.mxu0 0.0
    %3697 = vmatpush1.msra.mxu0 0.0
    %3698 = vmatprep.subr.mxu0 0.0
    %3699 = vmatpush1.msra.mxu0 0.0
    %3700 = vmatprep.subr.mxu0 0.0
    %3701 = vmatpush1.msra.mxu0 0.0
    %3702 = vmatprep.subr.mxu0 0.0
    %3703 = vmatpush1.msra.mxu0 0.0
    %3704 = vmatprep.subr.mxu0 0.0
    %3705 = vmatpush1.msra.mxu0 0.0
    %3706 = vmatprep.subr.mxu0 0.0
    %3707 = vmatpush1.msra.mxu0 0.0
    %3708 = vmatprep.subr.mxu0 0.0
    %3709 = vmatpush1.msra.mxu0 0.0
    %3710 = vmatprep.subr.mxu0 0.0
    %3711 = vmatpush1.msra.mxu0 0.0
    %3712 = vmatprep.subr.mxu0 0.0
    %3713 = vmatpush1.msra.mxu0 0.0
    %3714 = vmatprep.subr.mxu0 0.0
    %3715 = vmatpush1.msra.mxu0 0.0
    %3716 = vmatprep.subr.mxu0 0.0
    %3717 = vmatpush1.msra.mxu0 0.0
    %3718 = vmatprep.subr.mxu0 0.0
    %3719 = vmatpush1.msra.mxu0 0.0
    %3720 = vmatprep.subr.mxu0 0.0
    %3721 = vmatpush1.msra.mxu0 0.0
    %3722 = vmatprep.subr.mxu0 0.0
    %3723 = vmatpush1.msra.mxu0 0.0
    %3724 = vmatprep.subr.mxu0 0.0
    %3725 = vmatpush1.msra.mxu0 0.0
    %3726 = vmatprep.subr.mxu0 0.0
    %3727 = vmatpush1.msra.mxu0 0.0
    %3728 = vmatprep.subr.mxu0 0.0
    %3729 = vmatpush1.msra.mxu0 0.0
    %3730 = vmatprep.subr.mxu0 0.0
    %3731 = vmatpush1.msra.mxu0 0.0
    %3732 = vmatprep.subr.mxu0 0.0
    %3733 = vmatpush1.msra.mxu0 0.0
    %3734 = vmatprep.subr.mxu0 0.0
    %3735 = vmatpush1.msra.mxu0 0.0
    %3736 = vmatprep.subr.mxu0 0.0
    %3737 = vmatpush1.msra.mxu0 0.0
    %3738 = vmatprep.subr.mxu0 0.0
    %3739 = vmatpush1.msra.mxu0 0.0
    %3740 = vmatprep.subr.mxu0 0.0
    %3741 = vmatpush1.msra.mxu0 0.0
    %3742 = vmatprep.subr.mxu0 0.0
    %3743 = vmatpush1.msra.mxu0 0.0
    %3744 = vmatprep.subr.mxu0 0.0
    %3745 = vmatpush1.msra.mxu0 0.0
    %3746 = vmatprep.subr.mxu0 0.0
    %3747 = vmatpush1.msra.mxu0 0.0
    %3748 = vmatprep.mubr.f32.mxu0 0.0
    %v3749 = vand.u32 %v59, 4294901760
    %3750 = vmatmul.mubr.f32.gmra.mrb[0].mxu0 %v3749
    %v3751 = vpop.f32.mrb[0].mxu0
    %v3752 = vadd.f32 %v3675, %v3751
    %v3753 = vpop.f32.mrb[0].mxu0
    %3754 = vdwg.mxu0
    %3755 = vmatprep.subr.mxu0 0.0
    %v3756 = vand.u32 %v3367, 4294901760
    %3757 = vmatpush1.msra.mxu0 %v3756
    %3758 = vmatprep.subr.mxu0 0.0
    %v3759 = vand.u32 %v3368, 4294901760
    %3760 = vmatpush1.msra.mxu0 %v3759
    %3761 = vmatprep.subr.mxu0 0.0
    %3762 = vmatpush1.msra.mxu0 0.0
    %3763 = vmatprep.subr.mxu0 0.0
    %3764 = vmatpush1.msra.mxu0 0.0
    %3765 = vmatprep.subr.mxu0 0.0
    %3766 = vmatpush1.msra.mxu0 0.0
    %3767 = vmatprep.subr.mxu0 0.0
    %3768 = vmatpush1.msra.mxu0 0.0
    %3769 = vmatprep.subr.mxu0 0.0
    %3770 = vmatpush1.msra.mxu0 0.0
    %3771 = vmatprep.subr.mxu0 0.0
    %3772 = vmatpush1.msra.mxu0 0.0
    %3773 = vmatprep.subr.mxu0 0.0
    %3774 = vmatpush1.msra.mxu0 0.0
    %3775 = vmatprep.subr.mxu0 0.0
    %3776 = vmatpush1.msra.mxu0 0.0
    %3777 = vmatprep.subr.mxu0 0.0
    %3778 = vmatpush1.msra.mxu0 0.0
    %3779 = vmatprep.subr.mxu0 0.0
    %3780 = vmatpush1.msra.mxu0 0.0
    %3781 = vmatprep.subr.mxu0 0.0
    %3782 = vmatpush1.msra.mxu0 0.0
    %3783 = vmatprep.subr.mxu0 0.0
    %3784 = vmatpush1.msra.mxu0 0.0
    %3785 = vmatprep.subr.mxu0 0.0
    %3786 = vmatpush1.msra.mxu0 0.0
    %3787 = vmatprep.subr.mxu0 0.0
    %3788 = vmatpush1.msra.mxu0 0.0
    %3789 = vmatprep.subr.mxu0 0.0
    %3790 = vmatpush1.msra.mxu0 0.0
    %3791 = vmatprep.subr.mxu0 0.0
    %3792 = vmatpush1.msra.mxu0 0.0
    %3793 = vmatprep.subr.mxu0 0.0
    %3794 = vmatpush1.msra.mxu0 0.0
    %3795 = vmatprep.subr.mxu0 0.0
    %3796 = vmatpush1.msra.mxu0 0.0
    %3797 = vmatprep.subr.mxu0 0.0
    %3798 = vmatpush1.msra.mxu0 0.0
    %3799 = vmatprep.subr.mxu0 0.0
    %3800 = vmatpush1.msra.mxu0 0.0
    %3801 = vmatprep.subr.mxu0 0.0
    %3802 = vmatpush1.msra.mxu0 0.0
    %3803 = vmatprep.subr.mxu0 0.0
    %3804 = vmatpush1.msra.mxu0 0.0
    %3805 = vmatprep.subr.mxu0 0.0
    %3806 = vmatpush1.msra.mxu0 0.0
    %3807 = vmatprep.subr.mxu0 0.0
    %3808 = vmatpush1.msra.mxu0 0.0
    %3809 = vmatprep.subr.mxu0 0.0
    %3810 = vmatpush1.msra.mxu0 0.0
    %3811 = vmatprep.subr.mxu0 0.0
    %3812 = vmatpush1.msra.mxu0 0.0
    %3813 = vmatprep.subr.mxu0 0.0
    %3814 = vmatpush1.msra.mxu0 0.0
    %3815 = vmatprep.subr.mxu0 0.0
    %3816 = vmatpush1.msra.mxu0 0.0
    %3817 = vmatprep.subr.mxu0 0.0
    %3818 = vmatpush1.msra.mxu0 0.0
    %3819 = vmatprep.subr.mxu0 0.0
    %3820 = vmatpush1.msra.mxu0 0.0
    %3821 = vmatprep.mubr.f32.mxu0 0.0
    %v3822 = vand.u32 %v59, 4294901760
    %3823 = vmatmul.mubr.f32.gmra.mrb[0].mxu0 %v3822
    %v3824 = vpop.f32.mrb[0].mxu0
    %v3825 = vadd.f32 %v3752, %v3824
    %v3826 = vpop.f32.mrb[0].mxu0
    %3827 = vdwg.mxu0
    %3828 = vmatprep.subr.mxu0 0.0
    %v3829 = vand.u32 %v37, 4294901760
    %3830 = vmatpush1.msra.mxu0 %v3829
    %3831 = vmatprep.subr.mxu0 0.0
    %v3832 = vand.u32 %v38, 4294901760
    %3833 = vmatpush1.msra.mxu0 %v3832
    %3834 = vmatprep.subr.mxu0 0.0
    %v3835 = vand.u32 %v39, 4294901760
    %3836 = vmatpush1.msra.mxu0 %v3835
    %3837 = vmatprep.subr.mxu0 0.0
    %v3838 = vand.u32 %v40, 4294901760
    %3839 = vmatpush1.msra.mxu0 %v3838
    %3840 = vmatprep.subr.mxu0 0.0
    %v3841 = vand.u32 %v41, 4294901760
    %3842 = vmatpush1.msra.mxu0 %v3841
    %3843 = vmatprep.subr.mxu0 0.0
    %v3844 = vand.u32 %v42, 4294901760
    %3845 = vmatpush1.msra.mxu0 %v3844
    %3846 = vmatprep.subr.mxu0 0.0
    %v3847 = vand.u32 %v43, 4294901760
    %3848 = vmatpush1.msra.mxu0 %v3847
    %3849 = vmatprep.subr.mxu0 0.0
    %v3850 = vand.u32 %v44, 4294901760
    %3851 = vmatpush1.msra.mxu0 %v3850
    %3852 = vmatprep.subr.mxu0 0.0
    %v3853 = vand.u32 %v45, 4294901760
    %3854 = vmatpush1.msra.mxu0 %v3853
    %3855 = vmatprep.subr.mxu0 0.0
    %v3856 = vand.u32 %v46, 4294901760
    %3857 = vmatpush1.msra.mxu0 %v3856
    %3858 = vmatprep.subr.mxu0 0.0
    %v3859 = vand.u32 %v47, 4294901760
    %3860 = vmatpush1.msra.mxu0 %v3859
    %3861 = vmatprep.subr.mxu0 0.0
    %v3862 = vand.u32 %v48, 4294901760
    %3863 = vmatpush1.msra.mxu0 %v3862
    %3864 = vmatprep.subr.mxu0 0.0
    %v3865 = vand.u32 %v49, 4294901760
    %3866 = vmatpush1.msra.mxu0 %v3865
    %3867 = vmatprep.subr.mxu0 0.0
    %v3868 = vand.u32 %v50, 4294901760
    %3869 = vmatpush1.msra.mxu0 %v3868
    %3870 = vmatprep.subr.mxu0 0.0
    %v3871 = vand.u32 %v51, 4294901760
    %3872 = vmatpush1.msra.mxu0 %v3871
    %3873 = vmatprep.subr.mxu0 0.0
    %v3874 = vand.u32 %v52, 4294901760
    %3875 = vmatpush1.msra.mxu0 %v3874
    %3876 = vmatprep.subr.mxu0 0.0
    %3877 = vmatpush1.msra.mxu0 0.0
    %3878 = vmatprep.subr.mxu0 0.0
    %3879 = vmatpush1.msra.mxu0 0.0
    %3880 = vmatprep.subr.mxu0 0.0
    %3881 = vmatpush1.msra.mxu0 0.0
    %3882 = vmatprep.subr.mxu0 0.0
    %3883 = vmatpush1.msra.mxu0 0.0
    %3884 = vmatprep.subr.mxu0 0.0
    %3885 = vmatpush1.msra.mxu0 0.0
    %3886 = vmatprep.subr.mxu0 0.0
    %3887 = vmatpush1.msra.mxu0 0.0
    %3888 = vmatprep.subr.mxu0 0.0
    %3889 = vmatpush1.msra.mxu0 0.0
    %3890 = vmatprep.subr.mxu0 0.0
    %3891 = vmatpush1.msra.mxu0 0.0
    %3892 = vmatprep.subr.mxu0 0.0
    %3893 = vmatpush1.msra.mxu0 0.0
    %3894 = vmatprep.subr.mxu0 0.0
    %3895 = vmatpush1.msra.mxu0 0.0
    %3896 = vmatprep.subr.mxu0 0.0
    %3897 = vmatpush1.msra.mxu0 0.0
    %3898 = vmatprep.subr.mxu0 0.0
    %3899 = vmatpush1.msra.mxu0 0.0
    %3900 = vmatprep.subr.mxu0 0.0
    %3901 = vmatpush1.msra.mxu0 0.0
    %3902 = vmatprep.subr.mxu0 0.0
    %3903 = vmatpush1.msra.mxu0 0.0
    %3904 = vmatprep.subr.mxu0 0.0
    %3905 = vmatpush1.msra.mxu0 0.0
    %3906 = vmatprep.subr.mxu0 0.0
    %3907 = vmatpush1.msra.mxu0 0.0
    %3908 = vmatprep.mubr.f32.mxu0 0.0
    %v3909 = vand.u32 %v3825, 4294901760
    %v3910 = vsub.f32 %v3825, %v3909
    %v3911 = vand.u32 %v3910, 4294901760
    %v3912 = vsub.f32 %v3910, %v3911
    %v3913 = vand.u32 %v3912, 4294901760
    %3914 = vmatmul.mubr.f32.gmra.mrb[0].mxu0 %v3913
    %v3915 = vpop.f32.mrb[0].mxu0
    %v3916 = vadd.f32 0.0, %v3915
    %v3917 = vpop.f32.mrb[0].mxu0
    %3918 = vdwg.mxu0
    %3919 = vmatprep.subr.mxu0 0.0
    %v3920 = vand.u32 %v37, 4294901760
    %v3921 = vsub.f32 %v37, %v3920
    %v3922 = vand.u32 %v3921, 4294901760
    %v3923 = vsub.f32 %v3921, %v3922
    %v3924 = vand.u32 %v3923, 4294901760
    %3925 = vmatpush1.msra.mxu0 %v3924
    %3926 = vmatprep.subr.mxu0 0.0
    %v3927 = vand.u32 %v38, 4294901760
    %v3928 = vsub.f32 %v38, %v3927
    %v3929 = vand.u32 %v3928, 4294901760
    %v3930 = vsub.f32 %v3928, %v3929
    %v3931 = vand.u32 %v3930, 4294901760
    %3932 = vmatpush1.msra.mxu0 %v3931
    %3933 = vmatprep.subr.mxu0 0.0
    %v3934 = vand.u32 %v39, 4294901760
    %v3935 = vsub.f32 %v39, %v3934
    %v3936 = vand.u32 %v3935, 4294901760
    %v3937 = vsub.f32 %v3935, %v3936
    %v3938 = vand.u32 %v3937, 4294901760
    %3939 = vmatpush1.msra.mxu0 %v3938
    %3940 = vmatprep.subr.mxu0 0.0
    %v3941 = vand.u32 %v40, 4294901760
    %v3942 = vsub.f32 %v40, %v3941
    %v3943 = vand.u32 %v3942, 4294901760
    %v3944 = vsub.f32 %v3942, %v3943
    %v3945 = vand.u32 %v3944, 4294901760
    %3946 = vmatpush1.msra.mxu0 %v3945
    %3947 = vmatprep.subr.mxu0 0.0
    %v3948 = vand.u32 %v41, 4294901760
    %v3949 = vsub.f32 %v41, %v3948
    %v3950 = vand.u32 %v3949, 4294901760
    %v3951 = vsub.f32 %v3949, %v3950
    %v3952 = vand.u32 %v3951, 4294901760
    %3953 = vmatpush1.msra.mxu0 %v3952
    %3954 = vmatprep.subr.mxu0 0.0
    %v3955 = vand.u32 %v42, 4294901760
    %v3956 = vsub.f32 %v42, %v3955
    %v3957 = vand.u32 %v3956, 4294901760
    %v3958 = vsub.f32 %v3956, %v3957
    %v3959 = vand.u32 %v3958, 4294901760
    %3960 = vmatpush1.msra.mxu0 %v3959
    %3961 = vmatprep.subr.mxu0 0.0
    %v3962 = vand.u32 %v43, 4294901760
    %v3963 = vsub.f32 %v43, %v3962
    %v3964 = vand.u32 %v3963, 4294901760
    %v3965 = vsub.f32 %v3963, %v3964
    %v3966 = vand.u32 %v3965, 4294901760
    %3967 = vmatpush1.msra.mxu0 %v3966
    %3968 = vmatprep.subr.mxu0 0.0
    %v3969 = vand.u32 %v44, 4294901760
    %v3970 = vsub.f32 %v44, %v3969
    %v3971 = vand.u32 %v3970, 4294901760
    %v3972 = vsub.f32 %v3970, %v3971
    %v3973 = vand.u32 %v3972, 4294901760
    %3974 = vmatpush1.msra.mxu0 %v3973
    %3975 = vmatprep.subr.mxu0 0.0
    %v3976 = vand.u32 %v45, 4294901760
    %v3977 = vsub.f32 %v45, %v3976
    %v3978 = vand.u32 %v3977, 4294901760
    %v3979 = vsub.f32 %v3977, %v3978
    %v3980 = vand.u32 %v3979, 4294901760
    %3981 = vmatpush1.msra.mxu0 %v3980
    %3982 = vmatprep.subr.mxu0 0.0
    %v3983 = vand.u32 %v46, 4294901760
    %v3984 = vsub.f32 %v46, %v3983
    %v3985 = vand.u32 %v3984, 4294901760
    %v3986 = vsub.f32 %v3984, %v3985
    %v3987 = vand.u32 %v3986, 4294901760
    %3988 = vmatpush1.msra.mxu0 %v3987
    %3989 = vmatprep.subr.mxu0 0.0
    %v3990 = vand.u32 %v47, 4294901760
    %v3991 = vsub.f32 %v47, %v3990
    %v3992 = vand.u32 %v3991, 4294901760
    %v3993 = vsub.f32 %v3991, %v3992
    %v3994 = vand.u32 %v3993, 4294901760
    %3995 = vmatpush1.msra.mxu0 %v3994
    %3996 = vmatprep.subr.mxu0 0.0
    %v3997 = vand.u32 %v48, 4294901760
    %v3998 = vsub.f32 %v48, %v3997
    %v3999 = vand.u32 %v3998, 4294901760
    %v4000 = vsub.f32 %v3998, %v3999
    %v4001 = vand.u32 %v4000, 4294901760
    %4002 = vmatpush1.msra.mxu0 %v4001
    %4003 = vmatprep.subr.mxu0 0.0
    %v4004 = vand.u32 %v49, 4294901760
    %v4005 = vsub.f32 %v49, %v4004
    %v4006 = vand.u32 %v4005, 4294901760
    %v4007 = vsub.f32 %v4005, %v4006
    %v4008 = vand.u32 %v4007, 4294901760
    %4009 = vmatpush1.msra.mxu0 %v4008
    %4010 = vmatprep.subr.mxu0 0.0
    %v4011 = vand.u32 %v50, 4294901760
    %v4012 = vsub.f32 %v50, %v4011
    %v4013 = vand.u32 %v4012, 4294901760
    %v4014 = vsub.f32 %v4012, %v4013
    %v4015 = vand.u32 %v4014, 4294901760
    %4016 = vmatpush1.msra.mxu0 %v4015
    %4017 = vmatprep.subr.mxu0 0.0
    %v4018 = vand.u32 %v51, 4294901760
    %v4019 = vsub.f32 %v51, %v4018
    %v4020 = vand.u32 %v4019, 4294901760
    %v4021 = vsub.f32 %v4019, %v4020
    %v4022 = vand.u32 %v4021, 4294901760
    %4023 = vmatpush1.msra.mxu0 %v4022
    %4024 = vmatprep.subr.mxu0 0.0
    %v4025 = vand.u32 %v52, 4294901760
    %v4026 = vsub.f32 %v52, %v4025
    %v4027 = vand.u32 %v4026, 4294901760
    %v4028 = vsub.f32 %v4026, %v4027
    %v4029 = vand.u32 %v4028, 4294901760
    %4030 = vmatpush1.msra.mxu0 %v4029
    %4031 = vmatprep.subr.mxu0 0.0
    %4032 = vmatpush1.msra.mxu0 0.0
    %4033 = vmatprep.subr.mxu0 0.0
    %4034 = vmatpush1.msra.mxu0 0.0
    %4035 = vmatprep.subr.mxu0 0.0
    %4036 = vmatpush1.msra.mxu0 0.0
    %4037 = vmatprep.subr.mxu0 0.0
    %4038 = vmatpush1.msra.mxu0 0.0
    %4039 = vmatprep.subr.mxu0 0.0
    %4040 = vmatpush1.msra.mxu0 0.0
    %4041 = vmatprep.subr.mxu0 0.0
    %4042 = vmatpush1.msra.mxu0 0.0
    %4043 = vmatprep.subr.mxu0 0.0
    %4044 = vmatpush1.msra.mxu0 0.0
    %4045 = vmatprep.subr.mxu0 0.0
    %4046 = vmatpush1.msra.mxu0 0.0
    %4047 = vmatprep.subr.mxu0 0.0
    %4048 = vmatpush1.msra.mxu0 0.0
    %4049 = vmatprep.subr.mxu0 0.0
    %4050 = vmatpush1.msra.mxu0 0.0
    %4051 = vmatprep.subr.mxu0 0.0
    %4052 = vmatpush1.msra.mxu0 0.0
    %4053 = vmatprep.subr.mxu0 0.0
    %4054 = vmatpush1.msra.mxu0 0.0
    %4055 = vmatprep.subr.mxu0 0.0
    %4056 = vmatpush1.msra.mxu0 0.0
    %4057 = vmatprep.subr.mxu0 0.0
    %4058 = vmatpush1.msra.mxu0 0.0
    %4059 = vmatprep.subr.mxu0 0.0
    %4060 = vmatpush1.msra.mxu0 0.0
    %4061 = vmatprep.subr.mxu0 0.0
    %4062 = vmatpush1.msra.mxu0 0.0
    %4063 = vmatprep.mubr.f32.mxu0 0.0
    %v4064 = vand.u32 %v3825, 4294901760
    %4065 = vmatmul.mubr.f32.gmra.mrb[0].mxu0 %v4064
    %v4066 = vpop.f32.mrb[0].mxu0
    %v4067 = vadd.f32 %v3916, %v4066
    %v4068 = vpop.f32.mrb[0].mxu0
    %4069 = vdwg.mxu0
    %4070 = vmatprep.subr.mxu0 0.0
    %v4071 = vand.u32 %v37, 4294901760
    %v4072 = vsub.f32 %v37, %v4071
    %4073 = vmatpush1.msra.mxu0 %v4072
    %4074 = vmatprep.subr.mxu0 0.0
    %v4075 = vand.u32 %v38, 4294901760
    %v4076 = vsub.f32 %v38, %v4075
    %4077 = vmatpush1.msra.mxu0 %v4076
    %4078 = vmatprep.subr.mxu0 0.0
    %v4079 = vand.u32 %v39, 4294901760
    %v4080 = vsub.f32 %v39, %v4079
    %4081 = vmatpush1.msra.mxu0 %v4080
    %4082 = vmatprep.subr.mxu0 0.0
    %v4083 = vand.u32 %v40, 4294901760
    %v4084 = vsub.f32 %v40, %v4083
    %4085 = vmatpush1.msra.mxu0 %v4084
    %4086 = vmatprep.subr.mxu0 0.0
    %v4087 = vand.u32 %v41, 4294901760
    %v4088 = vsub.f32 %v41, %v4087
    %4089 = vmatpush1.msra.mxu0 %v4088
    %4090 = vmatprep.subr.mxu0 0.0
    %v4091 = vand.u32 %v42, 4294901760
    %v4092 = vsub.f32 %v42, %v4091
    %4093 = vmatpush1.msra.mxu0 %v4092
    %4094 = vmatprep.subr.mxu0 0.0
    %v4095 = vand.u32 %v43, 4294901760
    %v4096 = vsub.f32 %v43, %v4095
    %4097 = vmatpush1.msra.mxu0 %v4096
    %4098 = vmatprep.subr.mxu0 0.0
    %v4099 = vand.u32 %v44, 4294901760
    %v4100 = vsub.f32 %v44, %v4099
    %4101 = vmatpush1.msra.mxu0 %v4100
    %4102 = vmatprep.subr.mxu0 0.0
    %v4103 = vand.u32 %v45, 4294901760
    %v4104 = vsub.f32 %v45, %v4103
    %4105 = vmatpush1.msra.mxu0 %v4104
    %4106 = vmatprep.subr.mxu0 0.0
    %v4107 = vand.u32 %v46, 4294901760
    %v4108 = vsub.f32 %v46, %v4107
    %4109 = vmatpush1.msra.mxu0 %v4108
    %4110 = vmatprep.subr.mxu0 0.0
    %v4111 = vand.u32 %v47, 4294901760
    %v4112 = vsub.f32 %v47, %v4111
    %4113 = vmatpush1.msra.mxu0 %v4112
    %4114 = vmatprep.subr.mxu0 0.0
    %v4115 = vand.u32 %v48, 4294901760
    %v4116 = vsub.f32 %v48, %v4115
    %4117 = vmatpush1.msra.mxu0 %v4116
    %4118 = vmatprep.subr.mxu0 0.0
    %v4119 = vand.u32 %v49, 4294901760
    %v4120 = vsub.f32 %v49, %v4119
    %4121 = vmatpush1.msra.mxu0 %v4120
    %4122 = vmatprep.subr.mxu0 0.0
    %v4123 = vand.u32 %v50, 4294901760
    %v4124 = vsub.f32 %v50, %v4123
    %4125 = vmatpush1.msra.mxu0 %v4124
    %4126 = vmatprep.subr.mxu0 0.0
    %v4127 = vand.u32 %v51, 4294901760
    %v4128 = vsub.f32 %v51, %v4127
    %4129 = vmatpush1.msra.mxu0 %v4128
    %4130 = vmatprep.subr.mxu0 0.0
    %v4131 = vand.u32 %v52, 4294901760
    %v4132 = vsub.f32 %v52, %v4131
    %4133 = vmatpush1.msra.mxu0 %v4132
    %4134 = vmatprep.subr.mxu0 0.0
    %4135 = vmatpush1.msra.mxu0 0.0
    %4136 = vmatprep.subr.mxu0 0.0
    %4137 = vmatpush1.msra.mxu0 0.0
    %4138 = vmatprep.subr.mxu0 0.0
    %4139 = vmatpush1.msra.mxu0 0.0
    %4140 = vmatprep.subr.mxu0 0.0
    %4141 = vmatpush1.msra.mxu0 0.0
    %4142 = vmatprep.subr.mxu0 0.0
    %4143 = vmatpush1.msra.mxu0 0.0
    %4144 = vmatprep.subr.mxu0 0.0
    %4145 = vmatpush1.msra.mxu0 0.0
    %4146 = vmatprep.subr.mxu0 0.0
    %4147 = vmatpush1.msra.mxu0 0.0
    %4148 = vmatprep.subr.mxu0 0.0
    %4149 = vmatpush1.msra.mxu0 0.0
    %4150 = vmatprep.subr.mxu0 0.0
    %4151 = vmatpush1.msra.mxu0 0.0
    %4152 = vmatprep.subr.mxu0 0.0
    %4153 = vmatpush1.msra.mxu0 0.0
    %4154 = vmatprep.subr.mxu0 0.0
    %4155 = vmatpush1.msra.mxu0 0.0
    %4156 = vmatprep.subr.mxu0 0.0
    %4157 = vmatpush1.msra.mxu0 0.0
    %4158 = vmatprep.subr.mxu0 0.0
    %4159 = vmatpush1.msra.mxu0 0.0
    %4160 = vmatprep.subr.mxu0 0.0
    %4161 = vmatpush1.msra.mxu0 0.0
    %4162 = vmatprep.subr.mxu0 0.0
    %4163 = vmatpush1.msra.mxu0 0.0
    %4164 = vmatprep.subr.mxu0 0.0
    %4165 = vmatpush1.msra.mxu0 0.0
    %4166 = vmatprep.mubr.f32.mxu0 0.0
    %v4167 = vand.u32 %v3825, 4294901760
    %v4168 = vsub.f32 %v3825, %v4167
    %4169 = vmatmul.mubr.f32.gmra.mrb[0].mxu0 %v4168
    %v4170 = vpop.f32.mrb[0].mxu0
    %v4171 = vadd.f32 %v4067, %v4170
    %v4172 = vpop.f32.mrb[0].mxu0
    %4173 = vdwg.mxu0
    %4174 = vmatprep.subr.mxu0 0.0
    %v4175 = vand.u32 %v37, 4294901760
    %4176 = vmatpush1.msra.mxu0 %v4175
    %4177 = vmatprep.subr.mxu0 0.0
    %v4178 = vand.u32 %v38, 4294901760
    %4179 = vmatpush1.msra.mxu0 %v4178
    %4180 = vmatprep.subr.mxu0 0.0
    %v4181 = vand.u32 %v39, 4294901760
    %4182 = vmatpush1.msra.mxu0 %v4181
    %4183 = vmatprep.subr.mxu0 0.0
    %v4184 = vand.u32 %v40, 4294901760
    %4185 = vmatpush1.msra.mxu0 %v4184
    %4186 = vmatprep.subr.mxu0 0.0
    %v4187 = vand.u32 %v41, 4294901760
    %4188 = vmatpush1.msra.mxu0 %v4187
    %4189 = vmatprep.subr.mxu0 0.0
    %v4190 = vand.u32 %v42, 4294901760
    %4191 = vmatpush1.msra.mxu0 %v4190
    %4192 = vmatprep.subr.mxu0 0.0
    %v4193 = vand.u32 %v43, 4294901760
    %4194 = vmatpush1.msra.mxu0 %v4193
    %4195 = vmatprep.subr.mxu0 0.0
    %v4196 = vand.u32 %v44, 4294901760
    %4197 = vmatpush1.msra.mxu0 %v4196
    %4198 = vmatprep.subr.mxu0 0.0
    %v4199 = vand.u32 %v45, 4294901760
    %4200 = vmatpush1.msra.mxu0 %v4199
    %4201 = vmatprep.subr.mxu0 0.0
    %v4202 = vand.u32 %v46, 4294901760
    %4203 = vmatpush1.msra.mxu0 %v4202
    %4204 = vmatprep.subr.mxu0 0.0
    %v4205 = vand.u32 %v47, 4294901760
    %4206 = vmatpush1.msra.mxu0 %v4205
    %4207 = vmatprep.subr.mxu0 0.0
    %v4208 = vand.u32 %v48, 4294901760
    %4209 = vmatpush1.msra.mxu0 %v4208
    %4210 = vmatprep.subr.mxu0 0.0
    %v4211 = vand.u32 %v49, 4294901760
    %4212 = vmatpush1.msra.mxu0 %v4211
    %4213 = vmatprep.subr.mxu0 0.0
    %v4214 = vand.u32 %v50, 4294901760
    %4215 = vmatpush1.msra.mxu0 %v4214
    %4216 = vmatprep.subr.mxu0 0.0
    %v4217 = vand.u32 %v51, 4294901760
    %4218 = vmatpush1.msra.mxu0 %v4217
    %4219 = vmatprep.subr.mxu0 0.0
    %v4220 = vand.u32 %v52, 4294901760
    %4221 = vmatpush1.msra.mxu0 %v4220
    %4222 = vmatprep.subr.mxu0 0.0
    %4223 = vmatpush1.msra.mxu0 0.0
    %4224 = vmatprep.subr.mxu0 0.0
    %4225 = vmatpush1.msra.mxu0 0.0
    %4226 = vmatprep.subr.mxu0 0.0
    %4227 = vmatpush1.msra.mxu0 0.0
    %4228 = vmatprep.subr.mxu0 0.0
    %4229 = vmatpush1.msra.mxu0 0.0
    %4230 = vmatprep.subr.mxu0 0.0
    %4231 = vmatpush1.msra.mxu0 0.0
    %4232 = vmatprep.subr.mxu0 0.0
    %4233 = vmatpush1.msra.mxu0 0.0
    %4234 = vmatprep.subr.mxu0 0.0
    %4235 = vmatpush1.msra.mxu0 0.0
    %4236 = vmatprep.subr.mxu0 0.0
    %4237 = vmatpush1.msra.mxu0 0.0
    %4238 = vmatprep.subr.mxu0 0.0
    %4239 = vmatpush1.msra.mxu0 0.0
    %4240 = vmatprep.subr.mxu0 0.0
    %4241 = vmatpush1.msra.mxu0 0.0
    %4242 = vmatprep.subr.mxu0 0.0
    %4243 = vmatpush1.msra.mxu0 0.0
    %4244 = vmatprep.subr.mxu0 0.0
    %4245 = vmatpush1.msra.mxu0 0.0
    %4246 = vmatprep.subr.mxu0 0.0
    %4247 = vmatpush1.msra.mxu0 0.0
    %4248 = vmatprep.subr.mxu0 0.0
    %4249 = vmatpush1.msra.mxu0 0.0
    %4250 = vmatprep.subr.mxu0 0.0
    %4251 = vmatpush1.msra.mxu0 0.0
    %4252 = vmatprep.subr.mxu0 0.0
    %4253 = vmatpush1.msra.mxu0 0.0
    %4254 = vmatprep.mubr.f32.mxu0 0.0
    %v4255 = vand.u32 %v3825, 4294901760
    %v4256 = vsub.f32 %v3825, %v4255
    %v4257 = vand.u32 %v4256, 4294901760
    %4258 = vmatmul.mubr.f32.gmra.mrb[0].mxu0 %v4257
    %v4259 = vpop.f32.mrb[0].mxu0
    %v4260 = vadd.f32 %v4171, %v4259
    %v4261 = vpop.f32.mrb[0].mxu0
    %4262 = vdwg.mxu0
    %4263 = vmatprep.subr.mxu0 0.0
    %v4264 = vand.u32 %v37, 4294901760
    %v4265 = vsub.f32 %v37, %v4264
    %v4266 = vand.u32 %v4265, 4294901760
    %4267 = vmatpush1.msra.mxu0 %v4266
    %4268 = vmatprep.subr.mxu0 0.0
    %v4269 = vand.u32 %v38, 4294901760
    %v4270 = vsub.f32 %v38, %v4269
    %v4271 = vand.u32 %v4270, 4294901760
    %4272 = vmatpush1.msra.mxu0 %v4271
    %4273 = vmatprep.subr.mxu0 0.0
    %v4274 = vand.u32 %v39, 4294901760
    %v4275 = vsub.f32 %v39, %v4274
    %v4276 = vand.u32 %v4275, 4294901760
    %4277 = vmatpush1.msra.mxu0 %v4276
    %4278 = vmatprep.subr.mxu0 0.0
    %v4279 = vand.u32 %v40, 4294901760
    %v4280 = vsub.f32 %v40, %v4279
    %v4281 = vand.u32 %v4280, 4294901760
    %4282 = vmatpush1.msra.mxu0 %v4281
    %4283 = vmatprep.subr.mxu0 0.0
    %v4284 = vand.u32 %v41, 4294901760
    %v4285 = vsub.f32 %v41, %v4284
    %v4286 = vand.u32 %v4285, 4294901760
    %4287 = vmatpush1.msra.mxu0 %v4286
    %4288 = vmatprep.subr.mxu0 0.0
    %v4289 = vand.u32 %v42, 4294901760
    %v4290 = vsub.f32 %v42, %v4289
    %v4291 = vand.u32 %v4290, 4294901760
    %4292 = vmatpush1.msra.mxu0 %v4291
    %4293 = vmatprep.subr.mxu0 0.0
    %v4294 = vand.u32 %v43, 4294901760
    %v4295 = vsub.f32 %v43, %v4294
    %v4296 = vand.u32 %v4295, 4294901760
    %4297 = vmatpush1.msra.mxu0 %v4296
    %4298 = vmatprep.subr.mxu0 0.0
    %v4299 = vand.u32 %v44, 4294901760
    %v4300 = vsub.f32 %v44, %v4299
    %v4301 = vand.u32 %v4300, 4294901760
    %4302 = vmatpush1.msra.mxu0 %v4301
    %4303 = vmatprep.subr.mxu0 0.0
    %v4304 = vand.u32 %v45, 4294901760
    %v4305 = vsub.f32 %v45, %v4304
    %v4306 = vand.u32 %v4305, 4294901760
    %4307 = vmatpush1.msra.mxu0 %v4306
    %4308 = vmatprep.subr.mxu0 0.0
    %v4309 = vand.u32 %v46, 4294901760
    %v4310 = vsub.f32 %v46, %v4309
    %v4311 = vand.u32 %v4310, 4294901760
    %4312 = vmatpush1.msra.mxu0 %v4311
    %4313 = vmatprep.subr.mxu0 0.0
    %v4314 = vand.u32 %v47, 4294901760
    %v4315 = vsub.f32 %v47, %v4314
    %v4316 = vand.u32 %v4315, 4294901760
    %4317 = vmatpush1.msra.mxu0 %v4316
    %4318 = vmatprep.subr.mxu0 0.0
    %v4319 = vand.u32 %v48, 4294901760
    %v4320 = vsub.f32 %v48, %v4319
    %v4321 = vand.u32 %v4320, 4294901760
    %4322 = vmatpush1.msra.mxu0 %v4321
    %4323 = vmatprep.subr.mxu0 0.0
    %v4324 = vand.u32 %v49, 4294901760
    %v4325 = vsub.f32 %v49, %v4324
    %v4326 = vand.u32 %v4325, 4294901760
    %4327 = vmatpush1.msra.mxu0 %v4326
    %4328 = vmatprep.subr.mxu0 0.0
    %v4329 = vand.u32 %v50, 4294901760
    %v4330 = vsub.f32 %v50, %v4329
    %v4331 = vand.u32 %v4330, 4294901760
    %4332 = vmatpush1.msra.mxu0 %v4331
    %4333 = vmatprep.subr.mxu0 0.0
    %v4334 = vand.u32 %v51, 4294901760
    %v4335 = vsub.f32 %v51, %v4334
    %v4336 = vand.u32 %v4335, 4294901760
    %4337 = vmatpush1.msra.mxu0 %v4336
    %4338 = vmatprep.subr.mxu0 0.0
    %v4339 = vand.u32 %v52, 4294901760
    %v4340 = vsub.f32 %v52, %v4339
    %v4341 = vand.u32 %v4340, 4294901760
    %4342 = vmatpush1.msra.mxu0 %v4341
    %4343 = vmatprep.subr.mxu0 0.0
    %4344 = vmatpush1.msra.mxu0 0.0
    %4345 = vmatprep.subr.mxu0 0.0
    %4346 = vmatpush1.msra.mxu0 0.0
    %4347 = vmatprep.subr.mxu0 0.0
    %4348 = vmatpush1.msra.mxu0 0.0
    %4349 = vmatprep.subr.mxu0 0.0
    %4350 = vmatpush1.msra.mxu0 0.0
    %4351 = vmatprep.subr.mxu0 0.0
    %4352 = vmatpush1.msra.mxu0 0.0
    %4353 = vmatprep.subr.mxu0 0.0
    %4354 = vmatpush1.msra.mxu0 0.0
    %4355 = vmatprep.subr.mxu0 0.0
    %4356 = vmatpush1.msra.mxu0 0.0
    %4357 = vmatprep.subr.mxu0 0.0
    %4358 = vmatpush1.msra.mxu0 0.0
    %4359 = vmatprep.subr.mxu0 0.0
    %4360 = vmatpush1.msra.mxu0 0.0
    %4361 = vmatprep.subr.mxu0 0.0
    %4362 = vmatpush1.msra.mxu0 0.0
    %4363 = vmatprep.subr.mxu0 0.0
    %4364 = vmatpush1.msra.mxu0 0.0
    %4365 = vmatprep.subr.mxu0 0.0
    %4366 = vmatpush1.msra.mxu0 0.0
    %4367 = vmatprep.subr.mxu0 0.0
    %4368 = vmatpush1.msra.mxu0 0.0
    %4369 = vmatprep.subr.mxu0 0.0
    %4370 = vmatpush1.msra.mxu0 0.0
    %4371 = vmatprep.subr.mxu0 0.0
    %4372 = vmatpush1.msra.mxu0 0.0
    %4373 = vmatprep.subr.mxu0 0.0
    %4374 = vmatpush1.msra.mxu0 0.0
    %4375 = vmatprep.mubr.f32.mxu0 0.0
    %v4376 = vand.u32 %v3825, 4294901760
    %4377 = vmatmul.mubr.f32.gmra.mrb[0].mxu0 %v4376
    %v4378 = vpop.f32.mrb[0].mxu0
    %v4379 = vadd.f32 %v4260, %v4378
    %v4380 = vpop.f32.mrb[0].mxu0
    %4381 = vdwg.mxu0
    %4382 = vmatprep.subr.mxu0 0.0
    %v4383 = vand.u32 %v37, 4294901760
    %4384 = vmatpush1.msra.mxu0 %v4383
    %4385 = vmatprep.subr.mxu0 0.0
    %v4386 = vand.u32 %v38, 4294901760
    %4387 = vmatpush1.msra.mxu0 %v4386
    %4388 = vmatprep.subr.mxu0 0.0
    %v4389 = vand.u32 %v39, 4294901760
    %4390 = vmatpush1.msra.mxu0 %v4389
    %4391 = vmatprep.subr.mxu0 0.0
    %v4392 = vand.u32 %v40, 4294901760
    %4393 = vmatpush1.msra.mxu0 %v4392
    %4394 = vmatprep.subr.mxu0 0.0
    %v4395 = vand.u32 %v41, 4294901760
    %4396 = vmatpush1.msra.mxu0 %v4395
    %4397 = vmatprep.subr.mxu0 0.0
    %v4398 = vand.u32 %v42, 4294901760
    %4399 = vmatpush1.msra.mxu0 %v4398
    %4400 = vmatprep.subr.mxu0 0.0
    %v4401 = vand.u32 %v43, 4294901760
    %4402 = vmatpush1.msra.mxu0 %v4401
    %4403 = vmatprep.subr.mxu0 0.0
    %v4404 = vand.u32 %v44, 4294901760
    %4405 = vmatpush1.msra.mxu0 %v4404
    %4406 = vmatprep.subr.mxu0 0.0
    %v4407 = vand.u32 %v45, 4294901760
    %4408 = vmatpush1.msra.mxu0 %v4407
    %4409 = vmatprep.subr.mxu0 0.0
    %v4410 = vand.u32 %v46, 4294901760
    %4411 = vmatpush1.msra.mxu0 %v4410
    %4412 = vmatprep.subr.mxu0 0.0
    %v4413 = vand.u32 %v47, 4294901760
    %4414 = vmatpush1.msra.mxu0 %v4413
    %4415 = vmatprep.subr.mxu0 0.0
    %v4416 = vand.u32 %v48, 4294901760
    %4417 = vmatpush1.msra.mxu0 %v4416
    %4418 = vmatprep.subr.mxu0 0.0
    %v4419 = vand.u32 %v49, 4294901760
    %4420 = vmatpush1.msra.mxu0 %v4419
    %4421 = vmatprep.subr.mxu0 0.0
    %v4422 = vand.u32 %v50, 4294901760
    %4423 = vmatpush1.msra.mxu0 %v4422
    %4424 = vmatprep.subr.mxu0 0.0
    %v4425 = vand.u32 %v51, 4294901760
    %4426 = vmatpush1.msra.mxu0 %v4425
    %4427 = vmatprep.subr.mxu0 0.0
    %v4428 = vand.u32 %v52, 4294901760
    %4429 = vmatpush1.msra.mxu0 %v4428
    %4430 = vmatprep.subr.mxu0 0.0
    %4431 = vmatpush1.msra.mxu0 0.0
    %4432 = vmatprep.subr.mxu0 0.0
    %4433 = vmatpush1.msra.mxu0 0.0
    %4434 = vmatprep.subr.mxu0 0.0
    %4435 = vmatpush1.msra.mxu0 0.0
    %4436 = vmatprep.subr.mxu0 0.0
    %4437 = vmatpush1.msra.mxu0 0.0
    %4438 = vmatprep.subr.mxu0 0.0
    %4439 = vmatpush1.msra.mxu0 0.0
    %4440 = vmatprep.subr.mxu0 0.0
    %4441 = vmatpush1.msra.mxu0 0.0
    %4442 = vmatprep.subr.mxu0 0.0
    %4443 = vmatpush1.msra.mxu0 0.0
    %4444 = vmatprep.subr.mxu0 0.0
    %4445 = vmatpush1.msra.mxu0 0.0
    %4446 = vmatprep.subr.mxu0 0.0
    %4447 = vmatpush1.msra.mxu0 0.0
    %4448 = vmatprep.subr.mxu0 0.0
    %4449 = vmatpush1.msra.mxu0 0.0
    %4450 = vmatprep.subr.mxu0 0.0
    %4451 = vmatpush1.msra.mxu0 0.0
    %4452 = vmatprep.subr.mxu0 0.0
    %4453 = vmatpush1.msra.mxu0 0.0
    %4454 = vmatprep.subr.mxu0 0.0
    %4455 = vmatpush1.msra.mxu0 0.0
    %4456 = vmatprep.subr.mxu0 0.0
    %4457 = vmatpush1.msra.mxu0 0.0
    %4458 = vmatprep.subr.mxu0 0.0
    %4459 = vmatpush1.msra.mxu0 0.0
    %4460 = vmatprep.subr.mxu0 0.0
    %4461 = vmatpush1.msra.mxu0 0.0
    %4462 = vmatprep.mubr.f32.mxu0 0.0
    %v4463 = vand.u32 %v3825, 4294901760
    %4464 = vmatmul.mubr.f32.gmra.mrb[0].mxu0 %v4463
    %v4465 = vpop.f32.mrb[0].mxu0
    %v4466 = vadd.f32 %v4379, %v4465
    %v4467 = vpop.f32.mrb[0].mxu0
    %4468 = vdwg.mxu0
    %v4469 = vsub.f32 %v4466, %v2262
    %v4470 = vmul.f32 %v53, %v55
    %v4471 = vmul.f32 %v54, %v56
    %4472 = vmatprep.subr.mxu0 0.0
    %v4473 = vand.u32 %v4470, 4294901760
    %4474 = vmatpush1.msra.mxu0 %v4473
    %4475 = vmatprep.subr.mxu0 0.0
    %v4476 = vand.u32 %v4471, 4294901760
    %4477 = vmatpush1.msra.mxu0 %v4476
    %4478 = vmatprep.subr.mxu0 0.0
    %4479 = vmatpush1.msra.mxu0 0.0
    %4480 = vmatprep.subr.mxu0 0.0
    %4481 = vmatpush1.msra.mxu0 0.0
    %4482 = vmatprep.subr.mxu0 0.0
    %4483 = vmatpush1.msra.mxu0 0.0
    %4484 = vmatprep.subr.mxu0 0.0
    %4485 = vmatpush1.msra.mxu0 0.0
    %4486 = vmatprep.subr.mxu0 0.0
    %4487 = vmatpush1.msra.mxu0 0.0
    %4488 = vmatprep.subr.mxu0 0.0
    %4489 = vmatpush1.msra.mxu0 0.0
    %4490 = vmatprep.subr.mxu0 0.0
    %4491 = vmatpush1.msra.mxu0 0.0
    %4492 = vmatprep.subr.mxu0 0.0
    %4493 = vmatpush1.msra.mxu0 0.0
    %4494 = vmatprep.subr.mxu0 0.0
    %4495 = vmatpush1.msra.mxu0 0.0
    %4496 = vmatprep.subr.mxu0 0.0
    %4497 = vmatpush1.msra.mxu0 0.0
    %4498 = vmatprep.subr.mxu0 0.0
    %4499 = vmatpush1.msra.mxu0 0.0
    %4500 = vmatprep.subr.mxu0 0.0
    %4501 = vmatpush1.msra.mxu0 0.0
    %4502 = vmatprep.subr.mxu0 0.0
    %4503 = vmatpush1.msra.mxu0 0.0
    %4504 = vmatprep.subr.mxu0 0.0
    %4505 = vmatpush1.msra.mxu0 0.0
    %4506 = vmatprep.subr.mxu0 0.0
    %4507 = vmatpush1.msra.mxu0 0.0
    %4508 = vmatprep.subr.mxu0 0.0
    %4509 = vmatpush1.msra.mxu0 0.0
    %4510 = vmatprep.subr.mxu0 0.0
    %4511 = vmatpush1.msra.mxu0 0.0
    %4512 = vmatprep.subr.mxu0 0.0
    %4513 = vmatpush1.msra.mxu0 0.0
    %4514 = vmatprep.subr.mxu0 0.0
    %4515 = vmatpush1.msra.mxu0 0.0
    %4516 = vmatprep.subr.mxu0 0.0
    %4517 = vmatpush1.msra.mxu0 0.0
    %4518 = vmatprep.subr.mxu0 0.0
    %4519 = vmatpush1.msra.mxu0 0.0
    %4520 = vmatprep.subr.mxu0 0.0
    %4521 = vmatpush1.msra.mxu0 0.0
    %4522 = vmatprep.subr.mxu0 0.0
    %4523 = vmatpush1.msra.mxu0 0.0
    %4524 = vmatprep.subr.mxu0 0.0
    %4525 = vmatpush1.msra.mxu0 0.0
    %4526 = vmatprep.subr.mxu0 0.0
    %4527 = vmatpush1.msra.mxu0 0.0
    %4528 = vmatprep.subr.mxu0 0.0
    %4529 = vmatpush1.msra.mxu0 0.0
    %4530 = vmatprep.subr.mxu0 0.0
    %4531 = vmatpush1.msra.mxu0 0.0
    %4532 = vmatprep.subr.mxu0 0.0
    %4533 = vmatpush1.msra.mxu0 0.0
    %4534 = vmatprep.subr.mxu0 0.0
    %4535 = vmatpush1.msra.mxu0 0.0
    %4536 = vmatprep.subr.mxu0 0.0
    %4537 = vmatpush1.msra.mxu0 0.0
    %4538 = vmatprep.mubr.f32.mxu0 0.0
    %v4539 = vand.u32 %v59, 4294901760
    %v4540 = vsub.f32 %v59, %v4539
    %v4541 = vand.u32 %v4540, 4294901760
    %v4542 = vsub.f32 %v4540, %v4541
    %v4543 = vand.u32 %v4542, 4294901760
    %4544 = vmatmul.mubr.f32.gmra.mrb[0].mxu0 %v4543
    %v4545 = vpop.f32.mrb[0].mxu0
    %v4546 = vadd.f32 0.0, %v4545
    %v4547 = vpop.f32.mrb[0].mxu0
    %4548 = vdwg.mxu0
    %4549 = vmatprep.subr.mxu0 0.0
    %v4550 = vand.u32 %v4470, 4294901760
    %v4551 = vsub.f32 %v4470, %v4550
    %v4552 = vand.u32 %v4551, 4294901760
    %v4553 = vsub.f32 %v4551, %v4552
    %v4554 = vand.u32 %v4553, 4294901760
    %4555 = vmatpush1.msra.mxu0 %v4554
    %4556 = vmatprep.subr.mxu0 0.0
    %v4557 = vand.u32 %v4471, 4294901760
    %v4558 = vsub.f32 %v4471, %v4557
    %v4559 = vand.u32 %v4558, 4294901760
    %v4560 = vsub.f32 %v4558, %v4559
    %v4561 = vand.u32 %v4560, 4294901760
    %4562 = vmatpush1.msra.mxu0 %v4561
    %4563 = vmatprep.subr.mxu0 0.0
    %4564 = vmatpush1.msra.mxu0 0.0
    %4565 = vmatprep.subr.mxu0 0.0
    %4566 = vmatpush1.msra.mxu0 0.0
    %4567 = vmatprep.subr.mxu0 0.0
    %4568 = vmatpush1.msra.mxu0 0.0
    %4569 = vmatprep.subr.mxu0 0.0
    %4570 = vmatpush1.msra.mxu0 0.0
    %4571 = vmatprep.subr.mxu0 0.0
    %4572 = vmatpush1.msra.mxu0 0.0
    %4573 = vmatprep.subr.mxu0 0.0
    %4574 = vmatpush1.msra.mxu0 0.0
    %4575 = vmatprep.subr.mxu0 0.0
    %4576 = vmatpush1.msra.mxu0 0.0
    %4577 = vmatprep.subr.mxu0 0.0
    %4578 = vmatpush1.msra.mxu0 0.0
    %4579 = vmatprep.subr.mxu0 0.0
    %4580 = vmatpush1.msra.mxu0 0.0
    %4581 = vmatprep.subr.mxu0 0.0
    %4582 = vmatpush1.msra.mxu0 0.0
    %4583 = vmatprep.subr.mxu0 0.0
    %4584 = vmatpush1.msra.mxu0 0.0
    %4585 = vmatprep.subr.mxu0 0.0
    %4586 = vmatpush1.msra.mxu0 0.0
    %4587 = vmatprep.subr.mxu0 0.0
    %4588 = vmatpush1.msra.mxu0 0.0
    %4589 = vmatprep.subr.mxu0 0.0
    %4590 = vmatpush1.msra.mxu0 0.0
    %4591 = vmatprep.subr.mxu0 0.0
    %4592 = vmatpush1.msra.mxu0 0.0
    %4593 = vmatprep.subr.mxu0 0.0
    %4594 = vmatpush1.msra.mxu0 0.0
    %4595 = vmatprep.subr.mxu0 0.0
    %4596 = vmatpush1.msra.mxu0 0.0
    %4597 = vmatprep.subr.mxu0 0.0
    %4598 = vmatpush1.msra.mxu0 0.0
    %4599 = vmatprep.subr.mxu0 0.0
    %4600 = vmatpush1.msra.mxu0 0.0
    %4601 = vmatprep.subr.mxu0 0.0
    %4602 = vmatpush1.msra.mxu0 0.0
    %4603 = vmatprep.subr.mxu0 0.0
    %4604 = vmatpush1.msra.mxu0 0.0
    %4605 = vmatprep.subr.mxu0 0.0
    %4606 = vmatpush1.msra.mxu0 0.0
    %4607 = vmatprep.subr.mxu0 0.0
    %4608 = vmatpush1.msra.mxu0 0.0
    %4609 = vmatprep.subr.mxu0 0.0
    %4610 = vmatpush1.msra.mxu0 0.0
    %4611 = vmatprep.subr.mxu0 0.0
    %4612 = vmatpush1.msra.mxu0 0.0
    %4613 = vmatprep.subr.mxu0 0.0
    %4614 = vmatpush1.msra.mxu0 0.0
    %4615 = vmatprep.subr.mxu0 0.0
    %4616 = vmatpush1.msra.mxu0 0.0
    %4617 = vmatprep.subr.mxu0 0.0
    %4618 = vmatpush1.msra.mxu0 0.0
    %4619 = vmatprep.subr.mxu0 0.0
    %4620 = vmatpush1.msra.mxu0 0.0
    %4621 = vmatprep.subr.mxu0 0.0
    %4622 = vmatpush1.msra.mxu0 0.0
    %4623 = vmatprep.mubr.f32.mxu0 0.0
    %v4624 = vand.u32 %v59, 4294901760
    %4625 = vmatmul.mubr.f32.gmra.mrb[0].mxu0 %v4624
    %v4626 = vpop.f32.mrb[0].mxu0
    %v4627 = vadd.f32 %v4546, %v4626
    %v4628 = vpop.f32.mrb[0].mxu0
    %4629 = vdwg.mxu0
    %4630 = vmatprep.subr.mxu0 0.0
    %v4631 = vand.u32 %v4470, 4294901760
    %v4632 = vsub.f32 %v4470, %v4631
    %4633 = vmatpush1.msra.mxu0 %v4632
    %4634 = vmatprep.subr.mxu0 0.0
    %v4635 = vand.u32 %v4471, 4294901760
    %v4636 = vsub.f32 %v4471, %v4635
    %4637 = vmatpush1.msra.mxu0 %v4636
    %4638 = vmatprep.subr.mxu0 0.0
    %4639 = vmatpush1.msra.mxu0 0.0
    %4640 = vmatprep.subr.mxu0 0.0
    %4641 = vmatpush1.msra.mxu0 0.0
    %4642 = vmatprep.subr.mxu0 0.0
    %4643 = vmatpush1.msra.mxu0 0.0
    %4644 = vmatprep.subr.mxu0 0.0
    %4645 = vmatpush1.msra.mxu0 0.0
    %4646 = vmatprep.subr.mxu0 0.0
    %4647 = vmatpush1.msra.mxu0 0.0
    %4648 = vmatprep.subr.mxu0 0.0
    %4649 = vmatpush1.msra.mxu0 0.0
    %4650 = vmatprep.subr.mxu0 0.0
    %4651 = vmatpush1.msra.mxu0 0.0
    %4652 = vmatprep.subr.mxu0 0.0
    %4653 = vmatpush1.msra.mxu0 0.0
    %4654 = vmatprep.subr.mxu0 0.0
    %4655 = vmatpush1.msra.mxu0 0.0
    %4656 = vmatprep.subr.mxu0 0.0
    %4657 = vmatpush1.msra.mxu0 0.0
    %4658 = vmatprep.subr.mxu0 0.0
    %4659 = vmatpush1.msra.mxu0 0.0
    %4660 = vmatprep.subr.mxu0 0.0
    %4661 = vmatpush1.msra.mxu0 0.0
    %4662 = vmatprep.subr.mxu0 0.0
    %4663 = vmatpush1.msra.mxu0 0.0
    %4664 = vmatprep.subr.mxu0 0.0
    %4665 = vmatpush1.msra.mxu0 0.0
    %4666 = vmatprep.subr.mxu0 0.0
    %4667 = vmatpush1.msra.mxu0 0.0
    %4668 = vmatprep.subr.mxu0 0.0
    %4669 = vmatpush1.msra.mxu0 0.0
    %4670 = vmatprep.subr.mxu0 0.0
    %4671 = vmatpush1.msra.mxu0 0.0
    %4672 = vmatprep.subr.mxu0 0.0
    %4673 = vmatpush1.msra.mxu0 0.0
    %4674 = vmatprep.subr.mxu0 0.0
    %4675 = vmatpush1.msra.mxu0 0.0
    %4676 = vmatprep.subr.mxu0 0.0
    %4677 = vmatpush1.msra.mxu0 0.0
    %4678 = vmatprep.subr.mxu0 0.0
    %4679 = vmatpush1.msra.mxu0 0.0
    %4680 = vmatprep.subr.mxu0 0.0
    %4681 = vmatpush1.msra.mxu0 0.0
    %4682 = vmatprep.subr.mxu0 0.0
    %4683 = vmatpush1.msra.mxu0 0.0
    %4684 = vmatprep.subr.mxu0 0.0
    %4685 = vmatpush1.msra.mxu0 0.0
    %4686 = vmatprep.subr.mxu0 0.0
    %4687 = vmatpush1.msra.mxu0 0.0
    %4688 = vmatprep.subr.mxu0 0.0
    %4689 = vmatpush1.msra.mxu0 0.0
    %4690 = vmatprep.subr.mxu0 0.0
    %4691 = vmatpush1.msra.mxu0 0.0
    %4692 = vmatprep.subr.mxu0 0.0
    %4693 = vmatpush1.msra.mxu0 0.0
    %4694 = vmatprep.subr.mxu0 0.0
    %4695 = vmatpush1.msra.mxu0 0.0
    %4696 = vmatprep.subr.mxu0 0.0
    %4697 = vmatpush1.msra.mxu0 0.0
    %4698 = vmatprep.mubr.f32.mxu0 0.0
    %v4699 = vand.u32 %v59, 4294901760
    %v4700 = vsub.f32 %v59, %v4699
    %4701 = vmatmul.mubr.f32.gmra.mrb[0].mxu0 %v4700
    %v4702 = vpop.f32.mrb[0].mxu0
    %v4703 = vadd.f32 %v4627, %v4702
    %v4704 = vpop.f32.mrb[0].mxu0
    %4705 = vdwg.mxu0
    %4706 = vmatprep.subr.mxu0 0.0
    %v4707 = vand.u32 %v4470, 4294901760
    %4708 = vmatpush1.msra.mxu0 %v4707
    %4709 = vmatprep.subr.mxu0 0.0
    %v4710 = vand.u32 %v4471, 4294901760
    %4711 = vmatpush1.msra.mxu0 %v4710
    %4712 = vmatprep.subr.mxu0 0.0
    %4713 = vmatpush1.msra.mxu0 0.0
    %4714 = vmatprep.subr.mxu0 0.0
    %4715 = vmatpush1.msra.mxu0 0.0
    %4716 = vmatprep.subr.mxu0 0.0
    %4717 = vmatpush1.msra.mxu0 0.0
    %4718 = vmatprep.subr.mxu0 0.0
    %4719 = vmatpush1.msra.mxu0 0.0
    %4720 = vmatprep.subr.mxu0 0.0
    %4721 = vmatpush1.msra.mxu0 0.0
    %4722 = vmatprep.subr.mxu0 0.0
    %4723 = vmatpush1.msra.mxu0 0.0
    %4724 = vmatprep.subr.mxu0 0.0
    %4725 = vmatpush1.msra.mxu0 0.0
    %4726 = vmatprep.subr.mxu0 0.0
    %4727 = vmatpush1.msra.mxu0 0.0
    %4728 = vmatprep.subr.mxu0 0.0
    %4729 = vmatpush1.msra.mxu0 0.0
    %4730 = vmatprep.subr.mxu0 0.0
    %4731 = vmatpush1.msra.mxu0 0.0
    %4732 = vmatprep.subr.mxu0 0.0
    %4733 = vmatpush1.msra.mxu0 0.0
    %4734 = vmatprep.subr.mxu0 0.0
    %4735 = vmatpush1.msra.mxu0 0.0
    %4736 = vmatprep.subr.mxu0 0.0
    %4737 = vmatpush1.msra.mxu0 0.0
    %4738 = vmatprep.subr.mxu0 0.0
    %4739 = vmatpush1.msra.mxu0 0.0
    %4740 = vmatprep.subr.mxu0 0.0
    %4741 = vmatpush1.msra.mxu0 0.0
    %4742 = vmatprep.subr.mxu0 0.0
    %4743 = vmatpush1.msra.mxu0 0.0
    %4744 = vmatprep.subr.mxu0 0.0
    %4745 = vmatpush1.msra.mxu0 0.0
    %4746 = vmatprep.subr.mxu0 0.0
    %4747 = vmatpush1.msra.mxu0 0.0
    %4748 = vmatprep.subr.mxu0 0.0
    %4749 = vmatpush1.msra.mxu0 0.0
    %4750 = vmatprep.subr.mxu0 0.0
    %4751 = vmatpush1.msra.mxu0 0.0
    %4752 = vmatprep.subr.mxu0 0.0
    %4753 = vmatpush1.msra.mxu0 0.0
    %4754 = vmatprep.subr.mxu0 0.0
    %4755 = vmatpush1.msra.mxu0 0.0
    %4756 = vmatprep.subr.mxu0 0.0
    %4757 = vmatpush1.msra.mxu0 0.0
    %4758 = vmatprep.subr.mxu0 0.0
    %4759 = vmatpush1.msra.mxu0 0.0
    %4760 = vmatprep.subr.mxu0 0.0
    %4761 = vmatpush1.msra.mxu0 0.0
    %4762 = vmatprep.subr.mxu0 0.0
    %4763 = vmatpush1.msra.mxu0 0.0
    %4764 = vmatprep.subr.mxu0 0.0
    %4765 = vmatpush1.msra.mxu0 0.0
    %4766 = vmatprep.subr.mxu0 0.0
    %4767 = vmatpush1.msra.mxu0 0.0
    %4768 = vmatprep.subr.mxu0 0.0
    %4769 = vmatpush1.msra.mxu0 0.0
    %4770 = vmatprep.subr.mxu0 0.0
    %4771 = vmatpush1.msra.mxu0 0.0
    %4772 = vmatprep.mubr.f32.mxu0 0.0
    %v4773 = vand.u32 %v59, 4294901760
    %v4774 = vsub.f32 %v59, %v4773
    %v4775 = vand.u32 %v4774, 4294901760
    %4776 = vmatmul.mubr.f32.gmra.mrb[0].mxu0 %v4775
    %v4777 = vpop.f32.mrb[0].mxu0
    %v4778 = vadd.f32 %v4703, %v4777
    %v4779 = vpop.f32.mrb[0].mxu0
    %4780 = vdwg.mxu0
    %4781 = vmatprep.subr.mxu0 0.0
    %v4782 = vand.u32 %v4470, 4294901760
    %v4783 = vsub.f32 %v4470, %v4782
    %v4784 = vand.u32 %v4783, 4294901760
    %4785 = vmatpush1.msra.mxu0 %v4784
    %4786 = vmatprep.subr.mxu0 0.0
    %v4787 = vand.u32 %v4471, 4294901760
    %v4788 = vsub.f32 %v4471, %v4787
    %v4789 = vand.u32 %v4788, 4294901760
    %4790 = vmatpush1.msra.mxu0 %v4789
    %4791 = vmatprep.subr.mxu0 0.0
    %4792 = vmatpush1.msra.mxu0 0.0
    %4793 = vmatprep.subr.mxu0 0.0
    %4794 = vmatpush1.msra.mxu0 0.0
    %4795 = vmatprep.subr.mxu0 0.0
    %4796 = vmatpush1.msra.mxu0 0.0
    %4797 = vmatprep.subr.mxu0 0.0
    %4798 = vmatpush1.msra.mxu0 0.0
    %4799 = vmatprep.subr.mxu0 0.0
    %4800 = vmatpush1.msra.mxu0 0.0
    %4801 = vmatprep.subr.mxu0 0.0
    %4802 = vmatpush1.msra.mxu0 0.0
    %4803 = vmatprep.subr.mxu0 0.0
    %4804 = vmatpush1.msra.mxu0 0.0
    %4805 = vmatprep.subr.mxu0 0.0
    %4806 = vmatpush1.msra.mxu0 0.0
    %4807 = vmatprep.subr.mxu0 0.0
    %4808 = vmatpush1.msra.mxu0 0.0
    %4809 = vmatprep.subr.mxu0 0.0
    %4810 = vmatpush1.msra.mxu0 0.0
    %4811 = vmatprep.subr.mxu0 0.0
    %4812 = vmatpush1.msra.mxu0 0.0
    %4813 = vmatprep.subr.mxu0 0.0
    %4814 = vmatpush1.msra.mxu0 0.0
    %4815 = vmatprep.subr.mxu0 0.0
    %4816 = vmatpush1.msra.mxu0 0.0
    %4817 = vmatprep.subr.mxu0 0.0
    %4818 = vmatpush1.msra.mxu0 0.0
    %4819 = vmatprep.subr.mxu0 0.0
    %4820 = vmatpush1.msra.mxu0 0.0
    %4821 = vmatprep.subr.mxu0 0.0
    %4822 = vmatpush1.msra.mxu0 0.0
    %4823 = vmatprep.subr.mxu0 0.0
    %4824 = vmatpush1.msra.mxu0 0.0
    %4825 = vmatprep.subr.mxu0 0.0
    %4826 = vmatpush1.msra.mxu0 0.0
    %4827 = vmatprep.subr.mxu0 0.0
    %4828 = vmatpush1.msra.mxu0 0.0
    %4829 = vmatprep.subr.mxu0 0.0
    %4830 = vmatpush1.msra.mxu0 0.0
    %4831 = vmatprep.subr.mxu0 0.0
    %4832 = vmatpush1.msra.mxu0 0.0
    %4833 = vmatprep.subr.mxu0 0.0
    %4834 = vmatpush1.msra.mxu0 0.0
    %4835 = vmatprep.subr.mxu0 0.0
    %4836 = vmatpush1.msra.mxu0 0.0
    %4837 = vmatprep.subr.mxu0 0.0
    %4838 = vmatpush1.msra.mxu0 0.0
    %4839 = vmatprep.subr.mxu0 0.0
    %4840 = vmatpush1.msra.mxu0 0.0
    %4841 = vmatprep.subr.mxu0 0.0
    %4842 = vmatpush1.msra.mxu0 0.0
    %4843 = vmatprep.subr.mxu0 0.0
    %4844 = vmatpush1.msra.mxu0 0.0
    %4845 = vmatprep.subr.mxu0 0.0
    %4846 = vmatpush1.msra.mxu0 0.0
    %4847 = vmatprep.subr.mxu0 0.0
    %4848 = vmatpush1.msra.mxu0 0.0
    %4849 = vmatprep.subr.mxu0 0.0
    %4850 = vmatpush1.msra.mxu0 0.0
    %4851 = vmatprep.mubr.f32.mxu0 0.0
    %v4852 = vand.u32 %v59, 4294901760
    %4853 = vmatmul.mubr.f32.gmra.mrb[0].mxu0 %v4852
    %v4854 = vpop.f32.mrb[0].mxu0
    %v4855 = vadd.f32 %v4778, %v4854
    %v4856 = vpop.f32.mrb[0].mxu0
    %4857 = vdwg.mxu0
    %4858 = vmatprep.subr.mxu0 0.0
    %v4859 = vand.u32 %v4470, 4294901760
    %4860 = vmatpush1.msra.mxu0 %v4859
    %4861 = vmatprep.subr.mxu0 0.0
    %v4862 = vand.u32 %v4471, 4294901760
    %4863 = vmatpush1.msra.mxu0 %v4862
    %4864 = vmatprep.subr.mxu0 0.0
    %4865 = vmatpush1.msra.mxu0 0.0
    %4866 = vmatprep.subr.mxu0 0.0
    %4867 = vmatpush1.msra.mxu0 0.0
    %4868 = vmatprep.subr.mxu0 0.0
    %4869 = vmatpush1.msra.mxu0 0.0
    %4870 = vmatprep.subr.mxu0 0.0
    %4871 = vmatpush1.msra.mxu0 0.0
    %4872 = vmatprep.subr.mxu0 0.0
    %4873 = vmatpush1.msra.mxu0 0.0
    %4874 = vmatprep.subr.mxu0 0.0
    %4875 = vmatpush1.msra.mxu0 0.0
    %4876 = vmatprep.subr.mxu0 0.0
    %4877 = vmatpush1.msra.mxu0 0.0
    %4878 = vmatprep.subr.mxu0 0.0
    %4879 = vmatpush1.msra.mxu0 0.0
    %4880 = vmatprep.subr.mxu0 0.0
    %4881 = vmatpush1.msra.mxu0 0.0
    %4882 = vmatprep.subr.mxu0 0.0
    %4883 = vmatpush1.msra.mxu0 0.0
    %4884 = vmatprep.subr.mxu0 0.0
    %4885 = vmatpush1.msra.mxu0 0.0
    %4886 = vmatprep.subr.mxu0 0.0
    %4887 = vmatpush1.msra.mxu0 0.0
    %4888 = vmatprep.subr.mxu0 0.0
    %4889 = vmatpush1.msra.mxu0 0.0
    %4890 = vmatprep.subr.mxu0 0.0
    %4891 = vmatpush1.msra.mxu0 0.0
    %4892 = vmatprep.subr.mxu0 0.0
    %4893 = vmatpush1.msra.mxu0 0.0
    %4894 = vmatprep.subr.mxu0 0.0
    %4895 = vmatpush1.msra.mxu0 0.0
    %4896 = vmatprep.subr.mxu0 0.0
    %4897 = vmatpush1.msra.mxu0 0.0
    %4898 = vmatprep.subr.mxu0 0.0
    %4899 = vmatpush1.msra.mxu0 0.0
    %4900 = vmatprep.subr.mxu0 0.0
    %4901 = vmatpush1.msra.mxu0 0.0
    %4902 = vmatprep.subr.mxu0 0.0
    %4903 = vmatpush1.msra.mxu0 0.0
    %4904 = vmatprep.subr.mxu0 0.0
    %4905 = vmatpush1.msra.mxu0 0.0
    %4906 = vmatprep.subr.mxu0 0.0
    %4907 = vmatpush1.msra.mxu0 0.0
    %4908 = vmatprep.subr.mxu0 0.0
    %4909 = vmatpush1.msra.mxu0 0.0
    %4910 = vmatprep.subr.mxu0 0.0
    %4911 = vmatpush1.msra.mxu0 0.0
    %4912 = vmatprep.subr.mxu0 0.0
    %4913 = vmatpush1.msra.mxu0 0.0
    %4914 = vmatprep.subr.mxu0 0.0
    %4915 = vmatpush1.msra.mxu0 0.0
    %4916 = vmatprep.subr.mxu0 0.0
    %4917 = vmatpush1.msra.mxu0 0.0
    %4918 = vmatprep.subr.mxu0 0.0
    %4919 = vmatpush1.msra.mxu0 0.0
    %4920 = vmatprep.subr.mxu0 0.0
    %4921 = vmatpush1.msra.mxu0 0.0
    %4922 = vmatprep.subr.mxu0 0.0
    %4923 = vmatpush1.msra.mxu0 0.0
    %4924 = vmatprep.mubr.f32.mxu0 0.0
    %v4925 = vand.u32 %v59, 4294901760
    %4926 = vmatmul.mubr.f32.gmra.mrb[0].mxu0 %v4925
    %v4927 = vpop.f32.mrb[0].mxu0
    %v4928 = vadd.f32 %v4855, %v4927
    %v4929 = vpop.f32.mrb[0].mxu0
    %4930 = vdwg.mxu0
    %4931 = vmatprep.subr.mxu0 0.0
    %v4932 = vand.u32 %v37, 4294901760
    %4933 = vmatpush1.msra.mxu0 %v4932
    %4934 = vmatprep.subr.mxu0 0.0
    %v4935 = vand.u32 %v38, 4294901760
    %4936 = vmatpush1.msra.mxu0 %v4935
    %4937 = vmatprep.subr.mxu0 0.0
    %v4938 = vand.u32 %v39, 4294901760
    %4939 = vmatpush1.msra.mxu0 %v4938
    %4940 = vmatprep.subr.mxu0 0.0
    %v4941 = vand.u32 %v40, 4294901760
    %4942 = vmatpush1.msra.mxu0 %v4941
    %4943 = vmatprep.subr.mxu0 0.0
    %v4944 = vand.u32 %v41, 4294901760
    %4945 = vmatpush1.msra.mxu0 %v4944
    %4946 = vmatprep.subr.mxu0 0.0
    %v4947 = vand.u32 %v42, 4294901760
    %4948 = vmatpush1.msra.mxu0 %v4947
    %4949 = vmatprep.subr.mxu0 0.0
    %v4950 = vand.u32 %v43, 4294901760
    %4951 = vmatpush1.msra.mxu0 %v4950
    %4952 = vmatprep.subr.mxu0 0.0
    %v4953 = vand.u32 %v44, 4294901760
    %4954 = vmatpush1.msra.mxu0 %v4953
    %4955 = vmatprep.subr.mxu0 0.0
    %v4956 = vand.u32 %v45, 4294901760
    %4957 = vmatpush1.msra.mxu0 %v4956
    %4958 = vmatprep.subr.mxu0 0.0
    %v4959 = vand.u32 %v46, 4294901760
    %4960 = vmatpush1.msra.mxu0 %v4959
    %4961 = vmatprep.subr.mxu0 0.0
    %v4962 = vand.u32 %v47, 4294901760
    %4963 = vmatpush1.msra.mxu0 %v4962
    %4964 = vmatprep.subr.mxu0 0.0
    %v4965 = vand.u32 %v48, 4294901760
    %4966 = vmatpush1.msra.mxu0 %v4965
    %4967 = vmatprep.subr.mxu0 0.0
    %v4968 = vand.u32 %v49, 4294901760
    %4969 = vmatpush1.msra.mxu0 %v4968
    %4970 = vmatprep.subr.mxu0 0.0
    %v4971 = vand.u32 %v50, 4294901760
    %4972 = vmatpush1.msra.mxu0 %v4971
    %4973 = vmatprep.subr.mxu0 0.0
    %v4974 = vand.u32 %v51, 4294901760
    %4975 = vmatpush1.msra.mxu0 %v4974
    %4976 = vmatprep.subr.mxu0 0.0
    %v4977 = vand.u32 %v52, 4294901760
    %4978 = vmatpush1.msra.mxu0 %v4977
    %4979 = vmatprep.subr.mxu0 0.0
    %4980 = vmatpush1.msra.mxu0 0.0
    %4981 = vmatprep.subr.mxu0 0.0
    %4982 = vmatpush1.msra.mxu0 0.0
    %4983 = vmatprep.subr.mxu0 0.0
    %4984 = vmatpush1.msra.mxu0 0.0
    %4985 = vmatprep.subr.mxu0 0.0
    %4986 = vmatpush1.msra.mxu0 0.0
    %4987 = vmatprep.subr.mxu0 0.0
    %4988 = vmatpush1.msra.mxu0 0.0
    %4989 = vmatprep.subr.mxu0 0.0
    %4990 = vmatpush1.msra.mxu0 0.0
    %4991 = vmatprep.subr.mxu0 0.0
    %4992 = vmatpush1.msra.mxu0 0.0
    %4993 = vmatprep.subr.mxu0 0.0
    %4994 = vmatpush1.msra.mxu0 0.0
    %4995 = vmatprep.subr.mxu0 0.0
    %4996 = vmatpush1.msra.mxu0 0.0
    %4997 = vmatprep.subr.mxu0 0.0
    %4998 = vmatpush1.msra.mxu0 0.0
    %4999 = vmatprep.subr.mxu0 0.0
    %5000 = vmatpush1.msra.mxu0 0.0
    %5001 = vmatprep.subr.mxu0 0.0
    %5002 = vmatpush1.msra.mxu0 0.0
    %5003 = vmatprep.subr.mxu0 0.0
    %5004 = vmatpush1.msra.mxu0 0.0
    %5005 = vmatprep.subr.mxu0 0.0
    %5006 = vmatpush1.msra.mxu0 0.0
    %5007 = vmatprep.subr.mxu0 0.0
    %5008 = vmatpush1.msra.mxu0 0.0
    %5009 = vmatprep.subr.mxu0 0.0
    %5010 = vmatpush1.msra.mxu0 0.0
    %5011 = vmatprep.mubr.f32.mxu0 0.0
    %v5012 = vand.u32 %v4928, 4294901760
    %v5013 = vsub.f32 %v4928, %v5012
    %v5014 = vand.u32 %v5013, 4294901760
    %v5015 = vsub.f32 %v5013, %v5014
    %v5016 = vand.u32 %v5015, 4294901760
    %5017 = vmatmul.mubr.f32.gmra.mrb[0].mxu0 %v5016
    %v5018 = vpop.f32.mrb[0].mxu0
    %v5019 = vadd.f32 0.0, %v5018
    %v5020 = vpop.f32.mrb[0].mxu0
    %5021 = vdwg.mxu0
    %5022 = vmatprep.subr.mxu0 0.0
    %v5023 = vand.u32 %v37, 4294901760
    %v5024 = vsub.f32 %v37, %v5023
    %v5025 = vand.u32 %v5024, 4294901760
    %v5026 = vsub.f32 %v5024, %v5025
    %v5027 = vand.u32 %v5026, 4294901760
    %5028 = vmatpush1.msra.mxu0 %v5027
    %5029 = vmatprep.subr.mxu0 0.0
    %v5030 = vand.u32 %v38, 4294901760
    %v5031 = vsub.f32 %v38, %v5030
    %v5032 = vand.u32 %v5031, 4294901760
    %v5033 = vsub.f32 %v5031, %v5032
    %v5034 = vand.u32 %v5033, 4294901760
    %5035 = vmatpush1.msra.mxu0 %v5034
    %5036 = vmatprep.subr.mxu0 0.0
    %v5037 = vand.u32 %v39, 4294901760
    %v5038 = vsub.f32 %v39, %v5037
    %v5039 = vand.u32 %v5038, 4294901760
    %v5040 = vsub.f32 %v5038, %v5039
    %v5041 = vand.u32 %v5040, 4294901760
    %5042 = vmatpush1.msra.mxu0 %v5041
    %5043 = vmatprep.subr.mxu0 0.0
    %v5044 = vand.u32 %v40, 4294901760
    %v5045 = vsub.f32 %v40, %v5044
    %v5046 = vand.u32 %v5045, 4294901760
    %v5047 = vsub.f32 %v5045, %v5046
    %v5048 = vand.u32 %v5047, 4294901760
    %5049 = vmatpush1.msra.mxu0 %v5048
    %5050 = vmatprep.subr.mxu0 0.0
    %v5051 = vand.u32 %v41, 4294901760
    %v5052 = vsub.f32 %v41, %v5051
    %v5053 = vand.u32 %v5052, 4294901760
    %v5054 = vsub.f32 %v5052, %v5053
    %v5055 = vand.u32 %v5054, 4294901760
    %5056 = vmatpush1.msra.mxu0 %v5055
    %5057 = vmatprep.subr.mxu0 0.0
    %v5058 = vand.u32 %v42, 4294901760
    %v5059 = vsub.f32 %v42, %v5058
    %v5060 = vand.u32 %v5059, 4294901760
    %v5061 = vsub.f32 %v5059, %v5060
    %v5062 = vand.u32 %v5061, 4294901760
    %5063 = vmatpush1.msra.mxu0 %v5062
    %5064 = vmatprep.subr.mxu0 0.0
    %v5065 = vand.u32 %v43, 4294901760
    %v5066 = vsub.f32 %v43, %v5065
    %v5067 = vand.u32 %v5066, 4294901760
    %v5068 = vsub.f32 %v5066, %v5067
    %v5069 = vand.u32 %v5068, 4294901760
    %5070 = vmatpush1.msra.mxu0 %v5069
    %5071 = vmatprep.subr.mxu0 0.0
    %v5072 = vand.u32 %v44, 4294901760
    %v5073 = vsub.f32 %v44, %v5072
    %v5074 = vand.u32 %v5073, 4294901760
    %v5075 = vsub.f32 %v5073, %v5074
    %v5076 = vand.u32 %v5075, 4294901760
    %5077 = vmatpush1.msra.mxu0 %v5076
    %5078 = vmatprep.subr.mxu0 0.0
    %v5079 = vand.u32 %v45, 4294901760
    %v5080 = vsub.f32 %v45, %v5079
    %v5081 = vand.u32 %v5080, 4294901760
    %v5082 = vsub.f32 %v5080, %v5081
    %v5083 = vand.u32 %v5082, 4294901760
    %5084 = vmatpush1.msra.mxu0 %v5083
    %5085 = vmatprep.subr.mxu0 0.0
    %v5086 = vand.u32 %v46, 4294901760
    %v5087 = vsub.f32 %v46, %v5086
    %v5088 = vand.u32 %v5087, 4294901760
    %v5089 = vsub.f32 %v5087, %v5088
    %v5090 = vand.u32 %v5089, 4294901760
    %5091 = vmatpush1.msra.mxu0 %v5090
    %5092 = vmatprep.subr.mxu0 0.0
    %v5093 = vand.u32 %v47, 4294901760
    %v5094 = vsub.f32 %v47, %v5093
    %v5095 = vand.u32 %v5094, 4294901760
    %v5096 = vsub.f32 %v5094, %v5095
    %v5097 = vand.u32 %v5096, 4294901760
    %5098 = vmatpush1.msra.mxu0 %v5097
    %5099 = vmatprep.subr.mxu0 0.0
    %v5100 = vand.u32 %v48, 4294901760
    %v5101 = vsub.f32 %v48, %v5100
    %v5102 = vand.u32 %v5101, 4294901760
    %v5103 = vsub.f32 %v5101, %v5102
    %v5104 = vand.u32 %v5103, 4294901760
    %5105 = vmatpush1.msra.mxu0 %v5104
    %5106 = vmatprep.subr.mxu0 0.0
    %v5107 = vand.u32 %v49, 4294901760
    %v5108 = vsub.f32 %v49, %v5107
    %v5109 = vand.u32 %v5108, 4294901760
    %v5110 = vsub.f32 %v5108, %v5109
    %v5111 = vand.u32 %v5110, 4294901760
    %5112 = vmatpush1.msra.mxu0 %v5111
    %5113 = vmatprep.subr.mxu0 0.0
    %v5114 = vand.u32 %v50, 4294901760
    %v5115 = vsub.f32 %v50, %v5114
    %v5116 = vand.u32 %v5115, 4294901760
    %v5117 = vsub.f32 %v5115, %v5116
    %v5118 = vand.u32 %v5117, 4294901760
    %5119 = vmatpush1.msra.mxu0 %v5118
    %5120 = vmatprep.subr.mxu0 0.0
    %v5121 = vand.u32 %v51, 4294901760
    %v5122 = vsub.f32 %v51, %v5121
    %v5123 = vand.u32 %v5122, 4294901760
    %v5124 = vsub.f32 %v5122, %v5123
    %v5125 = vand.u32 %v5124, 4294901760
    %5126 = vmatpush1.msra.mxu0 %v5125
    %5127 = vmatprep.subr.mxu0 0.0
    %v5128 = vand.u32 %v52, 4294901760
    %v5129 = vsub.f32 %v52, %v5128
    %v5130 = vand.u32 %v5129, 4294901760
    %v5131 = vsub.f32 %v5129, %v5130
    %v5132 = vand.u32 %v5131, 4294901760
    %5133 = vmatpush1.msra.mxu0 %v5132
    %5134 = vmatprep.subr.mxu0 0.0
    %5135 = vmatpush1.msra.mxu0 0.0
    %5136 = vmatprep.subr.mxu0 0.0
    %5137 = vmatpush1.msra.mxu0 0.0
    %5138 = vmatprep.subr.mxu0 0.0
    %5139 = vmatpush1.msra.mxu0 0.0
    %5140 = vmatprep.subr.mxu0 0.0
    %5141 = vmatpush1.msra.mxu0 0.0
    %5142 = vmatprep.subr.mxu0 0.0
    %5143 = vmatpush1.msra.mxu0 0.0
    %5144 = vmatprep.subr.mxu0 0.0
    %5145 = vmatpush1.msra.mxu0 0.0
    %5146 = vmatprep.subr.mxu0 0.0
    %5147 = vmatpush1.msra.mxu0 0.0
    %5148 = vmatprep.subr.mxu0 0.0
    %5149 = vmatpush1.msra.mxu0 0.0
    %5150 = vmatprep.subr.mxu0 0.0
    %5151 = vmatpush1.msra.mxu0 0.0
    %5152 = vmatprep.subr.mxu0 0.0
    %5153 = vmatpush1.msra.mxu0 0.0
    %5154 = vmatprep.subr.mxu0 0.0
    %5155 = vmatpush1.msra.mxu0 0.0
    %5156 = vmatprep.subr.mxu0 0.0
    %5157 = vmatpush1.msra.mxu0 0.0
    %5158 = vmatprep.subr.mxu0 0.0
    %5159 = vmatpush1.msra.mxu0 0.0
    %5160 = vmatprep.subr.mxu0 0.0
    %5161 = vmatpush1.msra.mxu0 0.0
    %5162 = vmatprep.subr.mxu0 0.0
    %5163 = vmatpush1.msra.mxu0 0.0
    %5164 = vmatprep.subr.mxu0 0.0
    %5165 = vmatpush1.msra.mxu0 0.0
    %5166 = vmatprep.mubr.f32.mxu0 0.0
    %v5167 = vand.u32 %v4928, 4294901760
    %5168 = vmatmul.mubr.f32.gmra.mrb[0].mxu0 %v5167
    %v5169 = vpop.f32.mrb[0].mxu0
    %v5170 = vadd.f32 %v5019, %v5169
    %v5171 = vpop.f32.mrb[0].mxu0
    %5172 = vdwg.mxu0
    %5173 = vmatprep.subr.mxu0 0.0
    %v5174 = vand.u32 %v37, 4294901760
    %v5175 = vsub.f32 %v37, %v5174
    %5176 = vmatpush1.msra.mxu0 %v5175
    %5177 = vmatprep.subr.mxu0 0.0
    %v5178 = vand.u32 %v38, 4294901760
    %v5179 = vsub.f32 %v38, %v5178
    %5180 = vmatpush1.msra.mxu0 %v5179
    %5181 = vmatprep.subr.mxu0 0.0
    %v5182 = vand.u32 %v39, 4294901760
    %v5183 = vsub.f32 %v39, %v5182
    %5184 = vmatpush1.msra.mxu0 %v5183
    %5185 = vmatprep.subr.mxu0 0.0
    %v5186 = vand.u32 %v40, 4294901760
    %v5187 = vsub.f32 %v40, %v5186
    %5188 = vmatpush1.msra.mxu0 %v5187
    %5189 = vmatprep.subr.mxu0 0.0
    %v5190 = vand.u32 %v41, 4294901760
    %v5191 = vsub.f32 %v41, %v5190
    %5192 = vmatpush1.msra.mxu0 %v5191
    %5193 = vmatprep.subr.mxu0 0.0
    %v5194 = vand.u32 %v42, 4294901760
    %v5195 = vsub.f32 %v42, %v5194
    %5196 = vmatpush1.msra.mxu0 %v5195
    %5197 = vmatprep.subr.mxu0 0.0
    %v5198 = vand.u32 %v43, 4294901760
    %v5199 = vsub.f32 %v43, %v5198
    %5200 = vmatpush1.msra.mxu0 %v5199
    %5201 = vmatprep.subr.mxu0 0.0
    %v5202 = vand.u32 %v44, 4294901760
    %v5203 = vsub.f32 %v44, %v5202
    %5204 = vmatpush1.msra.mxu0 %v5203
    %5205 = vmatprep.subr.mxu0 0.0
    %v5206 = vand.u32 %v45, 4294901760
    %v5207 = vsub.f32 %v45, %v5206
    %5208 = vmatpush1.msra.mxu0 %v5207
    %5209 = vmatprep.subr.mxu0 0.0
    %v5210 = vand.u32 %v46, 4294901760
    %v5211 = vsub.f32 %v46, %v5210
    %5212 = vmatpush1.msra.mxu0 %v5211
    %5213 = vmatprep.subr.mxu0 0.0
    %v5214 = vand.u32 %v47, 4294901760
    %v5215 = vsub.f32 %v47, %v5214
    %5216 = vmatpush1.msra.mxu0 %v5215
    %5217 = vmatprep.subr.mxu0 0.0
    %v5218 = vand.u32 %v48, 4294901760
    %v5219 = vsub.f32 %v48, %v5218
    %5220 = vmatpush1.msra.mxu0 %v5219
    %5221 = vmatprep.subr.mxu0 0.0
    %v5222 = vand.u32 %v49, 4294901760
    %v5223 = vsub.f32 %v49, %v5222
    %5224 = vmatpush1.msra.mxu0 %v5223
    %5225 = vmatprep.subr.mxu0 0.0
    %v5226 = vand.u32 %v50, 4294901760
    %v5227 = vsub.f32 %v50, %v5226
    %5228 = vmatpush1.msra.mxu0 %v5227
    %5229 = vmatprep.subr.mxu0 0.0
    %v5230 = vand.u32 %v51, 4294901760
    %v5231 = vsub.f32 %v51, %v5230
    %5232 = vmatpush1.msra.mxu0 %v5231
    %5233 = vmatprep.subr.mxu0 0.0
    %v5234 = vand.u32 %v52, 4294901760
    %v5235 = vsub.f32 %v52, %v5234
    %5236 = vmatpush1.msra.mxu0 %v5235
    %5237 = vmatprep.subr.mxu0 0.0
    %5238 = vmatpush1.msra.mxu0 0.0
    %5239 = vmatprep.subr.mxu0 0.0
    %5240 = vmatpush1.msra.mxu0 0.0
    %5241 = vmatprep.subr.mxu0 0.0
    %5242 = vmatpush1.msra.mxu0 0.0
    %5243 = vmatprep.subr.mxu0 0.0
    %5244 = vmatpush1.msra.mxu0 0.0
    %5245 = vmatprep.subr.mxu0 0.0
    %5246 = vmatpush1.msra.mxu0 0.0
    %5247 = vmatprep.subr.mxu0 0.0
    %5248 = vmatpush1.msra.mxu0 0.0
    %5249 = vmatprep.subr.mxu0 0.0
    %5250 = vmatpush1.msra.mxu0 0.0
    %5251 = vmatprep.subr.mxu0 0.0
    %5252 = vmatpush1.msra.mxu0 0.0
    %5253 = vmatprep.subr.mxu0 0.0
    %5254 = vmatpush1.msra.mxu0 0.0
    %5255 = vmatprep.subr.mxu0 0.0
    %5256 = vmatpush1.msra.mxu0 0.0
    %5257 = vmatprep.subr.mxu0 0.0
    %5258 = vmatpush1.msra.mxu0 0.0
    %5259 = vmatprep.subr.mxu0 0.0
    %5260 = vmatpush1.msra.mxu0 0.0
    %5261 = vmatprep.subr.mxu0 0.0
    %5262 = vmatpush1.msra.mxu0 0.0
    %5263 = vmatprep.subr.mxu0 0.0
    %5264 = vmatpush1.msra.mxu0 0.0
    %5265 = vmatprep.subr.mxu0 0.0
    %5266 = vmatpush1.msra.mxu0 0.0
    %5267 = vmatprep.subr.mxu0 0.0
    %5268 = vmatpush1.msra.mxu0 0.0
    %5269 = vmatprep.mubr.f32.mxu0 0.0
    %v5270 = vand.u32 %v4928, 4294901760
    %v5271 = vsub.f32 %v4928, %v5270
    %5272 = vmatmul.mubr.f32.gmra.mrb[0].mxu0 %v5271
    %v5273 = vpop.f32.mrb[0].mxu0
    %v5274 = vadd.f32 %v5170, %v5273
    %v5275 = vpop.f32.mrb[0].mxu0
    %5276 = vdwg.mxu0
    %5277 = vmatprep.subr.mxu0 0.0
    %v5278 = vand.u32 %v37, 4294901760
    %5279 = vmatpush1.msra.mxu0 %v5278
    %5280 = vmatprep.subr.mxu0 0.0
    %v5281 = vand.u32 %v38, 4294901760
    %5282 = vmatpush1.msra.mxu0 %v5281
    %5283 = vmatprep.subr.mxu0 0.0
    %v5284 = vand.u32 %v39, 4294901760
    %5285 = vmatpush1.msra.mxu0 %v5284
    %5286 = vmatprep.subr.mxu0 0.0
    %v5287 = vand.u32 %v40, 4294901760
    %5288 = vmatpush1.msra.mxu0 %v5287
    %5289 = vmatprep.subr.mxu0 0.0
    %v5290 = vand.u32 %v41, 4294901760
    %5291 = vmatpush1.msra.mxu0 %v5290
    %5292 = vmatprep.subr.mxu0 0.0
    %v5293 = vand.u32 %v42, 4294901760
    %5294 = vmatpush1.msra.mxu0 %v5293
    %5295 = vmatprep.subr.mxu0 0.0
    %v5296 = vand.u32 %v43, 4294901760
    %5297 = vmatpush1.msra.mxu0 %v5296
    %5298 = vmatprep.subr.mxu0 0.0
    %v5299 = vand.u32 %v44, 4294901760
    %5300 = vmatpush1.msra.mxu0 %v5299
    %5301 = vmatprep.subr.mxu0 0.0
    %v5302 = vand.u32 %v45, 4294901760
    %5303 = vmatpush1.msra.mxu0 %v5302
    %5304 = vmatprep.subr.mxu0 0.0
    %v5305 = vand.u32 %v46, 4294901760
    %5306 = vmatpush1.msra.mxu0 %v5305
    %5307 = vmatprep.subr.mxu0 0.0
    %v5308 = vand.u32 %v47, 4294901760
    %5309 = vmatpush1.msra.mxu0 %v5308
    %5310 = vmatprep.subr.mxu0 0.0
    %v5311 = vand.u32 %v48, 4294901760
    %5312 = vmatpush1.msra.mxu0 %v5311
    %5313 = vmatprep.subr.mxu0 0.0
    %v5314 = vand.u32 %v49, 4294901760
    %5315 = vmatpush1.msra.mxu0 %v5314
    %5316 = vmatprep.subr.mxu0 0.0
    %v5317 = vand.u32 %v50, 4294901760
    %5318 = vmatpush1.msra.mxu0 %v5317
    %5319 = vmatprep.subr.mxu0 0.0
    %v5320 = vand.u32 %v51, 4294901760
    %5321 = vmatpush1.msra.mxu0 %v5320
    %5322 = vmatprep.subr.mxu0 0.0
    %v5323 = vand.u32 %v52, 4294901760
    %5324 = vmatpush1.msra.mxu0 %v5323
    %5325 = vmatprep.subr.mxu0 0.0
    %5326 = vmatpush1.msra.mxu0 0.0
    %5327 = vmatprep.subr.mxu0 0.0
    %5328 = vmatpush1.msra.mxu0 0.0
    %5329 = vmatprep.subr.mxu0 0.0
    %5330 = vmatpush1.msra.mxu0 0.0
    %5331 = vmatprep.subr.mxu0 0.0
    %5332 = vmatpush1.msra.mxu0 0.0
    %5333 = vmatprep.subr.mxu0 0.0
    %5334 = vmatpush1.msra.mxu0 0.0
    %5335 = vmatprep.subr.mxu0 0.0
    %5336 = vmatpush1.msra.mxu0 0.0
    %5337 = vmatprep.subr.mxu0 0.0
    %5338 = vmatpush1.msra.mxu0 0.0
    %5339 = vmatprep.subr.mxu0 0.0
    %5340 = vmatpush1.msra.mxu0 0.0
    %5341 = vmatprep.subr.mxu0 0.0
    %5342 = vmatpush1.msra.mxu0 0.0
    %5343 = vmatprep.subr.mxu0 0.0
    %5344 = vmatpush1.msra.mxu0 0.0
    %5345 = vmatprep.subr.mxu0 0.0
    %5346 = vmatpush1.msra.mxu0 0.0
    %5347 = vmatprep.subr.mxu0 0.0
    %5348 = vmatpush1.msra.mxu0 0.0
    %5349 = vmatprep.subr.mxu0 0.0
    %5350 = vmatpush1.msra.mxu0 0.0
    %5351 = vmatprep.subr.mxu0 0.0
    %5352 = vmatpush1.msra.mxu0 0.0
    %5353 = vmatprep.subr.mxu0 0.0
    %5354 = vmatpush1.msra.mxu0 0.0
    %5355 = vmatprep.subr.mxu0 0.0
    %5356 = vmatpush1.msra.mxu0 0.0
    %5357 = vmatprep.mubr.f32.mxu0 0.0
    %v5358 = vand.u32 %v4928, 4294901760
    %v5359 = vsub.f32 %v4928, %v5358
    %v5360 = vand.u32 %v5359, 4294901760
    %5361 = vmatmul.mubr.f32.gmra.mrb[0].mxu0 %v5360
    %v5362 = vpop.f32.mrb[0].mxu0
    %v5363 = vadd.f32 %v5274, %v5362
    %v5364 = vpop.f32.mrb[0].mxu0
    %5365 = vdwg.mxu0
    %5366 = vmatprep.subr.mxu0 0.0
    %v5367 = vand.u32 %v37, 4294901760
    %v5368 = vsub.f32 %v37, %v5367
    %v5369 = vand.u32 %v5368, 4294901760
    %5370 = vmatpush1.msra.mxu0 %v5369
    %5371 = vmatprep.subr.mxu0 0.0
    %v5372 = vand.u32 %v38, 4294901760
    %v5373 = vsub.f32 %v38, %v5372
    %v5374 = vand.u32 %v5373, 4294901760
    %5375 = vmatpush1.msra.mxu0 %v5374
    %5376 = vmatprep.subr.mxu0 0.0
    %v5377 = vand.u32 %v39, 4294901760
    %v5378 = vsub.f32 %v39, %v5377
    %v5379 = vand.u32 %v5378, 4294901760
    %5380 = vmatpush1.msra.mxu0 %v5379
    %5381 = vmatprep.subr.mxu0 0.0
    %v5382 = vand.u32 %v40, 4294901760
    %v5383 = vsub.f32 %v40, %v5382
    %v5384 = vand.u32 %v5383, 4294901760
    %5385 = vmatpush1.msra.mxu0 %v5384
    %5386 = vmatprep.subr.mxu0 0.0
    %v5387 = vand.u32 %v41, 4294901760
    %v5388 = vsub.f32 %v41, %v5387
    %v5389 = vand.u32 %v5388, 4294901760
    %5390 = vmatpush1.msra.mxu0 %v5389
    %5391 = vmatprep.subr.mxu0 0.0
    %v5392 = vand.u32 %v42, 4294901760
    %v5393 = vsub.f32 %v42, %v5392
    %v5394 = vand.u32 %v5393, 4294901760
    %5395 = vmatpush1.msra.mxu0 %v5394
    %5396 = vmatprep.subr.mxu0 0.0
    %v5397 = vand.u32 %v43, 4294901760
    %v5398 = vsub.f32 %v43, %v5397
    %v5399 = vand.u32 %v5398, 4294901760
    %5400 = vmatpush1.msra.mxu0 %v5399
    %5401 = vmatprep.subr.mxu0 0.0
    %v5402 = vand.u32 %v44, 4294901760
    %v5403 = vsub.f32 %v44, %v5402
    %v5404 = vand.u32 %v5403, 4294901760
    %5405 = vmatpush1.msra.mxu0 %v5404
    %5406 = vmatprep.subr.mxu0 0.0
    %v5407 = vand.u32 %v45, 4294901760
    %v5408 = vsub.f32 %v45, %v5407
    %v5409 = vand.u32 %v5408, 4294901760
    %5410 = vmatpush1.msra.mxu0 %v5409
    %5411 = vmatprep.subr.mxu0 0.0
    %v5412 = vand.u32 %v46, 4294901760
    %v5413 = vsub.f32 %v46, %v5412
    %v5414 = vand.u32 %v5413, 4294901760
    %5415 = vmatpush1.msra.mxu0 %v5414
    %5416 = vmatprep.subr.mxu0 0.0
    %v5417 = vand.u32 %v47, 4294901760
    %v5418 = vsub.f32 %v47, %v5417
    %v5419 = vand.u32 %v5418, 4294901760
    %5420 = vmatpush1.msra.mxu0 %v5419
    %5421 = vmatprep.subr.mxu0 0.0
    %v5422 = vand.u32 %v48, 4294901760
    %v5423 = vsub.f32 %v48, %v5422
    %v5424 = vand.u32 %v5423, 4294901760
    %5425 = vmatpush1.msra.mxu0 %v5424
    %5426 = vmatprep.subr.mxu0 0.0
    %v5427 = vand.u32 %v49, 4294901760
    %v5428 = vsub.f32 %v49, %v5427
    %v5429 = vand.u32 %v5428, 4294901760
    %5430 = vmatpush1.msra.mxu0 %v5429
    %5431 = vmatprep.subr.mxu0 0.0
    %v5432 = vand.u32 %v50, 4294901760
    %v5433 = vsub.f32 %v50, %v5432
    %v5434 = vand.u32 %v5433, 4294901760
    %5435 = vmatpush1.msra.mxu0 %v5434
    %5436 = vmatprep.subr.mxu0 0.0
    %v5437 = vand.u32 %v51, 4294901760
    %v5438 = vsub.f32 %v51, %v5437
    %v5439 = vand.u32 %v5438, 4294901760
    %5440 = vmatpush1.msra.mxu0 %v5439
    %5441 = vmatprep.subr.mxu0 0.0
    %v5442 = vand.u32 %v52, 4294901760
    %v5443 = vsub.f32 %v52, %v5442
    %v5444 = vand.u32 %v5443, 4294901760
    %5445 = vmatpush1.msra.mxu0 %v5444
    %5446 = vmatprep.subr.mxu0 0.0
    %5447 = vmatpush1.msra.mxu0 0.0
    %5448 = vmatprep.subr.mxu0 0.0
    %5449 = vmatpush1.msra.mxu0 0.0
    %5450 = vmatprep.subr.mxu0 0.0
    %5451 = vmatpush1.msra.mxu0 0.0
    %5452 = vmatprep.subr.mxu0 0.0
    %5453 = vmatpush1.msra.mxu0 0.0
    %5454 = vmatprep.subr.mxu0 0.0
    %5455 = vmatpush1.msra.mxu0 0.0
    %5456 = vmatprep.subr.mxu0 0.0
    %5457 = vmatpush1.msra.mxu0 0.0
    %5458 = vmatprep.subr.mxu0 0.0
    %5459 = vmatpush1.msra.mxu0 0.0
    %5460 = vmatprep.subr.mxu0 0.0
    %5461 = vmatpush1.msra.mxu0 0.0
    %5462 = vmatprep.subr.mxu0 0.0
    %5463 = vmatpush1.msra.mxu0 0.0
    %5464 = vmatprep.subr.mxu0 0.0
    %5465 = vmatpush1.msra.mxu0 0.0
    %5466 = vmatprep.subr.mxu0 0.0
    %5467 = vmatpush1.msra.mxu0 0.0
    %5468 = vmatprep.subr.mxu0 0.0
    %5469 = vmatpush1.msra.mxu0 0.0
    %5470 = vmatprep.subr.mxu0 0.0
    %5471 = vmatpush1.msra.mxu0 0.0
    %5472 = vmatprep.subr.mxu0 0.0
    %5473 = vmatpush1.msra.mxu0 0.0
    %5474 = vmatprep.subr.mxu0 0.0
    %5475 = vmatpush1.msra.mxu0 0.0
    %5476 = vmatprep.subr.mxu0 0.0
    %5477 = vmatpush1.msra.mxu0 0.0
    %5478 = vmatprep.mubr.f32.mxu0 0.0
    %v5479 = vand.u32 %v4928, 4294901760
    %5480 = vmatmul.mubr.f32.gmra.mrb[0].mxu0 %v5479
    %v5481 = vpop.f32.mrb[0].mxu0
    %v5482 = vadd.f32 %v5363, %v5481
    %v5483 = vpop.f32.mrb[0].mxu0
    %5484 = vdwg.mxu0
    %5485 = vmatprep.subr.mxu0 0.0
    %v5486 = vand.u32 %v37, 4294901760
    %5487 = vmatpush1.msra.mxu0 %v5486
    %5488 = vmatprep.subr.mxu0 0.0
    %v5489 = vand.u32 %v38, 4294901760
    %5490 = vmatpush1.msra.mxu0 %v5489
    %5491 = vmatprep.subr.mxu0 0.0
    %v5492 = vand.u32 %v39, 4294901760
    %5493 = vmatpush1.msra.mxu0 %v5492
    %5494 = vmatprep.subr.mxu0 0.0
    %v5495 = vand.u32 %v40, 4294901760
    %5496 = vmatpush1.msra.mxu0 %v5495
    %5497 = vmatprep.subr.mxu0 0.0
    %v5498 = vand.u32 %v41, 4294901760
    %5499 = vmatpush1.msra.mxu0 %v5498
    %5500 = vmatprep.subr.mxu0 0.0
    %v5501 = vand.u32 %v42, 4294901760
    %5502 = vmatpush1.msra.mxu0 %v5501
    %5503 = vmatprep.subr.mxu0 0.0
    %v5504 = vand.u32 %v43, 4294901760
    %5505 = vmatpush1.msra.mxu0 %v5504
    %5506 = vmatprep.subr.mxu0 0.0
    %v5507 = vand.u32 %v44, 4294901760
    %5508 = vmatpush1.msra.mxu0 %v5507
    %5509 = vmatprep.subr.mxu0 0.0
    %v5510 = vand.u32 %v45, 4294901760
    %5511 = vmatpush1.msra.mxu0 %v5510
    %5512 = vmatprep.subr.mxu0 0.0
    %v5513 = vand.u32 %v46, 4294901760
    %5514 = vmatpush1.msra.mxu0 %v5513
    %5515 = vmatprep.subr.mxu0 0.0
    %v5516 = vand.u32 %v47, 4294901760
    %5517 = vmatpush1.msra.mxu0 %v5516
    %5518 = vmatprep.subr.mxu0 0.0
    %v5519 = vand.u32 %v48, 4294901760
    %5520 = vmatpush1.msra.mxu0 %v5519
    %5521 = vmatprep.subr.mxu0 0.0
    %v5522 = vand.u32 %v49, 4294901760
    %5523 = vmatpush1.msra.mxu0 %v5522
    %5524 = vmatprep.subr.mxu0 0.0
    %v5525 = vand.u32 %v50, 4294901760
    %5526 = vmatpush1.msra.mxu0 %v5525
    %5527 = vmatprep.subr.mxu0 0.0
    %v5528 = vand.u32 %v51, 4294901760
    %5529 = vmatpush1.msra.mxu0 %v5528
    %5530 = vmatprep.subr.mxu0 0.0
    %v5531 = vand.u32 %v52, 4294901760
    %5532 = vmatpush1.msra.mxu0 %v5531
    %5533 = vmatprep.subr.mxu0 0.0
    %5534 = vmatpush1.msra.mxu0 0.0
    %5535 = vmatprep.subr.mxu0 0.0
    %5536 = vmatpush1.msra.mxu0 0.0
    %5537 = vmatprep.subr.mxu0 0.0
    %5538 = vmatpush1.msra.mxu0 0.0
    %5539 = vmatprep.subr.mxu0 0.0
    %5540 = vmatpush1.msra.mxu0 0.0
    %5541 = vmatprep.subr.mxu0 0.0
    %5542 = vmatpush1.msra.mxu0 0.0
    %5543 = vmatprep.subr.mxu0 0.0
    %5544 = vmatpush1.msra.mxu0 0.0
    %5545 = vmatprep.subr.mxu0 0.0
    %5546 = vmatpush1.msra.mxu0 0.0
    %5547 = vmatprep.subr.mxu0 0.0
    %5548 = vmatpush1.msra.mxu0 0.0
    %5549 = vmatprep.subr.mxu0 0.0
    %5550 = vmatpush1.msra.mxu0 0.0
    %5551 = vmatprep.subr.mxu0 0.0
    %5552 = vmatpush1.msra.mxu0 0.0
    %5553 = vmatprep.subr.mxu0 0.0
    %5554 = vmatpush1.msra.mxu0 0.0
    %5555 = vmatprep.subr.mxu0 0.0
    %5556 = vmatpush1.msra.mxu0 0.0
    %5557 = vmatprep.subr.mxu0 0.0
    %5558 = vmatpush1.msra.mxu0 0.0
    %5559 = vmatprep.subr.mxu0 0.0
    %5560 = vmatpush1.msra.mxu0 0.0
    %5561 = vmatprep.subr.mxu0 0.0
    %5562 = vmatpush1.msra.mxu0 0.0
    %5563 = vmatprep.subr.mxu0 0.0
    %5564 = vmatpush1.msra.mxu0 0.0
    %5565 = vmatprep.mubr.f32.mxu0 0.0
    %v5566 = vand.u32 %v4928, 4294901760
    %5567 = vmatmul.mubr.f32.gmra.mrb[0].mxu0 %v5566
    %v5568 = vpop.f32.mrb[0].mxu0
    %v5569 = vadd.f32 %v5482, %v5568
    %v5570 = vpop.f32.mrb[0].mxu0
    %5571 = vdwg.mxu0
    %v5572 = vsub.f32 %v5569, %v2263
    %v5573 = vmul.f32 %v5572, 2.0
    %v5574 = vstv %s35
    %v5575 = vadd.f32 %v5573, %v5574
    %v5576 = vadd.f32 %v3366, %v4469
    %v5577 = vadd.f32 %v5576, %v5574
    %v5578 = vmul.f32 %v2263, 2.0
    %v5579 = vstv %s34
    %v5580 = vadd.f32 %v5578, %v5579
    %v5581 = vmul.f32 %v5580, %v5575
    %v5582 = vadd.f32 %v2261, %v2262
    %v5583 = vadd.f32 %v5582, %v5579
    %v5584 = vmul.f32 %v5583, %v5577
    %v5585 = vrcp.pop %v5584
    %v5586 = vmul.f32 %v5581, %v5585
    %vm5587 = vcmask 390144
    %v5588 = vsel %vm5587, %v5586, 0.0
    %5589 = vadd.xlane.f32.xlu0 %v5588
    %v5590 = vpop.xlane.xlu0 %5589
    %v5591 = vrot.slane %v5590, 4
    %v5592 = vadd.f32 %v5590, %v5591
    %v5593 = vrot.slane %v5592, 2
    %v5594 = vadd.f32 %v5592, %v5593
    %v5595 = vrot.slane %v5594, 1
    %v5596 = vadd.f32 %v5594, %v5595
    %s5597 = vtos %v5596
    %s5598 = smul.f32 %s5597, 0.0034722222
    %v5599 = vstv %s5598
    %v5600 = vadd.f32 %v5599, 0.0
    %vm5601 = vcmask 0
    %5602 = vst.msk [vmem:[#allocation5] sm:$0x1] %vm5601, %v5600
    // Predicated region
    $region26: #{tpu_custom_call.1} parent=1 // pred_check
      _
    $region27: #{tpu_custom_call.1} parent=1 // pred_check_branch
      %5604 = sbr.rel (0) target = $region29
    $region28: #{tpu_custom_call.1} parent=1 // pred_region
      %s5606 = ssub.s32 16, 16
      %5607 = vsyncadd [#allocation3], %s5606
      %s5609 = sshll.u32 [#allocation5], 4
      %s5610 = int_to_ptr.vmem [resolvable:$true] %s5609
      %5612 = dma.vmem_to_hbm [thread:$0]  %s5610, 16, %s5, [#allocation3]
    $region29: #{tpu_custom_call.1} parent=1 // pred_fallthru
      _
    // Predicated region
    $region30: #{tpu_custom_call.1} parent=1 // pred_check
      _
    $region31: #{tpu_custom_call.1} parent=1 // pred_check_branch
      %5614 = sbr.rel (0) target = $region33
    $region32: #{tpu_custom_call.1} parent=1 // pred_region
      %5615 = dma.done [#allocation3], 16
    $region33: #{tpu_custom_call.1} parent=1 // pred_fallthru
      _
    %5616 = vsyncpa [#allocation3], 1
    %5617 = vsyncpa [#allocation4], 1

</llo_original>
